<compile_context>
chip_gen: v7x
topology: tpu7x:2x2x1
jax: 0.10.0
libtpu: 0.0.40
codegen_flags: <defaults>
</compile_context>

<pallas_src>
import math

import jax
import jax.numpy as jnp
from jax.experimental import pallas as pl
from jax.experimental.pallas import tpu as pltpu

_PAD = 8  # sublane-aligned pad rows at the top of the VMEM staging buffer


def _dpcnn_kernel(x_ref, pos_ref, w1_ref, b1_ref, w2_ref, b2_ref, o_ref, buf_ref):
    # x_ref:  (Bt, C, L)   NCL input block
    # pos_ref:(Bt*L_out,1) int32 row index within its batch (for boundary masks)
    # w*_ref: (3C, C)      fused conv taps, rows = [prev | center | next]
    # b*_ref: (1, C)
    # o_ref:  (Bt, C, L_out) NCL output block
    # buf_ref:(_PAD + Bt*L, C) VMEM staging buffer
    Bt, C, L = x_ref.shape
    L_out = L // 2
    M = Bt * L_out

    # ---- NCL -> (rows, C): per-batch XLU transpose into the staging buffer ----
    buf_ref[pl.ds(0, _PAD), :] = jnp.full((_PAD, C), -jnp.inf, dtype=buf_ref.dtype)
    for b in range(Bt):  # Bt is small and static
        buf_ref[pl.ds(_PAD + b * L, L), :] = jnp.transpose(x_ref[b], (1, 0))

    # Batch-boundary masks (hoisted; reused by pooling and both convs).
    pos = pos_ref[...]                       # (M, 1) int32
    is_first = pos == 0
    is_last = pos == (L_out - 1)

    # ---- MaxPool1d(kernel=3, stride=2, padding=1): three strided sublane loads ----
    center = buf_ref[pl.ds(_PAD, M, stride=2), :]        # x[2i]
    right = buf_ref[pl.ds(_PAD + 1, M, stride=2), :]     # x[2i+1]
    left = buf_ref[pl.ds(_PAD - 1, M, stride=2), :]      # x[2i-1]  (i=0 -> pad row)
    left = jnp.where(is_first, -jnp.inf, left)           # -inf pad at each batch start
    pooled = jnp.maximum(jnp.maximum(left, center), right)   # (M, C)

    b1 = b1_ref[...]                                     # (1, C), loaded once
    b2 = b2_ref[...]

    def conv3_bias(p, w_ref, bias):
        # Stage p so the +-1-row taps are plain (8x128-aligned) offset loads.
        buf_ref[pl.ds(_PAD, M), :] = p
        p_prev = jnp.where(is_first, 0.0, buf_ref[pl.ds(_PAD - 1, M), :])
        p_next = jnp.where(is_last, 0.0, buf_ref[pl.ds(_PAD + 1, M), :])
        p3 = jnp.concatenate([p_prev, p, p_next], axis=-1)    # (M, 3C) lane concat
        y = jnp.dot(p3, w_ref[...], preferred_element_type=jnp.float32)
        return y + bias

    h = jnp.maximum(conv3_bias(pooled, w1_ref, b1), 0.0)      # conv1 + ReLU
    h = jnp.maximum(conv3_bias(h, w2_ref, b2), 0.0)           # conv2 + ReLU
    y = h + pooled                                            # residual add

    # ---- back to NCL: per-batch XLU transpose straight into the output block ----
    for b in range(Bt):
        yb = y[b * L_out:(b + 1) * L_out, :]                  # (L_out, C)
        o_ref[b] = jnp.transpose(yb, (1, 0)).astype(o_ref.dtype)


def _pick_block_b(B, L_out):
    """Batches per grid step: fill the MXU M dimension, but keep >=2 grid steps
    when B allows (v7x has 2 TensorCores) and divide B evenly."""
    target_m = 256
    bt = max(1, min(B, max(1, target_m // max(L_out, 1))))
    if B >= 2:
        bt = min(bt, max(1, B // 2))
    while B % bt:
        bt -= 1
    return bt


def dpcnn_rep_block(x_ncl, w1, b1, w2, b2, *, block_b=None):
    """x_ncl: (B, C, L) float32 (PyTorch NCL), L even.
    w1, w2: (C, C, 3) PyTorch Conv1d weights; b1, b2: (C,).
    Returns (B, C, L // 2) in NCL layout."""
    B, C, L = x_ncl.shape
    assert L % 2 == 0, "kernel assumes an even sequence length"
    L_out = L // 2

    if block_b is None:
        block_b = _pick_block_b(B, L_out)
    assert B % block_b == 0
    M = block_b * L_out

    # Fuse the 3 conv taps into one K=3C contraction:
    # W3[t*C + cin, cout] = w[cout, cin, t]; tap 0 pairs with x[i-1] (prev).
    w1f = jnp.transpose(w1, (2, 1, 0)).reshape(3 * C, C)
    w2f = jnp.transpose(w2, (2, 1, 0)).reshape(3 * C, C)
    b1r = b1.reshape(1, C)
    b2r = b2.reshape(1, C)
    # Local row index within each batch (for boundary masking in the kernel).
    pos = (jnp.arange(M, dtype=jnp.int32) % L_out).reshape(M, 1)

    grid = (B // block_b,)

    # Explicit VMEM budget (v7x only has 64 MiB physical VMEM).
    est = 4 * (2 * block_b * C * L + 2 * block_b * C * L_out
               + (block_b * L + _PAD) * C + 2 * 2 * 3 * C * C
               + 10 * M * C + 2 * M * 3 * C)
    vmem_limit = int(min(64 * 1024 * 1024, max(32 * 1024 * 1024, 2 * est)))

    return pl.pallas_call(
        _dpcnn_kernel,
        out_shape=jax.ShapeDtypeStruct((B, C, L_out), x_ncl.dtype),
        grid_spec=pltpu.PrefetchScalarGridSpec(
            num_scalar_prefetch=0,
            grid=grid,
            in_specs=[
                pl.BlockSpec((block_b, C, L), lambda g: (g, 0, 0)),
                pl.BlockSpec((M, 1), lambda g: (0, 0)),
                pl.BlockSpec((3 * C, C), lambda g: (0, 0)),
                pl.BlockSpec((1, C), lambda g: (0, 0)),
                pl.BlockSpec((3 * C, C), lambda g: (0, 0)),
                pl.BlockSpec((1, C), lambda g: (0, 0)),
            ],
            out_specs=pl.BlockSpec((block_b, C, L_out), lambda g: (g, 0, 0)),
            scratch_shapes=[pltpu.VMEM((_PAD + block_b * L, C), x_ncl.dtype)],
        ),
        compiler_params=pltpu.CompilerParams(
            dimension_semantics=("parallel",),
            vmem_limit_bytes=vmem_limit,
        ),
    )(x_ncl, pos, w1f, b1r, w2f, b2r)


def _reference(x, w1, b1, w2, b2):
    """Plain-JAX reference matching the PyTorch forward (NCL layout)."""
    pooled = jax.lax.reduce_window(
        x, -jnp.inf, jax.lax.max,
        window_dimensions=(1, 1, 3), window_strides=(1, 1, 2),
        padding=((0, 0), (0, 0), (1, 1)))

    def conv(p, w, b):
        y = jax.lax.conv_general_dilated(
            p, w, window_strides=(1,), padding=((1, 1),),
            dimension_numbers=("NCH", "OIH", "NCH"))
        return y + b[None, :, None]

    h = jax.nn.relu(conv(pooled, w1, b1))
    h = jax.nn.relu(conv(h, w2, b2))
    return h + pooled


if __name__ == "__main__":
    # Small but lane/MXU-friendly DPCNN shapes: batch=4, channels=128, length=256.
    B, C, L = 4, 128, 256

    key = jax.random.PRNGKey(0)
    k_x, k_w1, k_b1, k_w2, k_b2 = jax.random.split(key, 5)

    x = jax.random.normal(k_x, (B, C, L), jnp.float32)

    # Deterministic PyTorch-style Conv1d init: U(-1/sqrt(fan_in), 1/sqrt(fan_in)).
    bound = 1.0 / math.sqrt(C * 3)
    w1 = jax.random.uniform(k_w1, (C, C, 3), jnp.float32, -bound, bound)
    b1 = jax.random.uniform(k_b1, (C,), jnp.float32, -bound, bound)
    w2 = jax.random.uniform(k_w2, (C, C, 3), jnp.float32, -bound, bound)
    b2 = jax.random.uniform(k_b2, (C,), jnp.float32, -bound, bound)

    out = jax.block_until_ready(dpcnn_rep_block(x, w1, b1, w2, b2))
    ref = jax.block_until_ready(_reference(x, w1, b1, w2, b2))

    assert out.shape == (B, C, L // 2), out.shape
    err = float(jnp.max(jnp.abs(out - ref)))
    assert jnp.allclose(out, ref, atol=2e-4, rtol=2e-4), err

    print("KERNEL_OK")
</pallas_src>

<mosaic_0001>
module attributes {stable_mosaic.version = 11 : i64} {
  func.func @_dpcnn_kernel(%arg0: i32, %arg1: memref<2x128x256xf32, #tpu.memory_space<vmem>>, %arg2: memref<256x1xi32, #tpu.memory_space<vmem>>, %arg3: memref<384x128xf32, #tpu.memory_space<vmem>>, %arg4: memref<1x128xf32, #tpu.memory_space<vmem>>, %arg5: memref<384x128xf32, #tpu.memory_space<vmem>>, %arg6: memref<1x128xf32, #tpu.memory_space<vmem>>, %arg7: memref<2x128x128xf32, #tpu.memory_space<vmem>>, %arg8: memref<520x128xf32, #tpu.memory_space<vmem>>) attributes {dimension_semantics = [#tpu.dimension_semantics<parallel>], iteration_bounds = array<i64: 2>, scalar_prefetch = 0 : i64, scratch_operands = 1 : i64, tpu.core_type = #tpu.core_type<tc>, window_params = [{transform_indices = @transform_0, window_bounds = array<i64: 2, 128, 256>}, {pipeline_mode = #tpu.pipeline_mode<synchronous>, transform_indices = @transform_1, window_bounds = array<i64: 256, 1>}, {pipeline_mode = #tpu.pipeline_mode<synchronous>, transform_indices = @transform_2, window_bounds = array<i64: 384, 128>}, {pipeline_mode = #tpu.pipeline_mode<synchronous>, transform_indices = @transform_3, window_bounds = array<i64: 1, 128>}, {pipeline_mode = #tpu.pipeline_mode<synchronous>, transform_indices = @transform_4, window_bounds = array<i64: 384, 128>}, {pipeline_mode = #tpu.pipeline_mode<synchronous>, transform_indices = @transform_5, window_bounds = array<i64: 1, 128>}, {transform_indices = @transform_6, window_bounds = array<i64: 2, 128, 128>}]} {
    %cst = arith.constant 0xFF800000 : f32
    %0 = vector.broadcast %cst : f32 to vector<8x128xf32>
    %c0 = arith.constant 0 : index
    %c0_0 = arith.constant 0 : index
    %1 = vector.load %arg8[%c0, %c0_0] : memref<520x128xf32, #tpu.memory_space<vmem>>, vector<8x128xf32>
    tpu.vector_store %arg8[%c0, %c0_0], %0 {strides = array<i32>} : memref<520x128xf32, #tpu.memory_space<vmem>>, vector<8x128xf32>,
    %c0_1 = arith.constant 0 : index
    %c0_2 = arith.constant 0 : index
    %c0_3 = arith.constant 0 : index
    %2 = vector.load %arg1[%c0_1, %c0_2, %c0_3] : memref<2x128x256xf32, #tpu.memory_space<vmem>>, vector<1x128x256xf32>
    %3 = vector.shape_cast %2 : vector<1x128x256xf32> to vector<128x256xf32>
    %4 = tpu.transpose %3, [1, 0] : vector<128x256xf32> -> vector<256x128xf32>
    %c8 = arith.constant 8 : index
    %c0_4 = arith.constant 0 : index
    %5 = vector.load %arg8[%c8, %c0_4] : memref<520x128xf32, #tpu.memory_space<vmem>>, vector<256x128xf32>
    tpu.vector_store %arg8[%c8, %c0_4], %4 {strides = array<i32>} : memref<520x128xf32, #tpu.memory_space<vmem>>, vector<256x128xf32>,
    %c1 = arith.constant 1 : index
    %c0_5 = arith.constant 0 : index
    %c0_6 = arith.constant 0 : index
    %6 = vector.load %arg1[%c1, %c0_5, %c0_6] : memref<2x128x256xf32, #tpu.memory_space<vmem>>, vector<1x128x256xf32>
    %7 = vector.shape_cast %6 : vector<1x128x256xf32> to vector<128x256xf32>
    %8 = tpu.transpose %7, [1, 0] : vector<128x256xf32> -> vector<256x128xf32>
    %c264 = arith.constant 264 : index
    %c0_7 = arith.constant 0 : index
    %9 = vector.load %arg8[%c264, %c0_7] : memref<520x128xf32, #tpu.memory_space<vmem>>, vector<256x128xf32>
    tpu.vector_store %arg8[%c264, %c0_7], %8 {strides = array<i32>} : memref<520x128xf32, #tpu.memory_space<vmem>>, vector<256x128xf32>,
    %c0_8 = arith.constant 0 : index
    %c0_9 = arith.constant 0 : index
    %10 = vector.load %arg2[%c0_8, %c0_9] : memref<256x1xi32, #tpu.memory_space<vmem>>, vector<256x1xi32>
    %c0_i32 = arith.constant 0 : i32
    %11 = vector.broadcast %c0_i32 : i32 to vector<256x1xi32>
    %12 = arith.cmpi eq, %10, %11 : vector<256x1xi32>
    %c127_i32 = arith.constant 127 : i32
    %13 = vector.broadcast %c127_i32 : i32 to vector<256x1xi32>
    %14 = arith.cmpi eq, %10, %13 : vector<256x1xi32>
    %c8_10 = arith.constant 8 : index
    %c0_11 = arith.constant 0 : index
    %15 = tpu.strided_load %arg8[%c8_10, %c0_11] {strides = array<i32: 2, 1>} : memref<520x128xf32, #tpu.memory_space<vmem>>, vector<256x128xf32>
    %c9 = arith.constant 9 : index
    %c0_12 = arith.constant 0 : index
    %16 = tpu.strided_load %arg8[%c9, %c0_12] {strides = array<i32: 2, 1>} : memref<520x128xf32, #tpu.memory_space<vmem>>, vector<256x128xf32>
    %c7 = arith.constant 7 : index
    %c0_13 = arith.constant 0 : index
    %17 = tpu.strided_load %arg8[%c7, %c0_13] {strides = array<i32: 2, 1>} : memref<520x128xf32, #tpu.memory_space<vmem>>, vector<256x128xf32>
    %cst_14 = arith.constant 0xFF800000 : f32
    %18 = vector.shape_cast %12 : vector<256x1xi1> to vector<256x1xi1>
    %19 = vector.broadcast %18 : vector<256x1xi1> to vector<256x128xi1>
    %20 = vector.broadcast %cst_14 : f32 to vector<256x128xf32>
    %21 = arith.select %19, %20, %17 : vector<256x128xi1>, vector<256x128xf32>
    %22 = arith.maximumf %21, %15 : vector<256x128xf32>
    %23 = arith.maximumf %22, %16 : vector<256x128xf32>
    %c0_15 = arith.constant 0 : index
    %c0_16 = arith.constant 0 : index
    %24 = vector.load %arg4[%c0_15, %c0_16] : memref<1x128xf32, #tpu.memory_space<vmem>>, vector<1x128xf32>
    %c0_17 = arith.constant 0 : index
    %c0_18 = arith.constant 0 : index
    %25 = vector.load %arg6[%c0_17, %c0_18] : memref<1x128xf32, #tpu.memory_space<vmem>>, vector<1x128xf32>
    %c8_19 = arith.constant 8 : index
    %c0_20 = arith.constant 0 : index
    %26 = vector.load %arg8[%c8_19, %c0_20] : memref<520x128xf32, #tpu.memory_space<vmem>>, vector<256x128xf32>
    tpu.vector_store %arg8[%c8_19, %c0_20], %23 {strides = array<i32>} : memref<520x128xf32, #tpu.memory_space<vmem>>, vector<256x128xf32>,
    %c7_21 = arith.constant 7 : index
    %c0_22 = arith.constant 0 : index
    %27 = vector.load %arg8[%c7_21, %c0_22] : memref<520x128xf32, #tpu.memory_space<vmem>>, vector<256x128xf32>
    %cst_23 = arith.constant 0.000000e+00 : f32
    %28 = vector.shape_cast %12 : vector<256x1xi1> to vector<256x1xi1>
    %29 = vector.broadcast %28 : vector<256x1xi1> to vector<256x128xi1>
    %30 = vector.broadcast %cst_23 : f32 to vector<256x128xf32>
    %31 = arith.select %29, %30, %27 : vector<256x128xi1>, vector<256x128xf32>
    %c9_24 = arith.constant 9 : index
    %c0_25 = arith.constant 0 : index
    %32 = vector.load %arg8[%c9_24, %c0_25] : memref<520x128xf32, #tpu.memory_space<vmem>>, vector<256x128xf32>
    %cst_26 = arith.constant 0.000000e+00 : f32
    %33 = vector.shape_cast %14 : vector<256x1xi1> to vector<256x1xi1>
    %34 = vector.broadcast %33 : vector<256x1xi1> to vector<256x128xi1>
    %35 = vector.broadcast %cst_26 : f32 to vector<256x128xf32>
    %36 = arith.select %34, %35, %32 : vector<256x128xi1>, vector<256x128xf32>
    %37 = tpu.concatenate %31, %23, %36 in 1 : vector<256x128xf32>, vector<256x128xf32>, vector<256x128xf32> -> vector<256x384xf32>
    %c0_27 = arith.constant 0 : index
    %c0_28 = arith.constant 0 : index
    %38 = vector.load %arg3[%c0_27, %c0_28] : memref<384x128xf32, #tpu.memory_space<vmem>>, vector<384x128xf32>
    %cst_29 = arith.constant dense<0.000000e+00> : vector<256x128xf32>
    %39 = tpu.matmul %37, %38, %cst_29 {dimension_numbers = #tpu.dot_dimension_numbers<[1], [0], [0], [1], [0, 0, 1, 1], [], []>} : vector<256x384xf32>, vector<384x128xf32>, vector<256x128xf32> -> vector<256x128xf32>
    %40 = vector.broadcast %24 : vector<1x128xf32> to vector<256x128xf32>
    %41 = arith.addf %39, %40 : vector<256x128xf32>
    %cst_30 = arith.constant 0.000000e+00 : f32
    %42 = vector.broadcast %cst_30 : f32 to vector<256x128xf32>
    %43 = arith.maximumf %41, %42 : vector<256x128xf32>
    %c8_31 = arith.constant 8 : index
    %c0_32 = arith.constant 0 : index
    %44 = vector.load %arg8[%c8_31, %c0_32] : memref<520x128xf32, #tpu.memory_space<vmem>>, vector<256x128xf32>
    tpu.vector_store %arg8[%c8_31, %c0_32], %43 {strides = array<i32>} : memref<520x128xf32, #tpu.memory_space<vmem>>, vector<256x128xf32>,
    %c7_33 = arith.constant 7 : index
    %c0_34 = arith.constant 0 : index
    %45 = vector.load %arg8[%c7_33, %c0_34] : memref<520x128xf32, #tpu.memory_space<vmem>>, vector<256x128xf32>
    %cst_35 = arith.constant 0.000000e+00 : f32
    %46 = vector.shape_cast %12 : vector<256x1xi1> to vector<256x1xi1>
    %47 = vector.broadcast %46 : vector<256x1xi1> to vector<256x128xi1>
    %48 = vector.broadcast %cst_35 : f32 to vector<256x128xf32>
    %49 = arith.select %47, %48, %45 : vector<256x128xi1>, vector<256x128xf32>
    %c9_36 = arith.constant 9 : index
    %c0_37 = arith.constant 0 : index
    %50 = vector.load %arg8[%c9_36, %c0_37] : memref<520x128xf32, #tpu.memory_space<vmem>>, vector<256x128xf32>
    %cst_38 = arith.constant 0.000000e+00 : f32
    %51 = vector.shape_cast %14 : vector<256x1xi1> to vector<256x1xi1>
    %52 = vector.broadcast %51 : vector<256x1xi1> to vector<256x128xi1>
    %53 = vector.broadcast %cst_38 : f32 to vector<256x128xf32>
    %54 = arith.select %52, %53, %50 : vector<256x128xi1>, vector<256x128xf32>
    %55 = tpu.concatenate %49, %43, %54 in 1 : vector<256x128xf32>, vector<256x128xf32>, vector<256x128xf32> -> vector<256x384xf32>
    %c0_39 = arith.constant 0 : index
    %c0_40 = arith.constant 0 : index
    %56 = vector.load %arg5[%c0_39, %c0_40] : memref<384x128xf32, #tpu.memory_space<vmem>>, vector<384x128xf32>
    %cst_41 = arith.constant dense<0.000000e+00> : vector<256x128xf32>
    %57 = tpu.matmul %55, %56, %cst_41 {dimension_numbers = #tpu.dot_dimension_numbers<[1], [0], [0], [1], [0, 0, 1, 1], [], []>} : vector<256x384xf32>, vector<384x128xf32>, vector<256x128xf32> -> vector<256x128xf32>
    %58 = vector.broadcast %25 : vector<1x128xf32> to vector<256x128xf32>
    %59 = arith.addf %57, %58 : vector<256x128xf32>
    %cst_42 = arith.constant 0.000000e+00 : f32
    %60 = vector.broadcast %cst_42 : f32 to vector<256x128xf32>
    %61 = arith.maximumf %59, %60 : vector<256x128xf32>
    %62 = arith.addf %61, %23 : vector<256x128xf32>
    %63 = vector.extract_strided_slice %62 {offsets = [0, 0], sizes = [128, 128], strides = [1, 1]} : vector<256x128xf32> to vector<128x128xf32>
    %64 = tpu.transpose %63, [1, 0] : vector<128x128xf32> -> vector<128x128xf32>
    %c0_43 = arith.constant 0 : index
    %c0_44 = arith.constant 0 : index
    %c0_45 = arith.constant 0 : index
    %65 = vector.load %arg7[%c0_43, %c0_44, %c0_45] : memref<2x128x128xf32, #tpu.memory_space<vmem>>, vector<1x128x128xf32>
    %66 = vector.shape_cast %65 : vector<1x128x128xf32> to vector<128x128xf32>
    %67 = vector.shape_cast %64 : vector<128x128xf32> to vector<1x128x128xf32>
    tpu.vector_store %arg7[%c0_43, %c0_44, %c0_45], %67 {strides = array<i32>} : memref<2x128x128xf32, #tpu.memory_space<vmem>>, vector<1x128x128xf32>,
    %68 = vector.extract_strided_slice %62 {offsets = [128, 0], sizes = [128, 128], strides = [1, 1]} : vector<256x128xf32> to vector<128x128xf32>
    %69 = tpu.transpose %68, [1, 0] : vector<128x128xf32> -> vector<128x128xf32>
    %c1_46 = arith.constant 1 : index
    %c0_47 = arith.constant 0 : index
    %c0_48 = arith.constant 0 : index
    %70 = vector.load %arg7[%c1_46, %c0_47, %c0_48] : memref<2x128x128xf32, #tpu.memory_space<vmem>>, vector<1x128x128xf32>
    %71 = vector.shape_cast %70 : vector<1x128x128xf32> to vector<128x128xf32>
    %72 = vector.shape_cast %69 : vector<128x128xf32> to vector<1x128x128xf32>
    tpu.vector_store %arg7[%c1_46, %c0_47, %c0_48], %72 {strides = array<i32>} : memref<2x128x128xf32, #tpu.memory_space<vmem>>, vector<1x128x128xf32>,
    return
  }
  func.func @transform_0(%arg0: i32) -> (i32, i32, i32) {
    %c0_i32 = arith.constant 0 : i32
    %c0_i32_0 = arith.constant 0 : i32
    %c0_i32_1 = arith.constant 0 : i32
    return %arg0, %c0_i32, %c0_i32_0 : i32, i32, i32
  }
  func.func @transform_1(%arg0: i32) -> (i32, i32) {
    %c0_i32 = arith.constant 0 : i32
    %c0_i32_0 = arith.constant 0 : i32
    %c0_i32_1 = arith.constant 0 : i32
    return %c0_i32, %c0_i32_0 : i32, i32
  }
  func.func @transform_2(%arg0: i32) -> (i32, i32) {
    %c0_i32 = arith.constant 0 : i32
    %c0_i32_0 = arith.constant 0 : i32
    %c0_i32_1 = arith.constant 0 : i32
    return %c0_i32, %c0_i32_0 : i32, i32
  }
  func.func @transform_3(%arg0: i32) -> (i32, i32) {
    %c0_i32 = arith.constant 0 : i32
    %c0_i32_0 = arith.constant 0 : i32
    %c0_i32_1 = arith.constant 0 : i32
    return %c0_i32, %c0_i32_0 : i32, i32
  }
  func.func @transform_4(%arg0: i32) -> (i32, i32) {
    %c0_i32 = arith.constant 0 : i32
    %c0_i32_0 = arith.constant 0 : i32
    %c0_i32_1 = arith.constant 0 : i32
    return %c0_i32, %c0_i32_0 : i32, i32
  }
  func.func @transform_5(%arg0: i32) -> (i32, i32) {
    %c0_i32 = arith.constant 0 : i32
    %c0_i32_0 = arith.constant 0 : i32
    %c0_i32_1 = arith.constant 0 : i32
    return %c0_i32, %c0_i32_0 : i32, i32
  }
  func.func @transform_6(%arg0: i32) -> (i32, i32, i32) {
    %c0_i32 = arith.constant 0 : i32
    %c0_i32_0 = arith.constant 0 : i32
    %c0_i32_1 = arith.constant 0 : i32
    return %arg0, %c0_i32, %c0_i32_0 : i32, i32, i32
  }
}

</mosaic_0001>

<llo_original>
// kernel: tpu_custom_call.1
$region0: #{tpu_custom_call.1}
  #allocation0 [shape = 'u32[]', space=smem, size = 0x4, offset = 0x4, fixed_abs, tag = 'smem constant byte address 0x4 - core index']
  #allocation1 [shape = 'u32[144,128]{1,0:T(1,128)}', space=vmem, size = 0x12000, scoped, tag = 'internal scratch']
  #allocation2 [shape = 'f32[520,128]{1,0:T(8,128)}', space=vmem, size = 0x41000, scoped, tag = 'scratch operand']
  %s0 = inlined_call_operand.hbm [shape: f32[4,128,256], index: 0, kind: input, shape index: {}]
  %s1 = inlined_call_operand.vmem [shape: s32[256,1], index: 1, kind: input, shape index: {}]
  %s2 = inlined_call_operand.hbm [shape: f32[384,128], index: 2, kind: input, shape index: {}]
  %s3 = inlined_call_operand.vmem [shape: f32[1,128], index: 3, kind: input, shape index: {}]
  %s4 = inlined_call_operand.hbm [shape: f32[384,128], index: 4, kind: input, shape index: {}]
  %s5 = inlined_call_operand.vmem [shape: f32[1,128], index: 5, kind: input, shape index: {}]
  %s6 = inlined_call_operand.hbm [shape: f32[4,128,128], index: 6, kind: output, shape index: {}]
  %s7 = sld [smem:[#allocation0]]
  $region69: #{tpu_custom_call.1} parent=0
    _
  %s9 = ssub.s32 1, %s7
  %s10 = scalar_select 0, %s9, %s7
  $region1: #{tpu_custom_call.1} parent=0
    #allocation3 [shape = 'u8[524288]{0}', space=vmem, size = 0x80000, scoped, tag = 'input window, operand 0']
    #allocation4 [shape = 's32[2]{0}', space=sflag, size = 0x8, scoped, tag = 'scoped memory for tpu_custom_call.1']
    #allocation5 [shape = 's32[2]{0}', space=sflag, size = 0x8, scoped, tag = 'scoped memory for tpu_custom_call.1']
    #allocation6 [shape = 'u8[196608]{0}', space=vmem, size = 0x30000, scoped, tag = 'input window, operand 2, single buffered']
    #allocation7 [shape = 's32[1]{0}', space=sflag, size = 0x4, scoped, tag = 'scoped memory for tpu_custom_call.1']
    #allocation8 [shape = 'u8[196608]{0}', space=vmem, size = 0x30000, scoped, tag = 'input window, operand 4, single buffered']
    #allocation9 [shape = 'u8[262144]{0}', space=vmem, size = 0x40000, scoped, tag = 'output window, operand 0']
    %11 = vsyncpa [#allocation4], 0
    %s12 = scalar_lea.sflag [#allocation4], 1
    %13 = vsyncpa %s12, 0
    %14 = vsyncpa [#allocation7], 0
    %15 = vsyncpa [#allocation5], 0
    %s16 = scalar_lea.sflag [#allocation5], 1
    %17 = vsyncpa %s16, 0
    loop: start=0, step=1, limit=4
    $region2: #{tpu_custom_call.1} parent=1 // loop_pre_header
      _
    $region3: #{tpu_custom_call.1} parent=1 // loop_header
      %s19 = sphi 0, %s23
      %p20 = scmp.ge.s32.totalorder %s19, 4
      %s29 = sphi 0, %s31
      %s32 = sphi 0, %s29
      %s33 = sphi 0, %s32
      %s49 = sphi 0, %s33
      %s53 = sphi 0, %s53
      %s55 = sphi 0, %s53
      %s56 = sphi 0, %s55
      %s70 = sphi 0, %s56
      %s74 = sphi 0, %s74
      %s76 = sphi 0, %s74
      %s77 = sphi 0, %s76
      %s91 = sphi 0, %s77
      %s95 = sphi 0, %s95
      %s97 = sphi 0, %s95
      %s98 = sphi 0, %s97
      %s112 = sphi 0, %s98
      %s116 = sphi 0, %s116
      %s118 = sphi 0, %s116
      %s119 = sphi 0, %s118
      %s133 = sphi 0, %s119
      %s137 = sphi 0, %s137
      %s139 = sphi 0, %s137
      %s140 = sphi 0, %s139
      %s154 = sphi 0, %s140
      %s160 = sphi 0, %s162
      %s163 = sphi 0, %s160
      %s164 = sphi 0, %s163
      %s180 = sphi 0, %s164
    $region4: #{tpu_custom_call.1} parent=1 // loop_header_branch
      %22 = sbr.rel (%p20) target = $region8
    $region5: #{tpu_custom_call.1} parent=1 // loop_body
      %s24 = ssub.s32 %s19, 1
      %s25 = ssub.s32 %s19, 2
      %s26 = sadd.s32 %s19, 1
      %s27 = ssub.s32 %s19, %s26
      %p28 = scmp.eq.s32.totalorder %s27, 0
      %s30 = sadd.s32 %s29, 1
      %s31 = scalar_select %p28, %s29, %s30
      %p34 = pneg %p28
      %p35 = scmp.eq.s32.totalorder %s19, 1
      %p36 = por %p34, %p35
      %p37 = scmp.ne.s32.totalorder %s29, %s32
      %p38 = scmp.eq.s32.totalorder %s19, 0
      %p39 = por %p37, %p38
      %p40 = scmp.ne.s32.totalorder %s29, %s32
      %p41 = scmp.eq.s32.totalorder %s24, 1
      %p42 = por %p40, %p41
      %p43 = scmp.ne.s32.totalorder %s32, %s33
      %p44 = scmp.eq.s32.totalorder %s24, 0
      %p45 = por %p43, %p44
      %p46 = scmp.ne.s32.totalorder %s32, %s33
      %p47 = scmp.eq.s32.totalorder %s25, 1
      %p48 = por %p46, %p47
      %p50 = scmp.ne.s32.totalorder %s33, %s49
      %p51 = scmp.eq.s32.totalorder %s25, 0
      %p52 = por %p50, %p51
      %s54 = sadd.s32 %s53, 1
      %p57 = scmp.eq.s32.totalorder %s19, 1
      %p58 = scmp.ne.s32.totalorder %s53, %s55
      %p59 = scmp.eq.s32.totalorder %s19, 0
      %p60 = por %p58, %p59
      %p61 = scmp.ne.s32.totalorder %s53, %s55
      %p62 = scmp.eq.s32.totalorder %s24, 1
      %p63 = por %p61, %p62
      %p64 = scmp.ne.s32.totalorder %s55, %s56
      %p65 = scmp.eq.s32.totalorder %s24, 0
      %p66 = por %p64, %p65
      %p67 = scmp.ne.s32.totalorder %s55, %s56
      %p68 = scmp.eq.s32.totalorder %s25, 1
      %p69 = por %p67, %p68
      %p71 = scmp.ne.s32.totalorder %s56, %s70
      %p72 = scmp.eq.s32.totalorder %s25, 0
      %p73 = por %p71, %p72
      %s75 = sadd.s32 %s74, 1
      %p78 = scmp.eq.s32.totalorder %s19, 1
      %p79 = scmp.ne.s32.totalorder %s74, %s76
      %p80 = scmp.eq.s32.totalorder %s19, 0
      %p81 = por %p79, %p80
      %p82 = scmp.ne.s32.totalorder %s74, %s76
      %p83 = scmp.eq.s32.totalorder %s24, 1
      %p84 = por %p82, %p83
      %p85 = scmp.ne.s32.totalorder %s76, %s77
      %p86 = scmp.eq.s32.totalorder %s24, 0
      %p87 = por %p85, %p86
      %p88 = scmp.ne.s32.totalorder %s76, %s77
      %p89 = scmp.eq.s32.totalorder %s25, 1
      %p90 = por %p88, %p89
      %p92 = scmp.ne.s32.totalorder %s77, %s91
      %p93 = scmp.eq.s32.totalorder %s25, 0
      %p94 = por %p92, %p93
      %s96 = sadd.s32 %s95, 1
      %p99 = scmp.eq.s32.totalorder %s19, 1
      %p100 = scmp.ne.s32.totalorder %s95, %s97
      %p101 = scmp.eq.s32.totalorder %s19, 0
      %p102 = por %p100, %p101
      %p103 = scmp.ne.s32.totalorder %s95, %s97
      %p104 = scmp.eq.s32.totalorder %s24, 1
      %p105 = por %p103, %p104
      %p106 = scmp.ne.s32.totalorder %s97, %s98
      %p107 = scmp.eq.s32.totalorder %s24, 0
      %p108 = por %p106, %p107
      %p109 = scmp.ne.s32.totalorder %s97, %s98
      %p110 = scmp.eq.s32.totalorder %s25, 1
      %p111 = por %p109, %p110
      %p113 = scmp.ne.s32.totalorder %s98, %s112
      %p114 = scmp.eq.s32.totalorder %s25, 0
      %p115 = por %p113, %p114
      %s117 = sadd.s32 %s116, 1
      %p120 = scmp.eq.s32.totalorder %s19, 1
      %p121 = scmp.ne.s32.totalorder %s116, %s118
      %p122 = scmp.eq.s32.totalorder %s19, 0
      %p123 = por %p121, %p122
      %p124 = scmp.ne.s32.totalorder %s116, %s118
      %p125 = scmp.eq.s32.totalorder %s24, 1
      %p126 = por %p124, %p125
      %p127 = scmp.ne.s32.totalorder %s118, %s119
      %p128 = scmp.eq.s32.totalorder %s24, 0
      %p129 = por %p127, %p128
      %p130 = scmp.ne.s32.totalorder %s118, %s119
      %p131 = scmp.eq.s32.totalorder %s25, 1
      %p132 = por %p130, %p131
      %p134 = scmp.ne.s32.totalorder %s119, %s133
      %p135 = scmp.eq.s32.totalorder %s25, 0
      %p136 = por %p134, %p135
      %s138 = sadd.s32 %s137, 1
      %p141 = scmp.eq.s32.totalorder %s19, 1
      %p142 = scmp.ne.s32.totalorder %s137, %s139
      %p143 = scmp.eq.s32.totalorder %s19, 0
      %p144 = por %p142, %p143
      %p145 = scmp.ne.s32.totalorder %s137, %s139
      %p146 = scmp.eq.s32.totalorder %s24, 1
      %p147 = por %p145, %p146
      %p148 = scmp.ne.s32.totalorder %s139, %s140
      %p149 = scmp.eq.s32.totalorder %s24, 0
      %p150 = por %p148, %p149
      %p151 = scmp.ne.s32.totalorder %s139, %s140
      %p152 = scmp.eq.s32.totalorder %s25, 1
      %p153 = por %p151, %p152
      %p155 = scmp.ne.s32.totalorder %s140, %s154
      %p156 = scmp.eq.s32.totalorder %s25, 0
      %p157 = por %p155, %p156
      %s158 = ssub.s32 %s19, %s26
      %p159 = scmp.eq.s32.totalorder %s158, 0
      %s161 = sadd.s32 %s160, 1
      %s162 = scalar_select %p159, %s160, %s161
      %p165 = pneg %p159
      %p166 = scmp.eq.s32.totalorder %s19, 1
      %p167 = por %p165, %p166
      %p168 = scmp.ne.s32.totalorder %s160, %s163
      %p169 = scmp.eq.s32.totalorder %s19, 0
      %p170 = por %p168, %p169
      %p171 = scmp.ne.s32.totalorder %s160, %s163
      %p172 = scmp.eq.s32.totalorder %s24, 1
      %p173 = por %p171, %p172
      %p174 = scmp.ne.s32.totalorder %s163, %s164
      %p175 = scmp.eq.s32.totalorder %s24, 0
      %p176 = por %p174, %p175
      %p177 = scmp.ne.s32.totalorder %s163, %s164
      %p178 = scmp.eq.s32.totalorder %s25, 1
      %p179 = por %p177, %p178
      %p181 = scmp.ne.s32.totalorder %s164, %s180
      %p182 = scmp.eq.s32.totalorder %s25, 0
      %p183 = por %p181, %p182
      %p184 = scmp.le.s32.totalorder 1, %s19
      %p185 = scmp.lt.s32.totalorder %s19, 3
      %p186 = pnand %p184, %p185
      %p187 = pneg %p186
      // Predicated region
      $region9: #{tpu_custom_call.1} parent=5 // pred_check
        _
      $region10: #{tpu_custom_call.1} parent=5 // pred_check_branch
        %189 = sbr.rel (%p186) target = $region12
      $region11: #{tpu_custom_call.1} parent=5 // pred_region
        %s190 = ssub.s32 %s19, 1
        // Predicated region
        $region13: #{tpu_custom_call.1} parent=11 // pred_check
          %p191 = pneg %p66
        $region14: #{tpu_custom_call.1} parent=11 // pred_check_branch
          %193 = sbr.rel (%p191) target = $region16
        $region15: #{tpu_custom_call.1} parent=11 // pred_region
          _
        $region16: #{tpu_custom_call.1} parent=11 // pred_fallthru
          _
        // Predicated region
        $region17: #{tpu_custom_call.1} parent=11 // pred_check
          %p194 = pneg %p87
        $region18: #{tpu_custom_call.1} parent=11 // pred_check_branch
          %196 = sbr.rel (%p194) target = $region20
        $region19: #{tpu_custom_call.1} parent=11 // pred_region
          %s198 = ssub.s32 6144, 6144
          %199 = vsyncadd [#allocation7], %s198
          %s200 = sshll.u32 [#allocation6], 4
          %s201 = int_to_ptr.vmem [resolvable:$true] %s200
          %206 = dma.hbm_to_vmem [thread:$0]  %s2, 6144, %s201, [#allocation7], 128, 128, 8
        $region20: #{tpu_custom_call.1} parent=11 // pred_fallthru
          _
        // Predicated region
        $region21: #{tpu_custom_call.1} parent=11 // pred_check
          %p207 = pneg %p108
        $region22: #{tpu_custom_call.1} parent=11 // pred_check_branch
          %209 = sbr.rel (%p207) target = $region24
        $region23: #{tpu_custom_call.1} parent=11 // pred_region
          _
        $region24: #{tpu_custom_call.1} parent=11 // pred_fallthru
          _
        // Predicated region
        $region25: #{tpu_custom_call.1} parent=11 // pred_check
          %p210 = pneg %p129
        $region26: #{tpu_custom_call.1} parent=11 // pred_check_branch
          %212 = sbr.rel (%p210) target = $region28
        $region27: #{tpu_custom_call.1} parent=11 // pred_region
          %s214 = ssub.s32 6144, 6144
          %215 = vsyncadd [#allocation7], %s214
          %s216 = sshll.u32 [#allocation8], 4
          %s217 = int_to_ptr.vmem [resolvable:$true] %s216
          %222 = dma.hbm_to_vmem [thread:$0]  %s4, 6144, %s217, [#allocation7], 128, 128, 8
        $region28: #{tpu_custom_call.1} parent=11 // pred_fallthru
          _
        // Predicated region
        $region29: #{tpu_custom_call.1} parent=11 // pred_check
          %p223 = pneg %p150
        $region30: #{tpu_custom_call.1} parent=11 // pred_check_branch
          %225 = sbr.rel (%p223) target = $region32
        $region31: #{tpu_custom_call.1} parent=11 // pred_region
          _
        $region32: #{tpu_custom_call.1} parent=11 // pred_fallthru
          _
      $region12: #{tpu_custom_call.1} parent=5 // pred_fallthru
        _
      %p226 = scmp.lt.s32.totalorder %s19, 2
      // Predicated region
      $region33: #{tpu_custom_call.1} parent=5 // pred_check
        %p227 = pneg %p226
      $region34: #{tpu_custom_call.1} parent=5 // pred_check_branch
        %229 = sbr.rel (%p227) target = $region36
      $region35: #{tpu_custom_call.1} parent=5 // pred_region
        // Predicated region
        $region37: #{tpu_custom_call.1} parent=35 // pred_check
          %p230 = pneg %p39
        $region38: #{tpu_custom_call.1} parent=35 // pred_check_branch
          %232 = sbr.rel (%p230) target = $region40
        $region39: #{tpu_custom_call.1} parent=35 // pred_region
          %s233 = sand.u32 %s29, 1
          %s234 = scalar_lea.sflag [#allocation4], %s233
          %s235 = sand.u32 %s29, 1
          %s236 = smul.addr %s235, 512
          %s237 = scalar_lea.vmem [#allocation3], %s236
          %s238 = smul.u32 2, %s19
          %s240 = ssub.s32 8192, 8192
          %241 = vsyncadd %s234, %s240
          %s242 = smul.addr %s238, 32
          %s243 = smul.addr %s242, 128
          %s244 = scalar_lea.hbm %s0, %s243
          %s245 = sshll.u32 %s237, 4
          %s246 = int_to_ptr.vmem [resolvable:$true] %s245
          %251 = dma.hbm_to_vmem [thread:$0]  %s244, 8192, %s246, %s234, 256, 256, 16
        $region40: #{tpu_custom_call.1} parent=35 // pred_fallthru
          _
      $region36: #{tpu_custom_call.1} parent=5 // pred_fallthru
        _
      %p252 = scmp.le.s32.totalorder 1, %s19
      %p253 = scmp.lt.s32.totalorder %s19, 3
      %p254 = pnand %p252, %p253
      %p255 = pneg %p254
      // Predicated region
      $region41: #{tpu_custom_call.1} parent=5 // pred_check
        _
      $region42: #{tpu_custom_call.1} parent=5 // pred_check_branch
        %257 = sbr.rel (%p254) target = $region44
      $region43: #{tpu_custom_call.1} parent=5 // pred_region
        %s258 = ssub.s32 %s19, 1
        %s259 = sand.u32 %s32, 1
        %s260 = scalar_lea.sflag [#allocation4], %s259
        %s261 = sand.u32 %s32, 1
        %s262 = smul.addr %s261, 512
        %s263 = scalar_lea.vmem [#allocation3], %s262
        // Predicated region
        $region45: #{tpu_custom_call.1} parent=43 // pred_check
          %p264 = pneg %p45
        $region46: #{tpu_custom_call.1} parent=43 // pred_check_branch
          %266 = sbr.rel (%p264) target = $region48
        $region47: #{tpu_custom_call.1} parent=43 // pred_region
          %267 = dma.done %s260, 8192
        $region48: #{tpu_custom_call.1} parent=43 // pred_fallthru
          _
        // Predicated region
        $region49: #{tpu_custom_call.1} parent=43 // pred_check
          %p268 = pneg %p87
        $region50: #{tpu_custom_call.1} parent=43 // pred_check_branch
          %270 = sbr.rel (%p268) target = $region52
        $region51: #{tpu_custom_call.1} parent=43 // pred_region
          %271 = dma.done [#allocation7], 6144
        $region52: #{tpu_custom_call.1} parent=43 // pred_fallthru
          _
        // Predicated region
        $region53: #{tpu_custom_call.1} parent=43 // pred_check
          %p272 = pneg %p129
        $region54: #{tpu_custom_call.1} parent=43 // pred_check_branch
          %274 = sbr.rel (%p272) target = $region56
        $region55: #{tpu_custom_call.1} parent=43 // pred_region
          %275 = dma.done [#allocation7], 6144
        $region56: #{tpu_custom_call.1} parent=43 // pred_fallthru
          _
        %s276 = sand.u32 %s32, 1
        %s277 = scalar_lea.sflag [#allocation4], %s276
        %s278 = sand.u32 %s32, 1
        %s279 = smul.addr %s278, 512
        %s280 = scalar_lea.vmem [#allocation3], %s279
        %p281 = pneg %p45
        %p282 = pneg %p42
        %p283 = pneg %p66
        %p284 = pneg %p63
        %p285 = pneg %p87
        %p286 = pneg %p84
        %p287 = pneg %p108
        %p288 = pneg %p105
        %p289 = pneg %p129
        %p290 = pneg %p126
        %p291 = pneg %p150
        %p292 = pneg %p147
        %p293 = pneg %p176
        %p294 = pneg %p173
        %s295 = sand.u32 %s163, 1
        %s296 = scalar_lea.sflag [#allocation5], %s295
        %s297 = sand.u32 %s163, 1
        %s298 = smul.addr %s297, 256
        %s299 = scalar_lea.vmem [#allocation9], %s298
        %s300 = smul.u32 2, %s24
        %s301 = smul.u32 2, %s24
        %302 = vst [vmem:[#allocation2] sm:$0xff] -inf
        %v303 = vld [vmem:[%s263] sm:$0xff]
        %v304 = vld [vmem:[%s263 + $0x8] sm:$0xff]
        %v305 = vld [vmem:[%s263 + $0x10] sm:$0xff]
        %v306 = vld [vmem:[%s263 + $0x18] sm:$0xff]
        %v307 = vld [vmem:[%s263 + $0x20] sm:$0xff]
        %v308 = vld [vmem:[%s263 + $0x28] sm:$0xff]
        %v309 = vld [vmem:[%s263 + $0x30] sm:$0xff]
        %v310 = vld [vmem:[%s263 + $0x38] sm:$0xff]
        %v311 = vld [vmem:[%s263 + $0x40] sm:$0xff]
        %v312 = vld [vmem:[%s263 + $0x48] sm:$0xff]
        %v313 = vld [vmem:[%s263 + $0x50] sm:$0xff]
        %v314 = vld [vmem:[%s263 + $0x58] sm:$0xff]
        %v315 = vld [vmem:[%s263 + $0x60] sm:$0xff]
        %v316 = vld [vmem:[%s263 + $0x68] sm:$0xff]
        %v317 = vld [vmem:[%s263 + $0x70] sm:$0xff]
        %v318 = vld [vmem:[%s263 + $0x78] sm:$0xff]
        %v319 = vld [vmem:[%s263 + $0x80] sm:$0xff]
        %v320 = vld [vmem:[%s263 + $0x88] sm:$0xff]
        %v321 = vld [vmem:[%s263 + $0x90] sm:$0xff]
        %v322 = vld [vmem:[%s263 + $0x98] sm:$0xff]
        %v323 = vld [vmem:[%s263 + $0xa0] sm:$0xff]
        %v324 = vld [vmem:[%s263 + $0xa8] sm:$0xff]
        %v325 = vld [vmem:[%s263 + $0xb0] sm:$0xff]
        %v326 = vld [vmem:[%s263 + $0xb8] sm:$0xff]
        %v327 = vld [vmem:[%s263 + $0xc0] sm:$0xff]
        %v328 = vld [vmem:[%s263 + $0xc8] sm:$0xff]
        %v329 = vld [vmem:[%s263 + $0xd0] sm:$0xff]
        %v330 = vld [vmem:[%s263 + $0xd8] sm:$0xff]
        %v331 = vld [vmem:[%s263 + $0xe0] sm:$0xff]
        %v332 = vld [vmem:[%s263 + $0xe8] sm:$0xff]
        %v333 = vld [vmem:[%s263 + $0xf0] sm:$0xff]
        %v334 = vld [vmem:[%s263 + $0xf8] sm:$0xff]
        %335 = vxpose.xlu0.b32.start [1/16] %v303, 128
        %336 = vxpose.xlu0.b32.cont [2/16] %v305, 128
        %337 = vxpose.xlu0.b32.cont [3/16] %v307, 128
        %338 = vxpose.xlu0.b32.cont [4/16] %v309, 128
        %339 = vxpose.xlu0.b32.cont [5/16] %v311, 128
        %340 = vxpose.xlu0.b32.cont [6/16] %v313, 128
        %341 = vxpose.xlu0.b32.cont [7/16] %v315, 128
        %342 = vxpose.xlu0.b32.cont [8/16] %v317, 128
        %343 = vxpose.xlu0.b32.cont [9/16] %v319, 128
        %344 = vxpose.xlu0.b32.cont [10/16] %v321, 128
        %345 = vxpose.xlu0.b32.cont [11/16] %v323, 128
        %346 = vxpose.xlu0.b32.cont [12/16] %v325, 128
        %347 = vxpose.xlu0.b32.cont [13/16] %v327, 128
        %348 = vxpose.xlu0.b32.cont [14/16] %v329, 128
        %349 = vxpose.xlu0.b32.cont [15/16] %v331, 128
        %350 = vxpose.xlu0.b32.end [16/16] %v333, 128
        %v351 = vpop.trf.xlu0
        %v352 = vpop.trf.xlu0
        %v353 = vpop.trf.xlu0
        %v354 = vpop.trf.xlu0
        %v355 = vpop.trf.xlu0
        %v356 = vpop.trf.xlu0
        %v357 = vpop.trf.xlu0
        %v358 = vpop.trf.xlu0
        %v359 = vpop.trf.xlu0
        %v360 = vpop.trf.xlu0
        %v361 = vpop.trf.xlu0
        %v362 = vpop.trf.xlu0
        %v363 = vpop.trf.xlu0
        %v364 = vpop.trf.xlu0
        %v365 = vpop.trf.xlu0
        %v366 = vpop.trf.xlu0
        %367 = vxpose.xlu0.b32.start [1/16] %v304, 128
        %368 = vxpose.xlu0.b32.cont [2/16] %v306, 128
        %369 = vxpose.xlu0.b32.cont [3/16] %v308, 128
        %370 = vxpose.xlu0.b32.cont [4/16] %v310, 128
        %371 = vxpose.xlu0.b32.cont [5/16] %v312, 128
        %372 = vxpose.xlu0.b32.cont [6/16] %v314, 128
        %373 = vxpose.xlu0.b32.cont [7/16] %v316, 128
        %374 = vxpose.xlu0.b32.cont [8/16] %v318, 128
        %375 = vxpose.xlu0.b32.cont [9/16] %v320, 128
        %376 = vxpose.xlu0.b32.cont [10/16] %v322, 128
        %377 = vxpose.xlu0.b32.cont [11/16] %v324, 128
        %378 = vxpose.xlu0.b32.cont [12/16] %v326, 128
        %379 = vxpose.xlu0.b32.cont [13/16] %v328, 128
        %380 = vxpose.xlu0.b32.cont [14/16] %v330, 128
        %381 = vxpose.xlu0.b32.cont [15/16] %v332, 128
        %382 = vxpose.xlu0.b32.end [16/16] %v334, 128
        %v383 = vpop.trf.xlu0
        %v384 = vpop.trf.xlu0
        %v385 = vpop.trf.xlu0
        %v386 = vpop.trf.xlu0
        %v387 = vpop.trf.xlu0
        %v388 = vpop.trf.xlu0
        %v389 = vpop.trf.xlu0
        %v390 = vpop.trf.xlu0
        %v391 = vpop.trf.xlu0
        %v392 = vpop.trf.xlu0
        %v393 = vpop.trf.xlu0
        %v394 = vpop.trf.xlu0
        %v395 = vpop.trf.xlu0
        %v396 = vpop.trf.xlu0
        %v397 = vpop.trf.xlu0
        %v398 = vpop.trf.xlu0
        %399 = vst [vmem:[#allocation2 + $0x8] sm:$0xff] %v351
        %400 = vst [vmem:[#allocation2 + $0x10] sm:$0xff] %v352
        %401 = vst [vmem:[#allocation2 + $0x18] sm:$0xff] %v353
        %402 = vst [vmem:[#allocation2 + $0x20] sm:$0xff] %v354
        %403 = vst [vmem:[#allocation2 + $0x28] sm:$0xff] %v355
        %404 = vst [vmem:[#allocation2 + $0x30] sm:$0xff] %v356
        %405 = vst [vmem:[#allocation2 + $0x38] sm:$0xff] %v357
        %406 = vst [vmem:[#allocation2 + $0x40] sm:$0xff] %v358
        %407 = vst [vmem:[#allocation2 + $0x48] sm:$0xff] %v359
        %408 = vst [vmem:[#allocation2 + $0x50] sm:$0xff] %v360
        %409 = vst [vmem:[#allocation2 + $0x58] sm:$0xff] %v361
        %410 = vst [vmem:[#allocation2 + $0x60] sm:$0xff] %v362
        %411 = vst [vmem:[#allocation2 + $0x68] sm:$0xff] %v363
        %412 = vst [vmem:[#allocation2 + $0x70] sm:$0xff] %v364
        %413 = vst [vmem:[#allocation2 + $0x78] sm:$0xff] %v365
        %414 = vst [vmem:[#allocation2 + $0x80] sm:$0xff] %v366
        %415 = vst [vmem:[#allocation2 + $0x88] sm:$0xff] %v383
        %416 = vst [vmem:[#allocation2 + $0x90] sm:$0xff] %v384
        %417 = vst [vmem:[#allocation2 + $0x98] sm:$0xff] %v385
        %418 = vst [vmem:[#allocation2 + $0xa0] sm:$0xff] %v386
        %419 = vst [vmem:[#allocation2 + $0xa8] sm:$0xff] %v387
        %420 = vst [vmem:[#allocation2 + $0xb0] sm:$0xff] %v388
        %421 = vst [vmem:[#allocation2 + $0xb8] sm:$0xff] %v389
        %422 = vst [vmem:[#allocation2 + $0xc0] sm:$0xff] %v390
        %423 = vst [vmem:[#allocation2 + $0xc8] sm:$0xff] %v391
        %424 = vst [vmem:[#allocation2 + $0xd0] sm:$0xff] %v392
        %425 = vst [vmem:[#allocation2 + $0xd8] sm:$0xff] %v393
        %426 = vst [vmem:[#allocation2 + $0xe0] sm:$0xff] %v394
        %427 = vst [vmem:[#allocation2 + $0xe8] sm:$0xff] %v395
        %428 = vst [vmem:[#allocation2 + $0xf0] sm:$0xff] %v396
        %429 = vst [vmem:[#allocation2 + $0xf8] sm:$0xff] %v397
        %430 = vst [vmem:[#allocation2 + $0x100] sm:$0xff] %v398
        %s431 = scalar_lea.vmem %s263, 256 [#allocation3]
        %v432 = vld [vmem:[%s431] sm:$0xff]
        %v433 = vld [vmem:[%s431 + $0x8] sm:$0xff]
        %v434 = vld [vmem:[%s431 + $0x10] sm:$0xff]
        %v435 = vld [vmem:[%s431 + $0x18] sm:$0xff]
        %v436 = vld [vmem:[%s431 + $0x20] sm:$0xff]
        %v437 = vld [vmem:[%s431 + $0x28] sm:$0xff]
        %v438 = vld [vmem:[%s431 + $0x30] sm:$0xff]
        %v439 = vld [vmem:[%s431 + $0x38] sm:$0xff]
        %v440 = vld [vmem:[%s431 + $0x40] sm:$0xff]
        %v441 = vld [vmem:[%s431 + $0x48] sm:$0xff]
        %v442 = vld [vmem:[%s431 + $0x50] sm:$0xff]
        %v443 = vld [vmem:[%s431 + $0x58] sm:$0xff]
        %v444 = vld [vmem:[%s431 + $0x60] sm:$0xff]
        %v445 = vld [vmem:[%s431 + $0x68] sm:$0xff]
        %v446 = vld [vmem:[%s431 + $0x70] sm:$0xff]
        %v447 = vld [vmem:[%s431 + $0x78] sm:$0xff]
        %v448 = vld [vmem:[%s431 + $0x80] sm:$0xff]
        %v449 = vld [vmem:[%s431 + $0x88] sm:$0xff]
        %v450 = vld [vmem:[%s431 + $0x90] sm:$0xff]
        %v451 = vld [vmem:[%s431 + $0x98] sm:$0xff]
        %v452 = vld [vmem:[%s431 + $0xa0] sm:$0xff]
        %v453 = vld [vmem:[%s431 + $0xa8] sm:$0xff]
        %v454 = vld [vmem:[%s431 + $0xb0] sm:$0xff]
        %v455 = vld [vmem:[%s431 + $0xb8] sm:$0xff]
        %v456 = vld [vmem:[%s431 + $0xc0] sm:$0xff]
        %v457 = vld [vmem:[%s431 + $0xc8] sm:$0xff]
        %v458 = vld [vmem:[%s431 + $0xd0] sm:$0xff]
        %v459 = vld [vmem:[%s431 + $0xd8] sm:$0xff]
        %v460 = vld [vmem:[%s431 + $0xe0] sm:$0xff]
        %v461 = vld [vmem:[%s431 + $0xe8] sm:$0xff]
        %v462 = vld [vmem:[%s431 + $0xf0] sm:$0xff]
        %v463 = vld [vmem:[%s431 + $0xf8] sm:$0xff]
        %464 = vxpose.xlu0.b32.start [1/16] %v432, 128
        %465 = vxpose.xlu0.b32.cont [2/16] %v434, 128
        %466 = vxpose.xlu0.b32.cont [3/16] %v436, 128
        %467 = vxpose.xlu0.b32.cont [4/16] %v438, 128
        %468 = vxpose.xlu0.b32.cont [5/16] %v440, 128
        %469 = vxpose.xlu0.b32.cont [6/16] %v442, 128
        %470 = vxpose.xlu0.b32.cont [7/16] %v444, 128
        %471 = vxpose.xlu0.b32.cont [8/16] %v446, 128
        %472 = vxpose.xlu0.b32.cont [9/16] %v448, 128
        %473 = vxpose.xlu0.b32.cont [10/16] %v450, 128
        %474 = vxpose.xlu0.b32.cont [11/16] %v452, 128
        %475 = vxpose.xlu0.b32.cont [12/16] %v454, 128
        %476 = vxpose.xlu0.b32.cont [13/16] %v456, 128
        %477 = vxpose.xlu0.b32.cont [14/16] %v458, 128
        %478 = vxpose.xlu0.b32.cont [15/16] %v460, 128
        %479 = vxpose.xlu0.b32.end [16/16] %v462, 128
        %v480 = vpop.trf.xlu0
        %v481 = vpop.trf.xlu0
        %v482 = vpop.trf.xlu0
        %v483 = vpop.trf.xlu0
        %v484 = vpop.trf.xlu0
        %v485 = vpop.trf.xlu0
        %v486 = vpop.trf.xlu0
        %v487 = vpop.trf.xlu0
        %v488 = vpop.trf.xlu0
        %v489 = vpop.trf.xlu0
        %v490 = vpop.trf.xlu0
        %v491 = vpop.trf.xlu0
        %v492 = vpop.trf.xlu0
        %v493 = vpop.trf.xlu0
        %v494 = vpop.trf.xlu0
        %v495 = vpop.trf.xlu0
        %496 = vxpose.xlu0.b32.start [1/16] %v433, 128
        %497 = vxpose.xlu0.b32.cont [2/16] %v435, 128
        %498 = vxpose.xlu0.b32.cont [3/16] %v437, 128
        %499 = vxpose.xlu0.b32.cont [4/16] %v439, 128
        %500 = vxpose.xlu0.b32.cont [5/16] %v441, 128
        %501 = vxpose.xlu0.b32.cont [6/16] %v443, 128
        %502 = vxpose.xlu0.b32.cont [7/16] %v445, 128
        %503 = vxpose.xlu0.b32.cont [8/16] %v447, 128
        %504 = vxpose.xlu0.b32.cont [9/16] %v449, 128
        %505 = vxpose.xlu0.b32.cont [10/16] %v451, 128
        %506 = vxpose.xlu0.b32.cont [11/16] %v453, 128
        %507 = vxpose.xlu0.b32.cont [12/16] %v455, 128
        %508 = vxpose.xlu0.b32.cont [13/16] %v457, 128
        %509 = vxpose.xlu0.b32.cont [14/16] %v459, 128
        %510 = vxpose.xlu0.b32.cont [15/16] %v461, 128
        %511 = vxpose.xlu0.b32.end [16/16] %v463, 128
        %v512 = vpop.trf.xlu0
        %v513 = vpop.trf.xlu0
        %v514 = vpop.trf.xlu0
        %v515 = vpop.trf.xlu0
        %v516 = vpop.trf.xlu0
        %v517 = vpop.trf.xlu0
        %v518 = vpop.trf.xlu0
        %v519 = vpop.trf.xlu0
        %v520 = vpop.trf.xlu0
        %v521 = vpop.trf.xlu0
        %v522 = vpop.trf.xlu0
        %v523 = vpop.trf.xlu0
        %v524 = vpop.trf.xlu0
        %v525 = vpop.trf.xlu0
        %v526 = vpop.trf.xlu0
        %v527 = vpop.trf.xlu0
        %528 = vst [vmem:[#allocation2 + $0x108] sm:$0xff] %v480
        %529 = vst [vmem:[#allocation2 + $0x110] sm:$0xff] %v481
        %530 = vst [vmem:[#allocation2 + $0x118] sm:$0xff] %v482
        %531 = vst [vmem:[#allocation2 + $0x120] sm:$0xff] %v483
        %532 = vst [vmem:[#allocation2 + $0x128] sm:$0xff] %v484
        %533 = vst [vmem:[#allocation2 + $0x130] sm:$0xff] %v485
        %534 = vst [vmem:[#allocation2 + $0x138] sm:$0xff] %v486
        %535 = vst [vmem:[#allocation2 + $0x140] sm:$0xff] %v487
        %536 = vst [vmem:[#allocation2 + $0x148] sm:$0xff] %v488
        %537 = vst [vmem:[#allocation2 + $0x150] sm:$0xff] %v489
        %538 = vst [vmem:[#allocation2 + $0x158] sm:$0xff] %v490
        %539 = vst [vmem:[#allocation2 + $0x160] sm:$0xff] %v491
        %540 = vst [vmem:[#allocation2 + $0x168] sm:$0xff] %v492
        %541 = vst [vmem:[#allocation2 + $0x170] sm:$0xff] %v493
        %542 = vst [vmem:[#allocation2 + $0x178] sm:$0xff] %v494
        %543 = vst [vmem:[#allocation2 + $0x180] sm:$0xff] %v495
        %544 = vst [vmem:[#allocation2 + $0x188] sm:$0xff] %v512
        %545 = vst [vmem:[#allocation2 + $0x190] sm:$0xff] %v513
        %546 = vst [vmem:[#allocation2 + $0x198] sm:$0xff] %v514
        %547 = vst [vmem:[#allocation2 + $0x1a0] sm:$0xff] %v515
        %548 = vst [vmem:[#allocation2 + $0x1a8] sm:$0xff] %v516
        %549 = vst [vmem:[#allocation2 + $0x1b0] sm:$0xff] %v517
        %550 = vst [vmem:[#allocation2 + $0x1b8] sm:$0xff] %v518
        %551 = vst [vmem:[#allocation2 + $0x1c0] sm:$0xff] %v519
        %552 = vst [vmem:[#allocation2 + $0x1c8] sm:$0xff] %v520
        %553 = vst [vmem:[#allocation2 + $0x1d0] sm:$0xff] %v521
        %554 = vst [vmem:[#allocation2 + $0x1d8] sm:$0xff] %v522
        %555 = vst [vmem:[#allocation2 + $0x1e0] sm:$0xff] %v523
        %556 = vst [vmem:[#allocation2 + $0x1e8] sm:$0xff] %v524
        %557 = vst [vmem:[#allocation2 + $0x1f0] sm:$0xff] %v525
        %558 = vst [vmem:[#allocation2 + $0x1f8] sm:$0xff] %v526
        %559 = vst [vmem:[#allocation2 + $0x200] sm:$0xff] %v527
        %v560 = vld [vmem:[%s1] sm:$0xff]
        %v561 = vld [vmem:[%s1 + $0x8] sm:$0xff]
        %v562 = vld [vmem:[%s1 + $0x10] sm:$0xff]
        %v563 = vld [vmem:[%s1 + $0x18] sm:$0xff]
        %v564 = vld [vmem:[%s1 + $0x20] sm:$0xff]
        %v565 = vld [vmem:[%s1 + $0x28] sm:$0xff]
        %v566 = vld [vmem:[%s1 + $0x30] sm:$0xff]
        %v567 = vld [vmem:[%s1 + $0x38] sm:$0xff]
        %v568 = vld [vmem:[%s1 + $0x40] sm:$0xff]
        %v569 = vld [vmem:[%s1 + $0x48] sm:$0xff]
        %v570 = vld [vmem:[%s1 + $0x50] sm:$0xff]
        %v571 = vld [vmem:[%s1 + $0x58] sm:$0xff]
        %v572 = vld [vmem:[%s1 + $0x60] sm:$0xff]
        %v573 = vld [vmem:[%s1 + $0x68] sm:$0xff]
        %v574 = vld [vmem:[%s1 + $0x70] sm:$0xff]
        %v575 = vld [vmem:[%s1 + $0x78] sm:$0xff]
        %v576 = vld [vmem:[%s1 + $0x80] sm:$0xff]
        %v577 = vld [vmem:[%s1 + $0x88] sm:$0xff]
        %v578 = vld [vmem:[%s1 + $0x90] sm:$0xff]
        %v579 = vld [vmem:[%s1 + $0x98] sm:$0xff]
        %v580 = vld [vmem:[%s1 + $0xa0] sm:$0xff]
        %v581 = vld [vmem:[%s1 + $0xa8] sm:$0xff]
        %v582 = vld [vmem:[%s1 + $0xb0] sm:$0xff]
        %v583 = vld [vmem:[%s1 + $0xb8] sm:$0xff]
        %v584 = vld [vmem:[%s1 + $0xc0] sm:$0xff]
        %v585 = vld [vmem:[%s1 + $0xc8] sm:$0xff]
        %v586 = vld [vmem:[%s1 + $0xd0] sm:$0xff]
        %v587 = vld [vmem:[%s1 + $0xd8] sm:$0xff]
        %v588 = vld [vmem:[%s1 + $0xe0] sm:$0xff]
        %v589 = vld [vmem:[%s1 + $0xe8] sm:$0xff]
        %v590 = vld [vmem:[%s1 + $0xf0] sm:$0xff]
        %v591 = vld [vmem:[%s1 + $0xf8] sm:$0xff]
        %vm592 = vcmp.eq.s32.totalorder %v560, 0
        %vm593 = vcmp.eq.s32.totalorder %v561, 0
        %vm594 = vcmp.eq.s32.totalorder %v562, 0
        %vm595 = vcmp.eq.s32.totalorder %v563, 0
        %vm596 = vcmp.eq.s32.totalorder %v564, 0
        %vm597 = vcmp.eq.s32.totalorder %v565, 0
        %vm598 = vcmp.eq.s32.totalorder %v566, 0
        %vm599 = vcmp.eq.s32.totalorder %v567, 0
        %vm600 = vcmp.eq.s32.totalorder %v568, 0
        %vm601 = vcmp.eq.s32.totalorder %v569, 0
        %vm602 = vcmp.eq.s32.totalorder %v570, 0
        %vm603 = vcmp.eq.s32.totalorder %v571, 0
        %vm604 = vcmp.eq.s32.totalorder %v572, 0
        %vm605 = vcmp.eq.s32.totalorder %v573, 0
        %vm606 = vcmp.eq.s32.totalorder %v574, 0
        %vm607 = vcmp.eq.s32.totalorder %v575, 0
        %vm608 = vcmp.eq.s32.totalorder %v576, 0
        %vm609 = vcmp.eq.s32.totalorder %v577, 0
        %vm610 = vcmp.eq.s32.totalorder %v578, 0
        %vm611 = vcmp.eq.s32.totalorder %v579, 0
        %vm612 = vcmp.eq.s32.totalorder %v580, 0
        %vm613 = vcmp.eq.s32.totalorder %v581, 0
        %vm614 = vcmp.eq.s32.totalorder %v582, 0
        %vm615 = vcmp.eq.s32.totalorder %v583, 0
        %vm616 = vcmp.eq.s32.totalorder %v584, 0
        %vm617 = vcmp.eq.s32.totalorder %v585, 0
        %vm618 = vcmp.eq.s32.totalorder %v586, 0
        %vm619 = vcmp.eq.s32.totalorder %v587, 0
        %vm620 = vcmp.eq.s32.totalorder %v588, 0
        %vm621 = vcmp.eq.s32.totalorder %v589, 0
        %vm622 = vcmp.eq.s32.totalorder %v590, 0
        %vm623 = vcmp.eq.s32.totalorder %v591, 0
        %vm624 = vcmp.eq.s32.totalorder %v560, 127
        %vm625 = vcmp.eq.s32.totalorder %v561, 127
        %vm626 = vcmp.eq.s32.totalorder %v562, 127
        %vm627 = vcmp.eq.s32.totalorder %v563, 127
        %vm628 = vcmp.eq.s32.totalorder %v564, 127
        %vm629 = vcmp.eq.s32.totalorder %v565, 127
        %vm630 = vcmp.eq.s32.totalorder %v566, 127
        %vm631 = vcmp.eq.s32.totalorder %v567, 127
        %vm632 = vcmp.eq.s32.totalorder %v568, 127
        %vm633 = vcmp.eq.s32.totalorder %v569, 127
        %vm634 = vcmp.eq.s32.totalorder %v570, 127
        %vm635 = vcmp.eq.s32.totalorder %v571, 127
        %vm636 = vcmp.eq.s32.totalorder %v572, 127
        %vm637 = vcmp.eq.s32.totalorder %v573, 127
        %vm638 = vcmp.eq.s32.totalorder %v574, 127
        %vm639 = vcmp.eq.s32.totalorder %v575, 127
        %vm640 = vcmp.eq.s32.totalorder %v576, 127
        %vm641 = vcmp.eq.s32.totalorder %v577, 127
        %vm642 = vcmp.eq.s32.totalorder %v578, 127
        %vm643 = vcmp.eq.s32.totalorder %v579, 127
        %vm644 = vcmp.eq.s32.totalorder %v580, 127
        %vm645 = vcmp.eq.s32.totalorder %v581, 127
        %vm646 = vcmp.eq.s32.totalorder %v582, 127
        %vm647 = vcmp.eq.s32.totalorder %v583, 127
        %vm648 = vcmp.eq.s32.totalorder %v584, 127
        %vm649 = vcmp.eq.s32.totalorder %v585, 127
        %vm650 = vcmp.eq.s32.totalorder %v586, 127
        %vm651 = vcmp.eq.s32.totalorder %v587, 127
        %vm652 = vcmp.eq.s32.totalorder %v588, 127
        %vm653 = vcmp.eq.s32.totalorder %v589, 127
        %vm654 = vcmp.eq.s32.totalorder %v590, 127
        %vm655 = vcmp.eq.s32.totalorder %v591, 127
        %s656 = scalar_lea.vmem [#allocation2], 8
        %v657 = vld [vmem:[%s656] ss:$2 sm:$0xff]
        %s658 = scalar_lea.vmem [#allocation2], 24
        %v659 = vld [vmem:[%s658] ss:$2 sm:$0xff]
        %s660 = scalar_lea.vmem [#allocation2], 40
        %v661 = vld [vmem:[%s660] ss:$2 sm:$0xff]
        %s662 = scalar_lea.vmem [#allocation2], 56
        %v663 = vld [vmem:[%s662] ss:$2 sm:$0xff]
        %s664 = scalar_lea.vmem [#allocation2], 72
        %v665 = vld [vmem:[%s664] ss:$2 sm:$0xff]
        %s666 = scalar_lea.vmem [#allocation2], 88
        %v667 = vld [vmem:[%s666] ss:$2 sm:$0xff]
        %s668 = scalar_lea.vmem [#allocation2], 104
        %v669 = vld [vmem:[%s668] ss:$2 sm:$0xff]
        %s670 = scalar_lea.vmem [#allocation2], 120
        %v671 = vld [vmem:[%s670] ss:$2 sm:$0xff]
        %s672 = scalar_lea.vmem [#allocation2], 136
        %v673 = vld [vmem:[%s672] ss:$2 sm:$0xff]
        %s674 = scalar_lea.vmem [#allocation2], 152
        %v675 = vld [vmem:[%s674] ss:$2 sm:$0xff]
        %s676 = scalar_lea.vmem [#allocation2], 168
        %v677 = vld [vmem:[%s676] ss:$2 sm:$0xff]
        %s678 = scalar_lea.vmem [#allocation2], 184
        %v679 = vld [vmem:[%s678] ss:$2 sm:$0xff]
        %s680 = scalar_lea.vmem [#allocation2], 200
        %v681 = vld [vmem:[%s680] ss:$2 sm:$0xff]
        %s682 = scalar_lea.vmem [#allocation2], 216
        %v683 = vld [vmem:[%s682] ss:$2 sm:$0xff]
        %s684 = scalar_lea.vmem [#allocation2], 232
        %v685 = vld [vmem:[%s684] ss:$2 sm:$0xff]
        %s686 = scalar_lea.vmem [#allocation2], 248
        %v687 = vld [vmem:[%s686] ss:$2 sm:$0xff]
        %s688 = scalar_lea.vmem [#allocation2], 264
        %v689 = vld [vmem:[%s688] ss:$2 sm:$0xff]
        %s690 = scalar_lea.vmem [#allocation2], 280
        %v691 = vld [vmem:[%s690] ss:$2 sm:$0xff]
        %s692 = scalar_lea.vmem [#allocation2], 296
        %v693 = vld [vmem:[%s692] ss:$2 sm:$0xff]
        %s694 = scalar_lea.vmem [#allocation2], 312
        %v695 = vld [vmem:[%s694] ss:$2 sm:$0xff]
        %s696 = scalar_lea.vmem [#allocation2], 328
        %v697 = vld [vmem:[%s696] ss:$2 sm:$0xff]
        %s698 = scalar_lea.vmem [#allocation2], 344
        %v699 = vld [vmem:[%s698] ss:$2 sm:$0xff]
        %s700 = scalar_lea.vmem [#allocation2], 360
        %v701 = vld [vmem:[%s700] ss:$2 sm:$0xff]
        %s702 = scalar_lea.vmem [#allocation2], 376
        %v703 = vld [vmem:[%s702] ss:$2 sm:$0xff]
        %s704 = scalar_lea.vmem [#allocation2], 392
        %v705 = vld [vmem:[%s704] ss:$2 sm:$0xff]
        %s706 = scalar_lea.vmem [#allocation2], 408
        %v707 = vld [vmem:[%s706] ss:$2 sm:$0xff]
        %s708 = scalar_lea.vmem [#allocation2], 424
        %v709 = vld [vmem:[%s708] ss:$2 sm:$0xff]
        %s710 = scalar_lea.vmem [#allocation2], 440
        %v711 = vld [vmem:[%s710] ss:$2 sm:$0xff]
        %s712 = scalar_lea.vmem [#allocation2], 456
        %v713 = vld [vmem:[%s712] ss:$2 sm:$0xff]
        %s714 = scalar_lea.vmem [#allocation2], 472
        %v715 = vld [vmem:[%s714] ss:$2 sm:$0xff]
        %s716 = scalar_lea.vmem [#allocation2], 488
        %v717 = vld [vmem:[%s716] ss:$2 sm:$0xff]
        %s718 = scalar_lea.vmem [#allocation2], 504
        %v719 = vld [vmem:[%s718] ss:$2 sm:$0xff]
        %s720 = scalar_lea.vmem [#allocation2], 9
        %v721 = vld [vmem:[%s720] ss:$2 sm:$0xff]
        %s722 = scalar_lea.vmem [#allocation2], 25
        %v723 = vld [vmem:[%s722] ss:$2 sm:$0xff]
        %s724 = scalar_lea.vmem [#allocation2], 41
        %v725 = vld [vmem:[%s724] ss:$2 sm:$0xff]
        %s726 = scalar_lea.vmem [#allocation2], 57
        %v727 = vld [vmem:[%s726] ss:$2 sm:$0xff]
        %s728 = scalar_lea.vmem [#allocation2], 73
        %v729 = vld [vmem:[%s728] ss:$2 sm:$0xff]
        %s730 = scalar_lea.vmem [#allocation2], 89
        %v731 = vld [vmem:[%s730] ss:$2 sm:$0xff]
        %s732 = scalar_lea.vmem [#allocation2], 105
        %v733 = vld [vmem:[%s732] ss:$2 sm:$0xff]
        %s734 = scalar_lea.vmem [#allocation2], 121
        %v735 = vld [vmem:[%s734] ss:$2 sm:$0xff]
        %s736 = scalar_lea.vmem [#allocation2], 137
        %v737 = vld [vmem:[%s736] ss:$2 sm:$0xff]
        %s738 = scalar_lea.vmem [#allocation2], 153
        %v739 = vld [vmem:[%s738] ss:$2 sm:$0xff]
        %s740 = scalar_lea.vmem [#allocation2], 169
        %v741 = vld [vmem:[%s740] ss:$2 sm:$0xff]
        %s742 = scalar_lea.vmem [#allocation2], 185
        %v743 = vld [vmem:[%s742] ss:$2 sm:$0xff]
        %s744 = scalar_lea.vmem [#allocation2], 201
        %v745 = vld [vmem:[%s744] ss:$2 sm:$0xff]
        %s746 = scalar_lea.vmem [#allocation2], 217
        %v747 = vld [vmem:[%s746] ss:$2 sm:$0xff]
        %s748 = scalar_lea.vmem [#allocation2], 233
        %v749 = vld [vmem:[%s748] ss:$2 sm:$0xff]
        %s750 = scalar_lea.vmem [#allocation2], 249
        %v751 = vld [vmem:[%s750] ss:$2 sm:$0xff]
        %s752 = scalar_lea.vmem [#allocation2], 265
        %v753 = vld [vmem:[%s752] ss:$2 sm:$0xff]
        %s754 = scalar_lea.vmem [#allocation2], 281
        %v755 = vld [vmem:[%s754] ss:$2 sm:$0xff]
        %s756 = scalar_lea.vmem [#allocation2], 297
        %v757 = vld [vmem:[%s756] ss:$2 sm:$0xff]
        %s758 = scalar_lea.vmem [#allocation2], 313
        %v759 = vld [vmem:[%s758] ss:$2 sm:$0xff]
        %s760 = scalar_lea.vmem [#allocation2], 329
        %v761 = vld [vmem:[%s760] ss:$2 sm:$0xff]
        %s762 = scalar_lea.vmem [#allocation2], 345
        %v763 = vld [vmem:[%s762] ss:$2 sm:$0xff]
        %s764 = scalar_lea.vmem [#allocation2], 361
        %v765 = vld [vmem:[%s764] ss:$2 sm:$0xff]
        %s766 = scalar_lea.vmem [#allocation2], 377
        %v767 = vld [vmem:[%s766] ss:$2 sm:$0xff]
        %s768 = scalar_lea.vmem [#allocation2], 393
        %v769 = vld [vmem:[%s768] ss:$2 sm:$0xff]
        %s770 = scalar_lea.vmem [#allocation2], 409
        %v771 = vld [vmem:[%s770] ss:$2 sm:$0xff]
        %s772 = scalar_lea.vmem [#allocation2], 425
        %v773 = vld [vmem:[%s772] ss:$2 sm:$0xff]
        %s774 = scalar_lea.vmem [#allocation2], 441
        %v775 = vld [vmem:[%s774] ss:$2 sm:$0xff]
        %s776 = scalar_lea.vmem [#allocation2], 457
        %v777 = vld [vmem:[%s776] ss:$2 sm:$0xff]
        %s778 = scalar_lea.vmem [#allocation2], 473
        %v779 = vld [vmem:[%s778] ss:$2 sm:$0xff]
        %s780 = scalar_lea.vmem [#allocation2], 489
        %v781 = vld [vmem:[%s780] ss:$2 sm:$0xff]
        %s782 = scalar_lea.vmem [#allocation2], 505
        %v783 = vld [vmem:[%s782] ss:$2 sm:$0xff]
        %s784 = scalar_lea.vmem [#allocation2], 7
        %v785 = vld [vmem:[%s784] ss:$2 sm:$0xff]
        %s786 = scalar_lea.vmem [#allocation2], 23
        %v787 = vld [vmem:[%s786] ss:$2 sm:$0xff]
        %s788 = scalar_lea.vmem [#allocation2], 39
        %v789 = vld [vmem:[%s788] ss:$2 sm:$0xff]
        %s790 = scalar_lea.vmem [#allocation2], 55
        %v791 = vld [vmem:[%s790] ss:$2 sm:$0xff]
        %s792 = scalar_lea.vmem [#allocation2], 71
        %v793 = vld [vmem:[%s792] ss:$2 sm:$0xff]
        %s794 = scalar_lea.vmem [#allocation2], 87
        %v795 = vld [vmem:[%s794] ss:$2 sm:$0xff]
        %s796 = scalar_lea.vmem [#allocation2], 103
        %v797 = vld [vmem:[%s796] ss:$2 sm:$0xff]
        %s798 = scalar_lea.vmem [#allocation2], 119
        %v799 = vld [vmem:[%s798] ss:$2 sm:$0xff]
        %s800 = scalar_lea.vmem [#allocation2], 135
        %v801 = vld [vmem:[%s800] ss:$2 sm:$0xff]
        %s802 = scalar_lea.vmem [#allocation2], 151
        %v803 = vld [vmem:[%s802] ss:$2 sm:$0xff]
        %s804 = scalar_lea.vmem [#allocation2], 167
        %v805 = vld [vmem:[%s804] ss:$2 sm:$0xff]
        %s806 = scalar_lea.vmem [#allocation2], 183
        %v807 = vld [vmem:[%s806] ss:$2 sm:$0xff]
        %s808 = scalar_lea.vmem [#allocation2], 199
        %v809 = vld [vmem:[%s808] ss:$2 sm:$0xff]
        %s810 = scalar_lea.vmem [#allocation2], 215
        %v811 = vld [vmem:[%s810] ss:$2 sm:$0xff]
        %s812 = scalar_lea.vmem [#allocation2], 231
        %v813 = vld [vmem:[%s812] ss:$2 sm:$0xff]
        %s814 = scalar_lea.vmem [#allocation2], 247
        %v815 = vld [vmem:[%s814] ss:$2 sm:$0xff]
        %s816 = scalar_lea.vmem [#allocation2], 263
        %v817 = vld [vmem:[%s816] ss:$2 sm:$0xff]
        %s818 = scalar_lea.vmem [#allocation2], 279
        %v819 = vld [vmem:[%s818] ss:$2 sm:$0xff]
        %s820 = scalar_lea.vmem [#allocation2], 295
        %v821 = vld [vmem:[%s820] ss:$2 sm:$0xff]
        %s822 = scalar_lea.vmem [#allocation2], 311
        %v823 = vld [vmem:[%s822] ss:$2 sm:$0xff]
        %s824 = scalar_lea.vmem [#allocation2], 327
        %v825 = vld [vmem:[%s824] ss:$2 sm:$0xff]
        %s826 = scalar_lea.vmem [#allocation2], 343
        %v827 = vld [vmem:[%s826] ss:$2 sm:$0xff]
        %s828 = scalar_lea.vmem [#allocation2], 359
        %v829 = vld [vmem:[%s828] ss:$2 sm:$0xff]
        %s830 = scalar_lea.vmem [#allocation2], 375
        %v831 = vld [vmem:[%s830] ss:$2 sm:$0xff]
        %s832 = scalar_lea.vmem [#allocation2], 391
        %v833 = vld [vmem:[%s832] ss:$2 sm:$0xff]
        %s834 = scalar_lea.vmem [#allocation2], 407
        %v835 = vld [vmem:[%s834] ss:$2 sm:$0xff]
        %s836 = scalar_lea.vmem [#allocation2], 423
        %v837 = vld [vmem:[%s836] ss:$2 sm:$0xff]
        %s838 = scalar_lea.vmem [#allocation2], 439
        %v839 = vld [vmem:[%s838] ss:$2 sm:$0xff]
        %s840 = scalar_lea.vmem [#allocation2], 455
        %v841 = vld [vmem:[%s840] ss:$2 sm:$0xff]
        %s842 = scalar_lea.vmem [#allocation2], 471
        %v843 = vld [vmem:[%s842] ss:$2 sm:$0xff]
        %s844 = scalar_lea.vmem [#allocation2], 487
        %v845 = vld [vmem:[%s844] ss:$2 sm:$0xff]
        %s846 = scalar_lea.vmem [#allocation2], 503
        %v847 = vld [vmem:[%s846] ss:$2 sm:$0xff]
        %v848 = vsel %vm592, 1, 0
        %v849 = vsel %vm593, 1, 0
        %v850 = vsel %vm594, 1, 0
        %v851 = vsel %vm595, 1, 0
        %v852 = vsel %vm596, 1, 0
        %v853 = vsel %vm597, 1, 0
        %v854 = vsel %vm598, 1, 0
        %v855 = vsel %vm599, 1, 0
        %v856 = vsel %vm600, 1, 0
        %v857 = vsel %vm601, 1, 0
        %v858 = vsel %vm602, 1, 0
        %v859 = vsel %vm603, 1, 0
        %v860 = vsel %vm604, 1, 0
        %v861 = vsel %vm605, 1, 0
        %v862 = vsel %vm606, 1, 0
        %v863 = vsel %vm607, 1, 0
        %v864 = vsel %vm608, 1, 0
        %v865 = vsel %vm609, 1, 0
        %v866 = vsel %vm610, 1, 0
        %v867 = vsel %vm611, 1, 0
        %v868 = vsel %vm612, 1, 0
        %v869 = vsel %vm613, 1, 0
        %v870 = vsel %vm614, 1, 0
        %v871 = vsel %vm615, 1, 0
        %v872 = vsel %vm616, 1, 0
        %v873 = vsel %vm617, 1, 0
        %v874 = vsel %vm618, 1, 0
        %v875 = vsel %vm619, 1, 0
        %v876 = vsel %vm620, 1, 0
        %v877 = vsel %vm621, 1, 0
        %v878 = vsel %vm622, 1, 0
        %v879 = vsel %vm623, 1, 0
        %880 = vset.pattern.permute.xlu0 0
        %881 = vperm.xlu0 %880, %v848
        %v882 = vpop.permute.xlu0 %881
        %883 = vset.pattern.permute.xlu0 0
        %884 = vperm.xlu0 %883, %v849
        %v885 = vpop.permute.xlu0 %884
        %886 = vset.pattern.permute.xlu0 0
        %887 = vperm.xlu0 %886, %v850
        %v888 = vpop.permute.xlu0 %887
        %889 = vset.pattern.permute.xlu0 0
        %890 = vperm.xlu0 %889, %v851
        %v891 = vpop.permute.xlu0 %890
        %892 = vset.pattern.permute.xlu0 0
        %893 = vperm.xlu0 %892, %v852
        %v894 = vpop.permute.xlu0 %893
        %895 = vset.pattern.permute.xlu0 0
        %896 = vperm.xlu0 %895, %v853
        %v897 = vpop.permute.xlu0 %896
        %898 = vset.pattern.permute.xlu0 0
        %899 = vperm.xlu0 %898, %v854
        %v900 = vpop.permute.xlu0 %899
        %901 = vset.pattern.permute.xlu0 0
        %902 = vperm.xlu0 %901, %v855
        %v903 = vpop.permute.xlu0 %902
        %904 = vset.pattern.permute.xlu0 0
        %905 = vperm.xlu0 %904, %v856
        %v906 = vpop.permute.xlu0 %905
        %907 = vset.pattern.permute.xlu0 0
        %908 = vperm.xlu0 %907, %v857
        %v909 = vpop.permute.xlu0 %908
        %910 = vset.pattern.permute.xlu0 0
        %911 = vperm.xlu0 %910, %v858
        %v912 = vpop.permute.xlu0 %911
        %913 = vset.pattern.permute.xlu0 0
        %914 = vperm.xlu0 %913, %v859
        %v915 = vpop.permute.xlu0 %914
        %916 = vset.pattern.permute.xlu0 0
        %917 = vperm.xlu0 %916, %v860
        %v918 = vpop.permute.xlu0 %917
        %919 = vset.pattern.permute.xlu0 0
        %920 = vperm.xlu0 %919, %v861
        %v921 = vpop.permute.xlu0 %920
        %922 = vset.pattern.permute.xlu0 0
        %923 = vperm.xlu0 %922, %v862
        %v924 = vpop.permute.xlu0 %923
        %925 = vset.pattern.permute.xlu0 0
        %926 = vperm.xlu0 %925, %v863
        %v927 = vpop.permute.xlu0 %926
        %928 = vset.pattern.permute.xlu0 0
        %929 = vperm.xlu0 %928, %v864
        %v930 = vpop.permute.xlu0 %929
        %931 = vset.pattern.permute.xlu0 0
        %932 = vperm.xlu0 %931, %v865
        %v933 = vpop.permute.xlu0 %932
        %934 = vset.pattern.permute.xlu0 0
        %935 = vperm.xlu0 %934, %v866
        %v936 = vpop.permute.xlu0 %935
        %937 = vset.pattern.permute.xlu0 0
        %938 = vperm.xlu0 %937, %v867
        %v939 = vpop.permute.xlu0 %938
        %940 = vset.pattern.permute.xlu0 0
        %941 = vperm.xlu0 %940, %v868
        %v942 = vpop.permute.xlu0 %941
        %943 = vset.pattern.permute.xlu0 0
        %944 = vperm.xlu0 %943, %v869
        %v945 = vpop.permute.xlu0 %944
        %946 = vset.pattern.permute.xlu0 0
        %947 = vperm.xlu0 %946, %v870
        %v948 = vpop.permute.xlu0 %947
        %949 = vset.pattern.permute.xlu0 0
        %950 = vperm.xlu0 %949, %v871
        %v951 = vpop.permute.xlu0 %950
        %952 = vset.pattern.permute.xlu0 0
        %953 = vperm.xlu0 %952, %v872
        %v954 = vpop.permute.xlu0 %953
        %955 = vset.pattern.permute.xlu0 0
        %956 = vperm.xlu0 %955, %v873
        %v957 = vpop.permute.xlu0 %956
        %958 = vset.pattern.permute.xlu0 0
        %959 = vperm.xlu0 %958, %v874
        %v960 = vpop.permute.xlu0 %959
        %961 = vset.pattern.permute.xlu0 0
        %962 = vperm.xlu0 %961, %v875
        %v963 = vpop.permute.xlu0 %962
        %964 = vset.pattern.permute.xlu0 0
        %965 = vperm.xlu0 %964, %v876
        %v966 = vpop.permute.xlu0 %965
        %967 = vset.pattern.permute.xlu0 0
        %968 = vperm.xlu0 %967, %v877
        %v969 = vpop.permute.xlu0 %968
        %970 = vset.pattern.permute.xlu0 0
        %971 = vperm.xlu0 %970, %v878
        %v972 = vpop.permute.xlu0 %971
        %973 = vset.pattern.permute.xlu0 0
        %974 = vperm.xlu0 %973, %v879
        %v975 = vpop.permute.xlu0 %974
        %vm976 = vcmp.eq.s32.totalorder %v882, 1
        %vm977 = vcmp.eq.s32.totalorder %v885, 1
        %vm978 = vcmp.eq.s32.totalorder %v888, 1
        %vm979 = vcmp.eq.s32.totalorder %v891, 1
        %vm980 = vcmp.eq.s32.totalorder %v894, 1
        %vm981 = vcmp.eq.s32.totalorder %v897, 1
        %vm982 = vcmp.eq.s32.totalorder %v900, 1
        %vm983 = vcmp.eq.s32.totalorder %v903, 1
        %vm984 = vcmp.eq.s32.totalorder %v906, 1
        %vm985 = vcmp.eq.s32.totalorder %v909, 1
        %vm986 = vcmp.eq.s32.totalorder %v912, 1
        %vm987 = vcmp.eq.s32.totalorder %v915, 1
        %vm988 = vcmp.eq.s32.totalorder %v918, 1
        %vm989 = vcmp.eq.s32.totalorder %v921, 1
        %vm990 = vcmp.eq.s32.totalorder %v924, 1
        %vm991 = vcmp.eq.s32.totalorder %v927, 1
        %vm992 = vcmp.eq.s32.totalorder %v930, 1
        %vm993 = vcmp.eq.s32.totalorder %v933, 1
        %vm994 = vcmp.eq.s32.totalorder %v936, 1
        %vm995 = vcmp.eq.s32.totalorder %v939, 1
        %vm996 = vcmp.eq.s32.totalorder %v942, 1
        %vm997 = vcmp.eq.s32.totalorder %v945, 1
        %vm998 = vcmp.eq.s32.totalorder %v948, 1
        %vm999 = vcmp.eq.s32.totalorder %v951, 1
        %vm1000 = vcmp.eq.s32.totalorder %v954, 1
        %vm1001 = vcmp.eq.s32.totalorder %v957, 1
        %vm1002 = vcmp.eq.s32.totalorder %v960, 1
        %vm1003 = vcmp.eq.s32.totalorder %v963, 1
        %vm1004 = vcmp.eq.s32.totalorder %v966, 1
        %vm1005 = vcmp.eq.s32.totalorder %v969, 1
        %vm1006 = vcmp.eq.s32.totalorder %v972, 1
        %vm1007 = vcmp.eq.s32.totalorder %v975, 1
        %v1008 = vsel %vm976, -inf, %v785
        %v1009 = vsel %vm977, -inf, %v787
        %v1010 = vsel %vm978, -inf, %v789
        %v1011 = vsel %vm979, -inf, %v791
        %v1012 = vsel %vm980, -inf, %v793
        %v1013 = vsel %vm981, -inf, %v795
        %v1014 = vsel %vm982, -inf, %v797
        %v1015 = vsel %vm983, -inf, %v799
        %v1016 = vsel %vm984, -inf, %v801
        %v1017 = vsel %vm985, -inf, %v803
        %v1018 = vsel %vm986, -inf, %v805
        %v1019 = vsel %vm987, -inf, %v807
        %v1020 = vsel %vm988, -inf, %v809
        %v1021 = vsel %vm989, -inf, %v811
        %v1022 = vsel %vm990, -inf, %v813
        %v1023 = vsel %vm991, -inf, %v815
        %v1024 = vsel %vm992, -inf, %v817
        %v1025 = vsel %vm993, -inf, %v819
        %v1026 = vsel %vm994, -inf, %v821
        %v1027 = vsel %vm995, -inf, %v823
        %v1028 = vsel %vm996, -inf, %v825
        %v1029 = vsel %vm997, -inf, %v827
        %v1030 = vsel %vm998, -inf, %v829
        %v1031 = vsel %vm999, -inf, %v831
        %v1032 = vsel %vm1000, -inf, %v833
        %v1033 = vsel %vm1001, -inf, %v835
        %v1034 = vsel %vm1002, -inf, %v837
        %v1035 = vsel %vm1003, -inf, %v839
        %v1036 = vsel %vm1004, -inf, %v841
        %v1037 = vsel %vm1005, -inf, %v843
        %v1038 = vsel %vm1006, -inf, %v845
        %v1039 = vsel %vm1007, -inf, %v847
        %v1040 = vmax.f32 %v1008, %v657
        %v1041 = vmax.f32 %v1009, %v659
        %v1042 = vmax.f32 %v1010, %v661
        %v1043 = vmax.f32 %v1011, %v663
        %v1044 = vmax.f32 %v1012, %v665
        %v1045 = vmax.f32 %v1013, %v667
        %v1046 = vmax.f32 %v1014, %v669
        %v1047 = vmax.f32 %v1015, %v671
        %v1048 = vmax.f32 %v1016, %v673
        %v1049 = vmax.f32 %v1017, %v675
        %v1050 = vmax.f32 %v1018, %v677
        %v1051 = vmax.f32 %v1019, %v679
        %v1052 = vmax.f32 %v1020, %v681
        %v1053 = vmax.f32 %v1021, %v683
        %v1054 = vmax.f32 %v1022, %v685
        %v1055 = vmax.f32 %v1023, %v687
        %v1056 = vmax.f32 %v1024, %v689
        %v1057 = vmax.f32 %v1025, %v691
        %v1058 = vmax.f32 %v1026, %v693
        %v1059 = vmax.f32 %v1027, %v695
        %v1060 = vmax.f32 %v1028, %v697
        %v1061 = vmax.f32 %v1029, %v699
        %v1062 = vmax.f32 %v1030, %v701
        %v1063 = vmax.f32 %v1031, %v703
        %v1064 = vmax.f32 %v1032, %v705
        %v1065 = vmax.f32 %v1033, %v707
        %v1066 = vmax.f32 %v1034, %v709
        %v1067 = vmax.f32 %v1035, %v711
        %v1068 = vmax.f32 %v1036, %v713
        %v1069 = vmax.f32 %v1037, %v715
        %v1070 = vmax.f32 %v1038, %v717
        %v1071 = vmax.f32 %v1039, %v719
        %v1072 = vmax.f32 %v1040, %v721
        %v1073 = vmax.f32 %v1041, %v723
        %v1074 = vmax.f32 %v1042, %v725
        %v1075 = vmax.f32 %v1043, %v727
        %v1076 = vmax.f32 %v1044, %v729
        %v1077 = vmax.f32 %v1045, %v731
        %v1078 = vmax.f32 %v1046, %v733
        %v1079 = vmax.f32 %v1047, %v735
        %v1080 = vmax.f32 %v1048, %v737
        %v1081 = vmax.f32 %v1049, %v739
        %v1082 = vmax.f32 %v1050, %v741
        %v1083 = vmax.f32 %v1051, %v743
        %v1084 = vmax.f32 %v1052, %v745
        %v1085 = vmax.f32 %v1053, %v747
        %v1086 = vmax.f32 %v1054, %v749
        %v1087 = vmax.f32 %v1055, %v751
        %v1088 = vmax.f32 %v1056, %v753
        %v1089 = vmax.f32 %v1057, %v755
        %v1090 = vmax.f32 %v1058, %v757
        %v1091 = vmax.f32 %v1059, %v759
        %v1092 = vmax.f32 %v1060, %v761
        %v1093 = vmax.f32 %v1061, %v763
        %v1094 = vmax.f32 %v1062, %v765
        %v1095 = vmax.f32 %v1063, %v767
        %v1096 = vmax.f32 %v1064, %v769
        %v1097 = vmax.f32 %v1065, %v771
        %v1098 = vmax.f32 %v1066, %v773
        %v1099 = vmax.f32 %v1067, %v775
        %v1100 = vmax.f32 %v1068, %v777
        %v1101 = vmax.f32 %v1069, %v779
        %v1102 = vmax.f32 %v1070, %v781
        %v1103 = vmax.f32 %v1071, %v783
        %v1104 = vld [vmem:[%s3] sm:$0x1]
        %v1105 = vld [vmem:[%s5] sm:$0x1]
        %1106 = vst [vmem:[#allocation2 + $0x8] sm:$0xff] %v1072
        %1107 = vst [vmem:[#allocation2 + $0x10] sm:$0xff] %v1073
        %1108 = vst [vmem:[#allocation2 + $0x18] sm:$0xff] %v1074
        %1109 = vst [vmem:[#allocation2 + $0x20] sm:$0xff] %v1075
        %1110 = vst [vmem:[#allocation2 + $0x28] sm:$0xff] %v1076
        %1111 = vst [vmem:[#allocation2 + $0x30] sm:$0xff] %v1077
        %1112 = vst [vmem:[#allocation2 + $0x38] sm:$0xff] %v1078
        %1113 = vst [vmem:[#allocation2 + $0x40] sm:$0xff] %v1079
        %1114 = vst [vmem:[#allocation2 + $0x48] sm:$0xff] %v1080
        %1115 = vst [vmem:[#allocation2 + $0x50] sm:$0xff] %v1081
        %1116 = vst [vmem:[#allocation2 + $0x58] sm:$0xff] %v1082
        %1117 = vst [vmem:[#allocation2 + $0x60] sm:$0xff] %v1083
        %1118 = vst [vmem:[#allocation2 + $0x68] sm:$0xff] %v1084
        %1119 = vst [vmem:[#allocation2 + $0x70] sm:$0xff] %v1085
        %1120 = vst [vmem:[#allocation2 + $0x78] sm:$0xff] %v1086
        %1121 = vst [vmem:[#allocation2 + $0x80] sm:$0xff] %v1087
        %1122 = vst [vmem:[#allocation2 + $0x88] sm:$0xff] %v1088
        %1123 = vst [vmem:[#allocation2 + $0x90] sm:$0xff] %v1089
        %1124 = vst [vmem:[#allocation2 + $0x98] sm:$0xff] %v1090
        %1125 = vst [vmem:[#allocation2 + $0xa0] sm:$0xff] %v1091
        %1126 = vst [vmem:[#allocation2 + $0xa8] sm:$0xff] %v1092
        %1127 = vst [vmem:[#allocation2 + $0xb0] sm:$0xff] %v1093
        %1128 = vst [vmem:[#allocation2 + $0xb8] sm:$0xff] %v1094
        %1129 = vst [vmem:[#allocation2 + $0xc0] sm:$0xff] %v1095
        %1130 = vst [vmem:[#allocation2 + $0xc8] sm:$0xff] %v1096
        %1131 = vst [vmem:[#allocation2 + $0xd0] sm:$0xff] %v1097
        %1132 = vst [vmem:[#allocation2 + $0xd8] sm:$0xff] %v1098
        %1133 = vst [vmem:[#allocation2 + $0xe0] sm:$0xff] %v1099
        %1134 = vst [vmem:[#allocation2 + $0xe8] sm:$0xff] %v1100
        %1135 = vst [vmem:[#allocation2 + $0xf0] sm:$0xff] %v1101
        %1136 = vst [vmem:[#allocation2 + $0xf8] sm:$0xff] %v1102
        %1137 = vst [vmem:[#allocation2 + $0x100] sm:$0xff] %v1103
        %v1138 = vld [vmem:[#allocation2 + $0x7] sm:$0xff]
        %v1139 = vld [vmem:[#allocation2 + $0xf] sm:$0xff]
        %v1140 = vld [vmem:[#allocation2 + $0x17] sm:$0xff]
        %v1141 = vld [vmem:[#allocation2 + $0x1f] sm:$0xff]
        %v1142 = vld [vmem:[#allocation2 + $0x27] sm:$0xff]
        %v1143 = vld [vmem:[#allocation2 + $0x2f] sm:$0xff]
        %v1144 = vld [vmem:[#allocation2 + $0x37] sm:$0xff]
        %v1145 = vld [vmem:[#allocation2 + $0x3f] sm:$0xff]
        %v1146 = vld [vmem:[#allocation2 + $0x47] sm:$0xff]
        %v1147 = vld [vmem:[#allocation2 + $0x4f] sm:$0xff]
        %v1148 = vld [vmem:[#allocation2 + $0x57] sm:$0xff]
        %v1149 = vld [vmem:[#allocation2 + $0x5f] sm:$0xff]
        %v1150 = vld [vmem:[#allocation2 + $0x67] sm:$0xff]
        %v1151 = vld [vmem:[#allocation2 + $0x6f] sm:$0xff]
        %v1152 = vld [vmem:[#allocation2 + $0x77] sm:$0xff]
        %v1153 = vld [vmem:[#allocation2 + $0x7f] sm:$0xff]
        %v1154 = vld [vmem:[#allocation2 + $0x87] sm:$0xff]
        %v1155 = vld [vmem:[#allocation2 + $0x8f] sm:$0xff]
        %v1156 = vld [vmem:[#allocation2 + $0x97] sm:$0xff]
        %v1157 = vld [vmem:[#allocation2 + $0x9f] sm:$0xff]
        %v1158 = vld [vmem:[#allocation2 + $0xa7] sm:$0xff]
        %v1159 = vld [vmem:[#allocation2 + $0xaf] sm:$0xff]
        %v1160 = vld [vmem:[#allocation2 + $0xb7] sm:$0xff]
        %v1161 = vld [vmem:[#allocation2 + $0xbf] sm:$0xff]
        %v1162 = vld [vmem:[#allocation2 + $0xc7] sm:$0xff]
        %v1163 = vld [vmem:[#allocation2 + $0xcf] sm:$0xff]
        %v1164 = vld [vmem:[#allocation2 + $0xd7] sm:$0xff]
        %v1165 = vld [vmem:[#allocation2 + $0xdf] sm:$0xff]
        %v1166 = vld [vmem:[#allocation2 + $0xe7] sm:$0xff]
        %v1167 = vld [vmem:[#allocation2 + $0xef] sm:$0xff]
        %v1168 = vld [vmem:[#allocation2 + $0xf7] sm:$0xff]
        %v1169 = vld [vmem:[#allocation2 + $0xff] sm:$0xff]
        %v1170 = vsel %vm976, 0.0, %v1138
        %v1171 = vsel %vm977, 0.0, %v1139
        %v1172 = vsel %vm978, 0.0, %v1140
        %v1173 = vsel %vm979, 0.0, %v1141
        %v1174 = vsel %vm980, 0.0, %v1142
        %v1175 = vsel %vm981, 0.0, %v1143
        %v1176 = vsel %vm982, 0.0, %v1144
        %v1177 = vsel %vm983, 0.0, %v1145
        %v1178 = vsel %vm984, 0.0, %v1146
        %v1179 = vsel %vm985, 0.0, %v1147
        %v1180 = vsel %vm986, 0.0, %v1148
        %v1181 = vsel %vm987, 0.0, %v1149
        %v1182 = vsel %vm988, 0.0, %v1150
        %v1183 = vsel %vm989, 0.0, %v1151
        %v1184 = vsel %vm990, 0.0, %v1152
        %v1185 = vsel %vm991, 0.0, %v1153
        %v1186 = vsel %vm992, 0.0, %v1154
        %v1187 = vsel %vm993, 0.0, %v1155
        %v1188 = vsel %vm994, 0.0, %v1156
        %v1189 = vsel %vm995, 0.0, %v1157
        %v1190 = vsel %vm996, 0.0, %v1158
        %v1191 = vsel %vm997, 0.0, %v1159
        %v1192 = vsel %vm998, 0.0, %v1160
        %v1193 = vsel %vm999, 0.0, %v1161
        %v1194 = vsel %vm1000, 0.0, %v1162
        %v1195 = vsel %vm1001, 0.0, %v1163
        %v1196 = vsel %vm1002, 0.0, %v1164
        %v1197 = vsel %vm1003, 0.0, %v1165
        %v1198 = vsel %vm1004, 0.0, %v1166
        %v1199 = vsel %vm1005, 0.0, %v1167
        %v1200 = vsel %vm1006, 0.0, %v1168
        %v1201 = vsel %vm1007, 0.0, %v1169
        %v1202 = vld [vmem:[#allocation2 + $0x9] sm:$0xff]
        %v1203 = vld [vmem:[#allocation2 + $0x11] sm:$0xff]
        %v1204 = vld [vmem:[#allocation2 + $0x19] sm:$0xff]
        %v1205 = vld [vmem:[#allocation2 + $0x21] sm:$0xff]
        %v1206 = vld [vmem:[#allocation2 + $0x29] sm:$0xff]
        %v1207 = vld [vmem:[#allocation2 + $0x31] sm:$0xff]
        %v1208 = vld [vmem:[#allocation2 + $0x39] sm:$0xff]
        %v1209 = vld [vmem:[#allocation2 + $0x41] sm:$0xff]
        %v1210 = vld [vmem:[#allocation2 + $0x49] sm:$0xff]
        %v1211 = vld [vmem:[#allocation2 + $0x51] sm:$0xff]
        %v1212 = vld [vmem:[#allocation2 + $0x59] sm:$0xff]
        %v1213 = vld [vmem:[#allocation2 + $0x61] sm:$0xff]
        %v1214 = vld [vmem:[#allocation2 + $0x69] sm:$0xff]
        %v1215 = vld [vmem:[#allocation2 + $0x71] sm:$0xff]
        %v1216 = vld [vmem:[#allocation2 + $0x79] sm:$0xff]
        %v1217 = vld [vmem:[#allocation2 + $0x81] sm:$0xff]
        %v1218 = vld [vmem:[#allocation2 + $0x89] sm:$0xff]
        %v1219 = vld [vmem:[#allocation2 + $0x91] sm:$0xff]
        %v1220 = vld [vmem:[#allocation2 + $0x99] sm:$0xff]
        %v1221 = vld [vmem:[#allocation2 + $0xa1] sm:$0xff]
        %v1222 = vld [vmem:[#allocation2 + $0xa9] sm:$0xff]
        %v1223 = vld [vmem:[#allocation2 + $0xb1] sm:$0xff]
        %v1224 = vld [vmem:[#allocation2 + $0xb9] sm:$0xff]
        %v1225 = vld [vmem:[#allocation2 + $0xc1] sm:$0xff]
        %v1226 = vld [vmem:[#allocation2 + $0xc9] sm:$0xff]
        %v1227 = vld [vmem:[#allocation2 + $0xd1] sm:$0xff]
        %v1228 = vld [vmem:[#allocation2 + $0xd9] sm:$0xff]
        %v1229 = vld [vmem:[#allocation2 + $0xe1] sm:$0xff]
        %v1230 = vld [vmem:[#allocation2 + $0xe9] sm:$0xff]
        %v1231 = vld [vmem:[#allocation2 + $0xf1] sm:$0xff]
        %v1232 = vld [vmem:[#allocation2 + $0xf9] sm:$0xff]
        %v1233 = vld [vmem:[#allocation2 + $0x101] sm:$0xff]
        %v1234 = vsel %vm624, 1, 0
        %v1235 = vsel %vm625, 1, 0
        %v1236 = vsel %vm626, 1, 0
        %v1237 = vsel %vm627, 1, 0
        %v1238 = vsel %vm628, 1, 0
        %v1239 = vsel %vm629, 1, 0
        %v1240 = vsel %vm630, 1, 0
        %v1241 = vsel %vm631, 1, 0
        %v1242 = vsel %vm632, 1, 0
        %v1243 = vsel %vm633, 1, 0
        %v1244 = vsel %vm634, 1, 0
        %v1245 = vsel %vm635, 1, 0
        %v1246 = vsel %vm636, 1, 0
        %v1247 = vsel %vm637, 1, 0
        %v1248 = vsel %vm638, 1, 0
        %v1249 = vsel %vm639, 1, 0
        %v1250 = vsel %vm640, 1, 0
        %v1251 = vsel %vm641, 1, 0
        %v1252 = vsel %vm642, 1, 0
        %v1253 = vsel %vm643, 1, 0
        %v1254 = vsel %vm644, 1, 0
        %v1255 = vsel %vm645, 1, 0
        %v1256 = vsel %vm646, 1, 0
        %v1257 = vsel %vm647, 1, 0
        %v1258 = vsel %vm648, 1, 0
        %v1259 = vsel %vm649, 1, 0
        %v1260 = vsel %vm650, 1, 0
        %v1261 = vsel %vm651, 1, 0
        %v1262 = vsel %vm652, 1, 0
        %v1263 = vsel %vm653, 1, 0
        %v1264 = vsel %vm654, 1, 0
        %v1265 = vsel %vm655, 1, 0
        %1266 = vset.pattern.permute.xlu0 0
        %1267 = vperm.xlu0 %1266, %v1234
        %v1268 = vpop.permute.xlu0 %1267
        %1269 = vset.pattern.permute.xlu0 0
        %1270 = vperm.xlu0 %1269, %v1235
        %v1271 = vpop.permute.xlu0 %1270
        %1272 = vset.pattern.permute.xlu0 0
        %1273 = vperm.xlu0 %1272, %v1236
        %v1274 = vpop.permute.xlu0 %1273
        %1275 = vset.pattern.permute.xlu0 0
        %1276 = vperm.xlu0 %1275, %v1237
        %v1277 = vpop.permute.xlu0 %1276
        %1278 = vset.pattern.permute.xlu0 0
        %1279 = vperm.xlu0 %1278, %v1238
        %v1280 = vpop.permute.xlu0 %1279
        %1281 = vset.pattern.permute.xlu0 0
        %1282 = vperm.xlu0 %1281, %v1239
        %v1283 = vpop.permute.xlu0 %1282
        %1284 = vset.pattern.permute.xlu0 0
        %1285 = vperm.xlu0 %1284, %v1240
        %v1286 = vpop.permute.xlu0 %1285
        %1287 = vset.pattern.permute.xlu0 0
        %1288 = vperm.xlu0 %1287, %v1241
        %v1289 = vpop.permute.xlu0 %1288
        %1290 = vset.pattern.permute.xlu0 0
        %1291 = vperm.xlu0 %1290, %v1242
        %v1292 = vpop.permute.xlu0 %1291
        %1293 = vset.pattern.permute.xlu0 0
        %1294 = vperm.xlu0 %1293, %v1243
        %v1295 = vpop.permute.xlu0 %1294
        %1296 = vset.pattern.permute.xlu0 0
        %1297 = vperm.xlu0 %1296, %v1244
        %v1298 = vpop.permute.xlu0 %1297
        %1299 = vset.pattern.permute.xlu0 0
        %1300 = vperm.xlu0 %1299, %v1245
        %v1301 = vpop.permute.xlu0 %1300
        %1302 = vset.pattern.permute.xlu0 0
        %1303 = vperm.xlu0 %1302, %v1246
        %v1304 = vpop.permute.xlu0 %1303
        %1305 = vset.pattern.permute.xlu0 0
        %1306 = vperm.xlu0 %1305, %v1247
        %v1307 = vpop.permute.xlu0 %1306
        %1308 = vset.pattern.permute.xlu0 0
        %1309 = vperm.xlu0 %1308, %v1248
        %v1310 = vpop.permute.xlu0 %1309
        %1311 = vset.pattern.permute.xlu0 0
        %1312 = vperm.xlu0 %1311, %v1249
        %v1313 = vpop.permute.xlu0 %1312
        %1314 = vset.pattern.permute.xlu0 0
        %1315 = vperm.xlu0 %1314, %v1250
        %v1316 = vpop.permute.xlu0 %1315
        %1317 = vset.pattern.permute.xlu0 0
        %1318 = vperm.xlu0 %1317, %v1251
        %v1319 = vpop.permute.xlu0 %1318
        %1320 = vset.pattern.permute.xlu0 0
        %1321 = vperm.xlu0 %1320, %v1252
        %v1322 = vpop.permute.xlu0 %1321
        %1323 = vset.pattern.permute.xlu0 0
        %1324 = vperm.xlu0 %1323, %v1253
        %v1325 = vpop.permute.xlu0 %1324
        %1326 = vset.pattern.permute.xlu0 0
        %1327 = vperm.xlu0 %1326, %v1254
        %v1328 = vpop.permute.xlu0 %1327
        %1329 = vset.pattern.permute.xlu0 0
        %1330 = vperm.xlu0 %1329, %v1255
        %v1331 = vpop.permute.xlu0 %1330
        %1332 = vset.pattern.permute.xlu0 0
        %1333 = vperm.xlu0 %1332, %v1256
        %v1334 = vpop.permute.xlu0 %1333
        %1335 = vset.pattern.permute.xlu0 0
        %1336 = vperm.xlu0 %1335, %v1257
        %v1337 = vpop.permute.xlu0 %1336
        %1338 = vset.pattern.permute.xlu0 0
        %1339 = vperm.xlu0 %1338, %v1258
        %v1340 = vpop.permute.xlu0 %1339
        %1341 = vset.pattern.permute.xlu0 0
        %1342 = vperm.xlu0 %1341, %v1259
        %v1343 = vpop.permute.xlu0 %1342
        %1344 = vset.pattern.permute.xlu0 0
        %1345 = vperm.xlu0 %1344, %v1260
        %v1346 = vpop.permute.xlu0 %1345
        %1347 = vset.pattern.permute.xlu0 0
        %1348 = vperm.xlu0 %1347, %v1261
        %v1349 = vpop.permute.xlu0 %1348
        %1350 = vset.pattern.permute.xlu0 0
        %1351 = vperm.xlu0 %1350, %v1262
        %v1352 = vpop.permute.xlu0 %1351
        %1353 = vset.pattern.permute.xlu0 0
        %1354 = vperm.xlu0 %1353, %v1263
        %v1355 = vpop.permute.xlu0 %1354
        %1356 = vset.pattern.permute.xlu0 0
        %1357 = vperm.xlu0 %1356, %v1264
        %v1358 = vpop.permute.xlu0 %1357
        %1359 = vset.pattern.permute.xlu0 0
        %1360 = vperm.xlu0 %1359, %v1265
        %v1361 = vpop.permute.xlu0 %1360
        %vm1362 = vcmp.eq.s32.totalorder %v1268, 1
        %vm1363 = vcmp.eq.s32.totalorder %v1271, 1
        %vm1364 = vcmp.eq.s32.totalorder %v1274, 1
        %vm1365 = vcmp.eq.s32.totalorder %v1277, 1
        %vm1366 = vcmp.eq.s32.totalorder %v1280, 1
        %vm1367 = vcmp.eq.s32.totalorder %v1283, 1
        %vm1368 = vcmp.eq.s32.totalorder %v1286, 1
        %vm1369 = vcmp.eq.s32.totalorder %v1289, 1
        %vm1370 = vcmp.eq.s32.totalorder %v1292, 1
        %vm1371 = vcmp.eq.s32.totalorder %v1295, 1
        %vm1372 = vcmp.eq.s32.totalorder %v1298, 1
        %vm1373 = vcmp.eq.s32.totalorder %v1301, 1
        %vm1374 = vcmp.eq.s32.totalorder %v1304, 1
        %vm1375 = vcmp.eq.s32.totalorder %v1307, 1
        %vm1376 = vcmp.eq.s32.totalorder %v1310, 1
        %vm1377 = vcmp.eq.s32.totalorder %v1313, 1
        %vm1378 = vcmp.eq.s32.totalorder %v1316, 1
        %vm1379 = vcmp.eq.s32.totalorder %v1319, 1
        %vm1380 = vcmp.eq.s32.totalorder %v1322, 1
        %vm1381 = vcmp.eq.s32.totalorder %v1325, 1
        %vm1382 = vcmp.eq.s32.totalorder %v1328, 1
        %vm1383 = vcmp.eq.s32.totalorder %v1331, 1
        %vm1384 = vcmp.eq.s32.totalorder %v1334, 1
        %vm1385 = vcmp.eq.s32.totalorder %v1337, 1
        %vm1386 = vcmp.eq.s32.totalorder %v1340, 1
        %vm1387 = vcmp.eq.s32.totalorder %v1343, 1
        %vm1388 = vcmp.eq.s32.totalorder %v1346, 1
        %vm1389 = vcmp.eq.s32.totalorder %v1349, 1
        %vm1390 = vcmp.eq.s32.totalorder %v1352, 1
        %vm1391 = vcmp.eq.s32.totalorder %v1355, 1
        %vm1392 = vcmp.eq.s32.totalorder %v1358, 1
        %vm1393 = vcmp.eq.s32.totalorder %v1361, 1
        %v1394 = vsel %vm1362, 0.0, %v1202
        %v1395 = vsel %vm1363, 0.0, %v1203
        %v1396 = vsel %vm1364, 0.0, %v1204
        %v1397 = vsel %vm1365, 0.0, %v1205
        %v1398 = vsel %vm1366, 0.0, %v1206
        %v1399 = vsel %vm1367, 0.0, %v1207
        %v1400 = vsel %vm1368, 0.0, %v1208
        %v1401 = vsel %vm1369, 0.0, %v1209
        %v1402 = vsel %vm1370, 0.0, %v1210
        %v1403 = vsel %vm1371, 0.0, %v1211
        %v1404 = vsel %vm1372, 0.0, %v1212
        %v1405 = vsel %vm1373, 0.0, %v1213
        %v1406 = vsel %vm1374, 0.0, %v1214
        %v1407 = vsel %vm1375, 0.0, %v1215
        %v1408 = vsel %vm1376, 0.0, %v1216
        %v1409 = vsel %vm1377, 0.0, %v1217
        %v1410 = vsel %vm1378, 0.0, %v1218
        %v1411 = vsel %vm1379, 0.0, %v1219
        %v1412 = vsel %vm1380, 0.0, %v1220
        %v1413 = vsel %vm1381, 0.0, %v1221
        %v1414 = vsel %vm1382, 0.0, %v1222
        %v1415 = vsel %vm1383, 0.0, %v1223
        %v1416 = vsel %vm1384, 0.0, %v1224
        %v1417 = vsel %vm1385, 0.0, %v1225
        %v1418 = vsel %vm1386, 0.0, %v1226
        %v1419 = vsel %vm1387, 0.0, %v1227
        %v1420 = vsel %vm1388, 0.0, %v1228
        %v1421 = vsel %vm1389, 0.0, %v1229
        %v1422 = vsel %vm1390, 0.0, %v1230
        %v1423 = vsel %vm1391, 0.0, %v1231
        %v1424 = vsel %vm1392, 0.0, %v1232
        %v1425 = vsel %vm1393, 0.0, %v1233
        %v1426 = vld [vmem:[#allocation6] sm:$0xff]
        %v1427 = vld [vmem:[#allocation6 + $0x8] sm:$0xff]
        %v1428 = vld [vmem:[#allocation6 + $0x10] sm:$0xff]
        %v1429 = vld [vmem:[#allocation6 + $0x18] sm:$0xff]
        %v1430 = vld [vmem:[#allocation6 + $0x20] sm:$0xff]
        %v1431 = vld [vmem:[#allocation6 + $0x28] sm:$0xff]
        %v1432 = vld [vmem:[#allocation6 + $0x30] sm:$0xff]
        %v1433 = vld [vmem:[#allocation6 + $0x38] sm:$0xff]
        %v1434 = vld [vmem:[#allocation6 + $0x40] sm:$0xff]
        %v1435 = vld [vmem:[#allocation6 + $0x48] sm:$0xff]
        %v1436 = vld [vmem:[#allocation6 + $0x50] sm:$0xff]
        %v1437 = vld [vmem:[#allocation6 + $0x58] sm:$0xff]
        %v1438 = vld [vmem:[#allocation6 + $0x60] sm:$0xff]
        %v1439 = vld [vmem:[#allocation6 + $0x68] sm:$0xff]
        %v1440 = vld [vmem:[#allocation6 + $0x70] sm:$0xff]
        %v1441 = vld [vmem:[#allocation6 + $0x78] sm:$0xff]
        %v1442 = vld [vmem:[#allocation6 + $0x80] sm:$0xff]
        %v1443 = vld [vmem:[#allocation6 + $0x88] sm:$0xff]
        %v1444 = vld [vmem:[#allocation6 + $0x90] sm:$0xff]
        %v1445 = vld [vmem:[#allocation6 + $0x98] sm:$0xff]
        %v1446 = vld [vmem:[#allocation6 + $0xa0] sm:$0xff]
        %v1447 = vld [vmem:[#allocation6 + $0xa8] sm:$0xff]
        %v1448 = vld [vmem:[#allocation6 + $0xb0] sm:$0xff]
        %v1449 = vld [vmem:[#allocation6 + $0xb8] sm:$0xff]
        %v1450 = vld [vmem:[#allocation6 + $0xc0] sm:$0xff]
        %v1451 = vld [vmem:[#allocation6 + $0xc8] sm:$0xff]
        %v1452 = vld [vmem:[#allocation6 + $0xd0] sm:$0xff]
        %v1453 = vld [vmem:[#allocation6 + $0xd8] sm:$0xff]
        %v1454 = vld [vmem:[#allocation6 + $0xe0] sm:$0xff]
        %v1455 = vld [vmem:[#allocation6 + $0xe8] sm:$0xff]
        %v1456 = vld [vmem:[#allocation6 + $0xf0] sm:$0xff]
        %v1457 = vld [vmem:[#allocation6 + $0xf8] sm:$0xff]
        %v1458 = vld [vmem:[#allocation6 + $0x100] sm:$0xff]
        %v1459 = vld [vmem:[#allocation6 + $0x108] sm:$0xff]
        %v1460 = vld [vmem:[#allocation6 + $0x110] sm:$0xff]
        %v1461 = vld [vmem:[#allocation6 + $0x118] sm:$0xff]
        %v1462 = vld [vmem:[#allocation6 + $0x120] sm:$0xff]
        %v1463 = vld [vmem:[#allocation6 + $0x128] sm:$0xff]
        %v1464 = vld [vmem:[#allocation6 + $0x130] sm:$0xff]
        %v1465 = vld [vmem:[#allocation6 + $0x138] sm:$0xff]
        %v1466 = vld [vmem:[#allocation6 + $0x140] sm:$0xff]
        %v1467 = vld [vmem:[#allocation6 + $0x148] sm:$0xff]
        %v1468 = vld [vmem:[#allocation6 + $0x150] sm:$0xff]
        %v1469 = vld [vmem:[#allocation6 + $0x158] sm:$0xff]
        %v1470 = vld [vmem:[#allocation6 + $0x160] sm:$0xff]
        %v1471 = vld [vmem:[#allocation6 + $0x168] sm:$0xff]
        %v1472 = vld [vmem:[#allocation6 + $0x170] sm:$0xff]
        %v1473 = vld [vmem:[#allocation6 + $0x178] sm:$0xff]
        %v1475 = vlaneseq
        %v1476 = vshrl.u32 %v1475, 7
        %v1477 = vsub.s32 0, %v1476
        %v1478 = vrot.slane %v1104, %v1477
        %1480 = vmatprep.subr.mxu0 0.0
        %1481 = vmatpush1.msra.mxu0 %v1426
        %1482 = vmatprep.subr.mxu0 0.0
        %1483 = vmatpush1.msra.mxu0 %v1427
        %1484 = vmatprep.subr.mxu0 0.0
        %1485 = vmatpush1.msra.mxu0 %v1428
        %1486 = vmatprep.subr.mxu0 0.0
        %1487 = vmatpush1.msra.mxu0 %v1429
        %1488 = vmatprep.subr.mxu0 0.0
        %1489 = vmatpush1.msra.mxu0 %v1430
        %1490 = vmatprep.subr.mxu0 0.0
        %1491 = vmatpush1.msra.mxu0 %v1431
        %1492 = vmatprep.subr.mxu0 0.0
        %1493 = vmatpush1.msra.mxu0 %v1432
        %1494 = vmatprep.subr.mxu0 0.0
        %1495 = vmatpush1.msra.mxu0 %v1433
        %1496 = vmatprep.subr.mxu0 0.0
        %1497 = vmatpush1.msra.mxu0 %v1434
        %1498 = vmatprep.subr.mxu0 0.0
        %1499 = vmatpush1.msra.mxu0 %v1435
        %1500 = vmatprep.subr.mxu0 0.0
        %1501 = vmatpush1.msra.mxu0 %v1436
        %1502 = vmatprep.subr.mxu0 0.0
        %1503 = vmatpush1.msra.mxu0 %v1437
        %1504 = vmatprep.subr.mxu0 0.0
        %1505 = vmatpush1.msra.mxu0 %v1438
        %1506 = vmatprep.subr.mxu0 0.0
        %1507 = vmatpush1.msra.mxu0 %v1439
        %1508 = vmatprep.subr.mxu0 0.0
        %1509 = vmatpush1.msra.mxu0 %v1440
        %1510 = vmatprep.subr.mxu0 0.0
        %1511 = vmatpush1.msra.mxu0 %v1441
        %1512 = vmatprep.subr.mxu0 0.0
        %1513 = vmatpush1.msra.mxu0 %v1442
        %1514 = vmatprep.subr.mxu0 0.0
        %1515 = vmatpush1.msra.mxu0 %v1443
        %1516 = vmatprep.subr.mxu0 0.0
        %1517 = vmatpush1.msra.mxu0 %v1444
        %1518 = vmatprep.subr.mxu0 0.0
        %1519 = vmatpush1.msra.mxu0 %v1445
        %1520 = vmatprep.subr.mxu0 0.0
        %1521 = vmatpush1.msra.mxu0 %v1446
        %1522 = vmatprep.subr.mxu0 0.0
        %1523 = vmatpush1.msra.mxu0 %v1447
        %1524 = vmatprep.subr.mxu0 0.0
        %1525 = vmatpush1.msra.mxu0 %v1448
        %1526 = vmatprep.subr.mxu0 0.0
        %1527 = vmatpush1.msra.mxu0 %v1449
        %1528 = vmatprep.subr.mxu0 0.0
        %1529 = vmatpush1.msra.mxu0 %v1450
        %1530 = vmatprep.subr.mxu0 0.0
        %1531 = vmatpush1.msra.mxu0 %v1451
        %1532 = vmatprep.subr.mxu0 0.0
        %1533 = vmatpush1.msra.mxu0 %v1452
        %1534 = vmatprep.subr.mxu0 0.0
        %1535 = vmatpush1.msra.mxu0 %v1453
        %1536 = vmatprep.subr.mxu0 0.0
        %1537 = vmatpush1.msra.mxu0 %v1454
        %1538 = vmatprep.subr.mxu0 0.0
        %1539 = vmatpush1.msra.mxu0 %v1455
        %1540 = vmatprep.subr.mxu0 0.0
        %1541 = vmatpush1.msra.mxu0 %v1456
        %1542 = vmatprep.subr.mxu0 0.0
        %1543 = vmatpush1.msra.mxu0 %v1457
        %1544 = vmatprep.mubr.f32.mxu0 %v1072
        %1545 = vmatmul.mubr.f32.gmra.mrb[0].mxu0 %v1170
        %v1546 = vpop.f32.mrb[0].mxu0
        %v1547 = vadd.f32 %v1478, %v1546
        %v1548 = vpop.f32.mrb[0].mxu0
        %1549 = vmatprep.mubr.f32.mxu0 %v1073
        %1550 = vmatmul.mubr.f32.gmra.mrb[0].mxu0 %v1171
        %v1551 = vpop.f32.mrb[0].mxu0
        %v1552 = vadd.f32 %v1478, %v1551
        %v1553 = vpop.f32.mrb[0].mxu0
        %1554 = vmatprep.mubr.f32.mxu0 %v1074
        %1555 = vmatmul.mubr.f32.gmra.mrb[0].mxu0 %v1172
        %v1556 = vpop.f32.mrb[0].mxu0
        %v1557 = vadd.f32 %v1478, %v1556
        %v1558 = vpop.f32.mrb[0].mxu0
        %1559 = vmatprep.mubr.f32.mxu0 %v1075
        %1560 = vmatmul.mubr.f32.gmra.mrb[0].mxu0 %v1173
        %v1561 = vpop.f32.mrb[0].mxu0
        %v1562 = vadd.f32 %v1478, %v1561
        %v1563 = vpop.f32.mrb[0].mxu0
        %1564 = vmatprep.mubr.f32.mxu0 %v1076
        %1565 = vmatmul.mubr.f32.gmra.mrb[0].mxu0 %v1174
        %v1566 = vpop.f32.mrb[0].mxu0
        %v1567 = vadd.f32 %v1478, %v1566
        %v1568 = vpop.f32.mrb[0].mxu0
        %1569 = vmatprep.mubr.f32.mxu0 %v1077
        %1570 = vmatmul.mubr.f32.gmra.mrb[0].mxu0 %v1175
        %v1571 = vpop.f32.mrb[0].mxu0
        %v1572 = vadd.f32 %v1478, %v1571
        %v1573 = vpop.f32.mrb[0].mxu0
        %1574 = vmatprep.mubr.f32.mxu0 %v1078
        %1575 = vmatmul.mubr.f32.gmra.mrb[0].mxu0 %v1176
        %v1576 = vpop.f32.mrb[0].mxu0
        %v1577 = vadd.f32 %v1478, %v1576
        %v1578 = vpop.f32.mrb[0].mxu0
        %1579 = vmatprep.mubr.f32.mxu0 %v1079
        %1580 = vmatmul.mubr.f32.gmra.mrb[0].mxu0 %v1177
        %v1581 = vpop.f32.mrb[0].mxu0
        %v1582 = vadd.f32 %v1478, %v1581
        %v1583 = vpop.f32.mrb[0].mxu0
        %1584 = vmatprep.mubr.f32.mxu0 %v1080
        %1585 = vmatmul.mubr.f32.gmra.mrb[0].mxu0 %v1178
        %v1586 = vpop.f32.mrb[0].mxu0
        %v1587 = vadd.f32 %v1478, %v1586
        %v1588 = vpop.f32.mrb[0].mxu0
        %1589 = vmatprep.mubr.f32.mxu0 %v1081
        %1590 = vmatmul.mubr.f32.gmra.mrb[0].mxu0 %v1179
        %v1591 = vpop.f32.mrb[0].mxu0
        %v1592 = vadd.f32 %v1478, %v1591
        %v1593 = vpop.f32.mrb[0].mxu0
        %1594 = vmatprep.mubr.f32.mxu0 %v1082
        %1595 = vmatmul.mubr.f32.gmra.mrb[0].mxu0 %v1180
        %v1596 = vpop.f32.mrb[0].mxu0
        %v1597 = vadd.f32 %v1478, %v1596
        %v1598 = vpop.f32.mrb[0].mxu0
        %1599 = vmatprep.mubr.f32.mxu0 %v1083
        %1600 = vmatmul.mubr.f32.gmra.mrb[0].mxu0 %v1181
        %v1601 = vpop.f32.mrb[0].mxu0
        %v1602 = vadd.f32 %v1478, %v1601
        %v1603 = vpop.f32.mrb[0].mxu0
        %1604 = vmatprep.mubr.f32.mxu0 %v1084
        %1605 = vmatmul.mubr.f32.gmra.mrb[0].mxu0 %v1182
        %v1606 = vpop.f32.mrb[0].mxu0
        %v1607 = vadd.f32 %v1478, %v1606
        %v1608 = vpop.f32.mrb[0].mxu0
        %1609 = vmatprep.mubr.f32.mxu0 %v1085
        %1610 = vmatmul.mubr.f32.gmra.mrb[0].mxu0 %v1183
        %v1611 = vpop.f32.mrb[0].mxu0
        %v1612 = vadd.f32 %v1478, %v1611
        %v1613 = vpop.f32.mrb[0].mxu0
        %1614 = vmatprep.mubr.f32.mxu0 %v1086
        %1615 = vmatmul.mubr.f32.gmra.mrb[0].mxu0 %v1184
        %v1616 = vpop.f32.mrb[0].mxu0
        %v1617 = vadd.f32 %v1478, %v1616
        %v1618 = vpop.f32.mrb[0].mxu0
        %1619 = vmatprep.mubr.f32.mxu0 %v1087
        %1620 = vmatmul.mubr.f32.gmra.mrb[0].mxu0 %v1185
        %v1621 = vpop.f32.mrb[0].mxu0
        %v1622 = vadd.f32 %v1478, %v1621
        %v1623 = vpop.f32.mrb[0].mxu0
        %1624 = vmatprep.mubr.f32.mxu0 %v1088
        %1625 = vmatmul.mubr.f32.gmra.mrb[0].mxu0 %v1186
        %v1626 = vpop.f32.mrb[0].mxu0
        %v1627 = vadd.f32 %v1478, %v1626
        %v1628 = vpop.f32.mrb[0].mxu0
        %1629 = vmatprep.mubr.f32.mxu0 %v1089
        %1630 = vmatmul.mubr.f32.gmra.mrb[0].mxu0 %v1187
        %v1631 = vpop.f32.mrb[0].mxu0
        %v1632 = vadd.f32 %v1478, %v1631
        %v1633 = vpop.f32.mrb[0].mxu0
        %1634 = vmatprep.mubr.f32.mxu0 %v1090
        %1635 = vmatmul.mubr.f32.gmra.mrb[0].mxu0 %v1188
        %v1636 = vpop.f32.mrb[0].mxu0
        %v1637 = vadd.f32 %v1478, %v1636
        %v1638 = vpop.f32.mrb[0].mxu0
        %1639 = vmatprep.mubr.f32.mxu0 %v1091
        %1640 = vmatmul.mubr.f32.gmra.mrb[0].mxu0 %v1189
        %v1641 = vpop.f32.mrb[0].mxu0
        %v1642 = vadd.f32 %v1478, %v1641
        %v1643 = vpop.f32.mrb[0].mxu0
        %1644 = vmatprep.mubr.f32.mxu0 %v1092
        %1645 = vmatmul.mubr.f32.gmra.mrb[0].mxu0 %v1190
        %v1646 = vpop.f32.mrb[0].mxu0
        %v1647 = vadd.f32 %v1478, %v1646
        %v1648 = vpop.f32.mrb[0].mxu0
        %1649 = vmatprep.mubr.f32.mxu0 %v1093
        %1650 = vmatmul.mubr.f32.gmra.mrb[0].mxu0 %v1191
        %v1651 = vpop.f32.mrb[0].mxu0
        %v1652 = vadd.f32 %v1478, %v1651
        %v1653 = vpop.f32.mrb[0].mxu0
        %1654 = vmatprep.mubr.f32.mxu0 %v1094
        %1655 = vmatmul.mubr.f32.gmra.mrb[0].mxu0 %v1192
        %v1656 = vpop.f32.mrb[0].mxu0
        %v1657 = vadd.f32 %v1478, %v1656
        %v1658 = vpop.f32.mrb[0].mxu0
        %1659 = vmatprep.mubr.f32.mxu0 %v1095
        %1660 = vmatmul.mubr.f32.gmra.mrb[0].mxu0 %v1193
        %v1661 = vpop.f32.mrb[0].mxu0
        %v1662 = vadd.f32 %v1478, %v1661
        %v1663 = vpop.f32.mrb[0].mxu0
        %1664 = vmatprep.mubr.f32.mxu0 %v1096
        %1665 = vmatmul.mubr.f32.gmra.mrb[0].mxu0 %v1194
        %v1666 = vpop.f32.mrb[0].mxu0
        %v1667 = vadd.f32 %v1478, %v1666
        %v1668 = vpop.f32.mrb[0].mxu0
        %1669 = vmatprep.mubr.f32.mxu0 %v1097
        %1670 = vmatmul.mubr.f32.gmra.mrb[0].mxu0 %v1195
        %v1671 = vpop.f32.mrb[0].mxu0
        %v1672 = vadd.f32 %v1478, %v1671
        %v1673 = vpop.f32.mrb[0].mxu0
        %1674 = vmatprep.mubr.f32.mxu0 %v1098
        %1675 = vmatmul.mubr.f32.gmra.mrb[0].mxu0 %v1196
        %v1676 = vpop.f32.mrb[0].mxu0
        %v1677 = vadd.f32 %v1478, %v1676
        %v1678 = vpop.f32.mrb[0].mxu0
        %1679 = vmatprep.mubr.f32.mxu0 %v1099
        %1680 = vmatmul.mubr.f32.gmra.mrb[0].mxu0 %v1197
        %v1681 = vpop.f32.mrb[0].mxu0
        %v1682 = vadd.f32 %v1478, %v1681
        %v1683 = vpop.f32.mrb[0].mxu0
        %1684 = vmatprep.mubr.f32.mxu0 %v1100
        %1685 = vmatmul.mubr.f32.gmra.mrb[0].mxu0 %v1198
        %v1686 = vpop.f32.mrb[0].mxu0
        %v1687 = vadd.f32 %v1478, %v1686
        %v1688 = vpop.f32.mrb[0].mxu0
        %1689 = vmatprep.mubr.f32.mxu0 %v1101
        %1690 = vmatmul.mubr.f32.gmra.mrb[0].mxu0 %v1199
        %v1691 = vpop.f32.mrb[0].mxu0
        %v1692 = vadd.f32 %v1478, %v1691
        %v1693 = vpop.f32.mrb[0].mxu0
        %1694 = vmatprep.mubr.f32.mxu0 %v1102
        %1695 = vmatmul.mubr.f32.gmra.mrb[0].mxu0 %v1200
        %v1696 = vpop.f32.mrb[0].mxu0
        %v1697 = vadd.f32 %v1478, %v1696
        %v1698 = vpop.f32.mrb[0].mxu0
        %1699 = vmatprep.mubr.f32.mxu0 %v1103
        %1700 = vmatmul.mubr.f32.gmra.mrb[0].mxu0 %v1201
        %v1701 = vpop.f32.mrb[0].mxu0
        %v1702 = vadd.f32 %v1478, %v1701
        %v1703 = vpop.f32.mrb[0].mxu0
        %1704 = vdwg.mxu0
        %1705 = vmatprep.subr.mxu0 0.0
        %1706 = vmatpush1.msra.mxu0 %v1458
        %1707 = vmatprep.subr.mxu0 0.0
        %1708 = vmatpush1.msra.mxu0 %v1459
        %1709 = vmatprep.subr.mxu0 0.0
        %1710 = vmatpush1.msra.mxu0 %v1460
        %1711 = vmatprep.subr.mxu0 0.0
        %1712 = vmatpush1.msra.mxu0 %v1461
        %1713 = vmatprep.subr.mxu0 0.0
        %1714 = vmatpush1.msra.mxu0 %v1462
        %1715 = vmatprep.subr.mxu0 0.0
        %1716 = vmatpush1.msra.mxu0 %v1463
        %1717 = vmatprep.subr.mxu0 0.0
        %1718 = vmatpush1.msra.mxu0 %v1464
        %1719 = vmatprep.subr.mxu0 0.0
        %1720 = vmatpush1.msra.mxu0 %v1465
        %1721 = vmatprep.subr.mxu0 0.0
        %1722 = vmatpush1.msra.mxu0 %v1466
        %1723 = vmatprep.subr.mxu0 0.0
        %1724 = vmatpush1.msra.mxu0 %v1467
        %1725 = vmatprep.subr.mxu0 0.0
        %1726 = vmatpush1.msra.mxu0 %v1468
        %1727 = vmatprep.subr.mxu0 0.0
        %1728 = vmatpush1.msra.mxu0 %v1469
        %1729 = vmatprep.subr.mxu0 0.0
        %1730 = vmatpush1.msra.mxu0 %v1470
        %1731 = vmatprep.subr.mxu0 0.0
        %1732 = vmatpush1.msra.mxu0 %v1471
        %1733 = vmatprep.subr.mxu0 0.0
        %1734 = vmatpush1.msra.mxu0 %v1472
        %1735 = vmatprep.subr.mxu0 0.0
        %1736 = vmatpush1.msra.mxu0 %v1473
        %1737 = vmatprep.subr.mxu0 0.0
        %1738 = vmatpush1.msra.mxu0 0.0
        %1739 = vmatprep.subr.mxu0 0.0
        %1740 = vmatpush1.msra.mxu0 0.0
        %1741 = vmatprep.subr.mxu0 0.0
        %1742 = vmatpush1.msra.mxu0 0.0
        %1743 = vmatprep.subr.mxu0 0.0
        %1744 = vmatpush1.msra.mxu0 0.0
        %1745 = vmatprep.subr.mxu0 0.0
        %1746 = vmatpush1.msra.mxu0 0.0
        %1747 = vmatprep.subr.mxu0 0.0
        %1748 = vmatpush1.msra.mxu0 0.0
        %1749 = vmatprep.subr.mxu0 0.0
        %1750 = vmatpush1.msra.mxu0 0.0
        %1751 = vmatprep.subr.mxu0 0.0
        %1752 = vmatpush1.msra.mxu0 0.0
        %1753 = vmatprep.subr.mxu0 0.0
        %1754 = vmatpush1.msra.mxu0 0.0
        %1755 = vmatprep.subr.mxu0 0.0
        %1756 = vmatpush1.msra.mxu0 0.0
        %1757 = vmatprep.subr.mxu0 0.0
        %1758 = vmatpush1.msra.mxu0 0.0
        %1759 = vmatprep.subr.mxu0 0.0
        %1760 = vmatpush1.msra.mxu0 0.0
        %1761 = vmatprep.subr.mxu0 0.0
        %1762 = vmatpush1.msra.mxu0 0.0
        %1763 = vmatprep.subr.mxu0 0.0
        %1764 = vmatpush1.msra.mxu0 0.0
        %1765 = vmatprep.subr.mxu0 0.0
        %1766 = vmatpush1.msra.mxu0 0.0
        %1767 = vmatprep.subr.mxu0 0.0
        %1768 = vmatpush1.msra.mxu0 0.0
        %1769 = vmatprep.mubr.f32.mxu0 0.0
        %1770 = vmatmul.mubr.f32.gmra.mrb[0].mxu0 %v1394
        %v1771 = vpop.f32.mrb[0].mxu0
        %v1772 = vadd.f32 %v1547, %v1771
        %v1773 = vpop.f32.mrb[0].mxu0
        %1774 = vmatprep.mubr.f32.mxu0 0.0
        %1775 = vmatmul.mubr.f32.gmra.mrb[0].mxu0 %v1395
        %v1776 = vpop.f32.mrb[0].mxu0
        %v1777 = vadd.f32 %v1552, %v1776
        %v1778 = vpop.f32.mrb[0].mxu0
        %1779 = vmatprep.mubr.f32.mxu0 0.0
        %1780 = vmatmul.mubr.f32.gmra.mrb[0].mxu0 %v1396
        %v1781 = vpop.f32.mrb[0].mxu0
        %v1782 = vadd.f32 %v1557, %v1781
        %v1783 = vpop.f32.mrb[0].mxu0
        %1784 = vmatprep.mubr.f32.mxu0 0.0
        %1785 = vmatmul.mubr.f32.gmra.mrb[0].mxu0 %v1397
        %v1786 = vpop.f32.mrb[0].mxu0
        %v1787 = vadd.f32 %v1562, %v1786
        %v1788 = vpop.f32.mrb[0].mxu0
        %1789 = vmatprep.mubr.f32.mxu0 0.0
        %1790 = vmatmul.mubr.f32.gmra.mrb[0].mxu0 %v1398
        %v1791 = vpop.f32.mrb[0].mxu0
        %v1792 = vadd.f32 %v1567, %v1791
        %v1793 = vpop.f32.mrb[0].mxu0
        %1794 = vmatprep.mubr.f32.mxu0 0.0
        %1795 = vmatmul.mubr.f32.gmra.mrb[0].mxu0 %v1399
        %v1796 = vpop.f32.mrb[0].mxu0
        %v1797 = vadd.f32 %v1572, %v1796
        %v1798 = vpop.f32.mrb[0].mxu0
        %1799 = vmatprep.mubr.f32.mxu0 0.0
        %1800 = vmatmul.mubr.f32.gmra.mrb[0].mxu0 %v1400
        %v1801 = vpop.f32.mrb[0].mxu0
        %v1802 = vadd.f32 %v1577, %v1801
        %v1803 = vpop.f32.mrb[0].mxu0
        %1804 = vmatprep.mubr.f32.mxu0 0.0
        %1805 = vmatmul.mubr.f32.gmra.mrb[0].mxu0 %v1401
        %v1806 = vpop.f32.mrb[0].mxu0
        %v1807 = vadd.f32 %v1582, %v1806
        %v1808 = vpop.f32.mrb[0].mxu0
        %1809 = vmatprep.mubr.f32.mxu0 0.0
        %1810 = vmatmul.mubr.f32.gmra.mrb[0].mxu0 %v1402
        %v1811 = vpop.f32.mrb[0].mxu0
        %v1812 = vadd.f32 %v1587, %v1811
        %v1813 = vpop.f32.mrb[0].mxu0
        %1814 = vmatprep.mubr.f32.mxu0 0.0
        %1815 = vmatmul.mubr.f32.gmra.mrb[0].mxu0 %v1403
        %v1816 = vpop.f32.mrb[0].mxu0
        %v1817 = vadd.f32 %v1592, %v1816
        %v1818 = vpop.f32.mrb[0].mxu0
        %1819 = vmatprep.mubr.f32.mxu0 0.0
        %1820 = vmatmul.mubr.f32.gmra.mrb[0].mxu0 %v1404
        %v1821 = vpop.f32.mrb[0].mxu0
        %v1822 = vadd.f32 %v1597, %v1821
        %v1823 = vpop.f32.mrb[0].mxu0
        %1824 = vmatprep.mubr.f32.mxu0 0.0
        %1825 = vmatmul.mubr.f32.gmra.mrb[0].mxu0 %v1405
        %v1826 = vpop.f32.mrb[0].mxu0
        %v1827 = vadd.f32 %v1602, %v1826
        %v1828 = vpop.f32.mrb[0].mxu0
        %1829 = vmatprep.mubr.f32.mxu0 0.0
        %1830 = vmatmul.mubr.f32.gmra.mrb[0].mxu0 %v1406
        %v1831 = vpop.f32.mrb[0].mxu0
        %v1832 = vadd.f32 %v1607, %v1831
        %v1833 = vpop.f32.mrb[0].mxu0
        %1834 = vmatprep.mubr.f32.mxu0 0.0
        %1835 = vmatmul.mubr.f32.gmra.mrb[0].mxu0 %v1407
        %v1836 = vpop.f32.mrb[0].mxu0
        %v1837 = vadd.f32 %v1612, %v1836
        %v1838 = vpop.f32.mrb[0].mxu0
        %1839 = vmatprep.mubr.f32.mxu0 0.0
        %1840 = vmatmul.mubr.f32.gmra.mrb[0].mxu0 %v1408
        %v1841 = vpop.f32.mrb[0].mxu0
        %v1842 = vadd.f32 %v1617, %v1841
        %v1843 = vpop.f32.mrb[0].mxu0
        %1844 = vmatprep.mubr.f32.mxu0 0.0
        %1845 = vmatmul.mubr.f32.gmra.mrb[0].mxu0 %v1409
        %v1846 = vpop.f32.mrb[0].mxu0
        %v1847 = vadd.f32 %v1622, %v1846
        %v1848 = vpop.f32.mrb[0].mxu0
        %1849 = vmatprep.mubr.f32.mxu0 0.0
        %1850 = vmatmul.mubr.f32.gmra.mrb[0].mxu0 %v1410
        %v1851 = vpop.f32.mrb[0].mxu0
        %v1852 = vadd.f32 %v1627, %v1851
        %v1853 = vpop.f32.mrb[0].mxu0
        %1854 = vmatprep.mubr.f32.mxu0 0.0
        %1855 = vmatmul.mubr.f32.gmra.mrb[0].mxu0 %v1411
        %v1856 = vpop.f32.mrb[0].mxu0
        %v1857 = vadd.f32 %v1632, %v1856
        %v1858 = vpop.f32.mrb[0].mxu0
        %1859 = vmatprep.mubr.f32.mxu0 0.0
        %1860 = vmatmul.mubr.f32.gmra.mrb[0].mxu0 %v1412
        %v1861 = vpop.f32.mrb[0].mxu0
        %v1862 = vadd.f32 %v1637, %v1861
        %v1863 = vpop.f32.mrb[0].mxu0
        %1864 = vmatprep.mubr.f32.mxu0 0.0
        %1865 = vmatmul.mubr.f32.gmra.mrb[0].mxu0 %v1413
        %v1866 = vpop.f32.mrb[0].mxu0
        %v1867 = vadd.f32 %v1642, %v1866
        %v1868 = vpop.f32.mrb[0].mxu0
        %1869 = vmatprep.mubr.f32.mxu0 0.0
        %1870 = vmatmul.mubr.f32.gmra.mrb[0].mxu0 %v1414
        %v1871 = vpop.f32.mrb[0].mxu0
        %v1872 = vadd.f32 %v1647, %v1871
        %v1873 = vpop.f32.mrb[0].mxu0
        %1874 = vmatprep.mubr.f32.mxu0 0.0
        %1875 = vmatmul.mubr.f32.gmra.mrb[0].mxu0 %v1415
        %v1876 = vpop.f32.mrb[0].mxu0
        %v1877 = vadd.f32 %v1652, %v1876
        %v1878 = vpop.f32.mrb[0].mxu0
        %1879 = vmatprep.mubr.f32.mxu0 0.0
        %1880 = vmatmul.mubr.f32.gmra.mrb[0].mxu0 %v1416
        %v1881 = vpop.f32.mrb[0].mxu0
        %v1882 = vadd.f32 %v1657, %v1881
        %v1883 = vpop.f32.mrb[0].mxu0
        %1884 = vmatprep.mubr.f32.mxu0 0.0
        %1885 = vmatmul.mubr.f32.gmra.mrb[0].mxu0 %v1417
        %v1886 = vpop.f32.mrb[0].mxu0
        %v1887 = vadd.f32 %v1662, %v1886
        %v1888 = vpop.f32.mrb[0].mxu0
        %1889 = vmatprep.mubr.f32.mxu0 0.0
        %1890 = vmatmul.mubr.f32.gmra.mrb[0].mxu0 %v1418
        %v1891 = vpop.f32.mrb[0].mxu0
        %v1892 = vadd.f32 %v1667, %v1891
        %v1893 = vpop.f32.mrb[0].mxu0
        %1894 = vmatprep.mubr.f32.mxu0 0.0
        %1895 = vmatmul.mubr.f32.gmra.mrb[0].mxu0 %v1419
        %v1896 = vpop.f32.mrb[0].mxu0
        %v1897 = vadd.f32 %v1672, %v1896
        %v1898 = vpop.f32.mrb[0].mxu0
        %1899 = vmatprep.mubr.f32.mxu0 0.0
        %1900 = vmatmul.mubr.f32.gmra.mrb[0].mxu0 %v1420
        %v1901 = vpop.f32.mrb[0].mxu0
        %v1902 = vadd.f32 %v1677, %v1901
        %v1903 = vpop.f32.mrb[0].mxu0
        %1904 = vmatprep.mubr.f32.mxu0 0.0
        %1905 = vmatmul.mubr.f32.gmra.mrb[0].mxu0 %v1421
        %v1906 = vpop.f32.mrb[0].mxu0
        %v1907 = vadd.f32 %v1682, %v1906
        %v1908 = vpop.f32.mrb[0].mxu0
        %1909 = vmatprep.mubr.f32.mxu0 0.0
        %1910 = vmatmul.mubr.f32.gmra.mrb[0].mxu0 %v1422
        %v1911 = vpop.f32.mrb[0].mxu0
        %v1912 = vadd.f32 %v1687, %v1911
        %v1913 = vpop.f32.mrb[0].mxu0
        %1914 = vmatprep.mubr.f32.mxu0 0.0
        %1915 = vmatmul.mubr.f32.gmra.mrb[0].mxu0 %v1423
        %v1916 = vpop.f32.mrb[0].mxu0
        %v1917 = vadd.f32 %v1692, %v1916
        %v1918 = vpop.f32.mrb[0].mxu0
        %1919 = vmatprep.mubr.f32.mxu0 0.0
        %1920 = vmatmul.mubr.f32.gmra.mrb[0].mxu0 %v1424
        %v1921 = vpop.f32.mrb[0].mxu0
        %v1922 = vadd.f32 %v1697, %v1921
        %v1923 = vpop.f32.mrb[0].mxu0
        %1924 = vmatprep.mubr.f32.mxu0 0.0
        %1925 = vmatmul.mubr.f32.gmra.mrb[0].mxu0 %v1425
        %v1926 = vpop.f32.mrb[0].mxu0
        %v1927 = vadd.f32 %v1702, %v1926
        %v1928 = vpop.f32.mrb[0].mxu0
        %1929 = vdwg.mxu0
        %v1930 = vmax.f32 %v1772, 0.0
        %v1931 = vmax.f32 %v1777, 0.0
        %v1932 = vmax.f32 %v1782, 0.0
        %v1933 = vmax.f32 %v1787, 0.0
        %v1934 = vmax.f32 %v1792, 0.0
        %v1935 = vmax.f32 %v1797, 0.0
        %v1936 = vmax.f32 %v1802, 0.0
        %v1937 = vmax.f32 %v1807, 0.0
        %v1938 = vmax.f32 %v1812, 0.0
        %v1939 = vmax.f32 %v1817, 0.0
        %v1940 = vmax.f32 %v1822, 0.0
        %v1941 = vmax.f32 %v1827, 0.0
        %v1942 = vmax.f32 %v1832, 0.0
        %v1943 = vmax.f32 %v1837, 0.0
        %v1944 = vmax.f32 %v1842, 0.0
        %v1945 = vmax.f32 %v1847, 0.0
        %v1946 = vmax.f32 %v1852, 0.0
        %v1947 = vmax.f32 %v1857, 0.0
        %v1948 = vmax.f32 %v1862, 0.0
        %v1949 = vmax.f32 %v1867, 0.0
        %v1950 = vmax.f32 %v1872, 0.0
        %v1951 = vmax.f32 %v1877, 0.0
        %v1952 = vmax.f32 %v1882, 0.0
        %v1953 = vmax.f32 %v1887, 0.0
        %v1954 = vmax.f32 %v1892, 0.0
        %v1955 = vmax.f32 %v1897, 0.0
        %v1956 = vmax.f32 %v1902, 0.0
        %v1957 = vmax.f32 %v1907, 0.0
        %v1958 = vmax.f32 %v1912, 0.0
        %v1959 = vmax.f32 %v1917, 0.0
        %v1960 = vmax.f32 %v1922, 0.0
        %v1961 = vmax.f32 %v1927, 0.0
        %1962 = vst [vmem:[#allocation2 + $0x8] sm:$0xff] %v1930
        %1963 = vst [vmem:[#allocation2 + $0x10] sm:$0xff] %v1931
        %1964 = vst [vmem:[#allocation2 + $0x18] sm:$0xff] %v1932
        %1965 = vst [vmem:[#allocation2 + $0x20] sm:$0xff] %v1933
        %1966 = vst [vmem:[#allocation2 + $0x28] sm:$0xff] %v1934
        %1967 = vst [vmem:[#allocation2 + $0x30] sm:$0xff] %v1935
        %1968 = vst [vmem:[#allocation2 + $0x38] sm:$0xff] %v1936
        %1969 = vst [vmem:[#allocation2 + $0x40] sm:$0xff] %v1937
        %1970 = vst [vmem:[#allocation2 + $0x48] sm:$0xff] %v1938
        %1971 = vst [vmem:[#allocation2 + $0x50] sm:$0xff] %v1939
        %1972 = vst [vmem:[#allocation2 + $0x58] sm:$0xff] %v1940
        %1973 = vst [vmem:[#allocation2 + $0x60] sm:$0xff] %v1941
        %1974 = vst [vmem:[#allocation2 + $0x68] sm:$0xff] %v1942
        %1975 = vst [vmem:[#allocation2 + $0x70] sm:$0xff] %v1943
        %1976 = vst [vmem:[#allocation2 + $0x78] sm:$0xff] %v1944
        %1977 = vst [vmem:[#allocation2 + $0x80] sm:$0xff] %v1945
        %1978 = vst [vmem:[#allocation2 + $0x88] sm:$0xff] %v1946
        %1979 = vst [vmem:[#allocation2 + $0x90] sm:$0xff] %v1947
        %1980 = vst [vmem:[#allocation2 + $0x98] sm:$0xff] %v1948
        %1981 = vst [vmem:[#allocation2 + $0xa0] sm:$0xff] %v1949
        %1982 = vst [vmem:[#allocation2 + $0xa8] sm:$0xff] %v1950
        %1983 = vst [vmem:[#allocation2 + $0xb0] sm:$0xff] %v1951
        %1984 = vst [vmem:[#allocation2 + $0xb8] sm:$0xff] %v1952
        %1985 = vst [vmem:[#allocation2 + $0xc0] sm:$0xff] %v1953
        %1986 = vst [vmem:[#allocation2 + $0xc8] sm:$0xff] %v1954
        %1987 = vst [vmem:[#allocation2 + $0xd0] sm:$0xff] %v1955
        %1988 = vst [vmem:[#allocation2 + $0xd8] sm:$0xff] %v1956
        %1989 = vst [vmem:[#allocation2 + $0xe0] sm:$0xff] %v1957
        %1990 = vst [vmem:[#allocation2 + $0xe8] sm:$0xff] %v1958
        %1991 = vst [vmem:[#allocation2 + $0xf0] sm:$0xff] %v1959
        %1992 = vst [vmem:[#allocation2 + $0xf8] sm:$0xff] %v1960
        %1993 = vst [vmem:[#allocation2 + $0x100] sm:$0xff] %v1961
        %v1994 = vld [vmem:[#allocation2 + $0x7] sm:$0xff]
        %v1995 = vld [vmem:[#allocation2 + $0xf] sm:$0xff]
        %v1996 = vld [vmem:[#allocation2 + $0x17] sm:$0xff]
        %v1997 = vld [vmem:[#allocation2 + $0x1f] sm:$0xff]
        %v1998 = vld [vmem:[#allocation2 + $0x27] sm:$0xff]
        %v1999 = vld [vmem:[#allocation2 + $0x2f] sm:$0xff]
        %v2000 = vld [vmem:[#allocation2 + $0x37] sm:$0xff]
        %v2001 = vld [vmem:[#allocation2 + $0x3f] sm:$0xff]
        %v2002 = vld [vmem:[#allocation2 + $0x47] sm:$0xff]
        %v2003 = vld [vmem:[#allocation2 + $0x4f] sm:$0xff]
        %v2004 = vld [vmem:[#allocation2 + $0x57] sm:$0xff]
        %v2005 = vld [vmem:[#allocation2 + $0x5f] sm:$0xff]
        %v2006 = vld [vmem:[#allocation2 + $0x67] sm:$0xff]
        %v2007 = vld [vmem:[#allocation2 + $0x6f] sm:$0xff]
        %v2008 = vld [vmem:[#allocation2 + $0x77] sm:$0xff]
        %v2009 = vld [vmem:[#allocation2 + $0x7f] sm:$0xff]
        %v2010 = vld [vmem:[#allocation2 + $0x87] sm:$0xff]
        %v2011 = vld [vmem:[#allocation2 + $0x8f] sm:$0xff]
        %v2012 = vld [vmem:[#allocation2 + $0x97] sm:$0xff]
        %v2013 = vld [vmem:[#allocation2 + $0x9f] sm:$0xff]
        %v2014 = vld [vmem:[#allocation2 + $0xa7] sm:$0xff]
        %v2015 = vld [vmem:[#allocation2 + $0xaf] sm:$0xff]
        %v2016 = vld [vmem:[#allocation2 + $0xb7] sm:$0xff]
        %v2017 = vld [vmem:[#allocation2 + $0xbf] sm:$0xff]
        %v2018 = vld [vmem:[#allocation2 + $0xc7] sm:$0xff]
        %v2019 = vld [vmem:[#allocation2 + $0xcf] sm:$0xff]
        %v2020 = vld [vmem:[#allocation2 + $0xd7] sm:$0xff]
        %v2021 = vld [vmem:[#allocation2 + $0xdf] sm:$0xff]
        %v2022 = vld [vmem:[#allocation2 + $0xe7] sm:$0xff]
        %v2023 = vld [vmem:[#allocation2 + $0xef] sm:$0xff]
        %v2024 = vld [vmem:[#allocation2 + $0xf7] sm:$0xff]
        %v2025 = vld [vmem:[#allocation2 + $0xff] sm:$0xff]
        %v2026 = vsel %vm976, 0.0, %v1994
        %v2027 = vsel %vm977, 0.0, %v1995
        %v2028 = vsel %vm978, 0.0, %v1996
        %v2029 = vsel %vm979, 0.0, %v1997
        %v2030 = vsel %vm980, 0.0, %v1998
        %v2031 = vsel %vm981, 0.0, %v1999
        %v2032 = vsel %vm982, 0.0, %v2000
        %v2033 = vsel %vm983, 0.0, %v2001
        %v2034 = vsel %vm984, 0.0, %v2002
        %v2035 = vsel %vm985, 0.0, %v2003
        %v2036 = vsel %vm986, 0.0, %v2004
        %v2037 = vsel %vm987, 0.0, %v2005
        %v2038 = vsel %vm988, 0.0, %v2006
        %v2039 = vsel %vm989, 0.0, %v2007
        %v2040 = vsel %vm990, 0.0, %v2008
        %v2041 = vsel %vm991, 0.0, %v2009
        %v2042 = vsel %vm992, 0.0, %v2010
        %v2043 = vsel %vm993, 0.0, %v2011
        %v2044 = vsel %vm994, 0.0, %v2012
        %v2045 = vsel %vm995, 0.0, %v2013
        %v2046 = vsel %vm996, 0.0, %v2014
        %v2047 = vsel %vm997, 0.0, %v2015
        %v2048 = vsel %vm998, 0.0, %v2016
        %v2049 = vsel %vm999, 0.0, %v2017
        %v2050 = vsel %vm1000, 0.0, %v2018
        %v2051 = vsel %vm1001, 0.0, %v2019
        %v2052 = vsel %vm1002, 0.0, %v2020
        %v2053 = vsel %vm1003, 0.0, %v2021
        %v2054 = vsel %vm1004, 0.0, %v2022
        %v2055 = vsel %vm1005, 0.0, %v2023
        %v2056 = vsel %vm1006, 0.0, %v2024
        %v2057 = vsel %vm1007, 0.0, %v2025
        %v2058 = vld [vmem:[#allocation2 + $0x9] sm:$0xff]
        %v2059 = vld [vmem:[#allocation2 + $0x11] sm:$0xff]
        %v2060 = vld [vmem:[#allocation2 + $0x19] sm:$0xff]
        %v2061 = vld [vmem:[#allocation2 + $0x21] sm:$0xff]
        %v2062 = vld [vmem:[#allocation2 + $0x29] sm:$0xff]
        %v2063 = vld [vmem:[#allocation2 + $0x31] sm:$0xff]
        %v2064 = vld [vmem:[#allocation2 + $0x39] sm:$0xff]
        %v2065 = vld [vmem:[#allocation2 + $0x41] sm:$0xff]
        %v2066 = vld [vmem:[#allocation2 + $0x49] sm:$0xff]
        %v2067 = vld [vmem:[#allocation2 + $0x51] sm:$0xff]
        %v2068 = vld [vmem:[#allocation2 + $0x59] sm:$0xff]
        %v2069 = vld [vmem:[#allocation2 + $0x61] sm:$0xff]
        %v2070 = vld [vmem:[#allocation2 + $0x69] sm:$0xff]
        %v2071 = vld [vmem:[#allocation2 + $0x71] sm:$0xff]
        %v2072 = vld [vmem:[#allocation2 + $0x79] sm:$0xff]
        %v2073 = vld [vmem:[#allocation2 + $0x81] sm:$0xff]
        %v2074 = vld [vmem:[#allocation2 + $0x89] sm:$0xff]
        %v2075 = vld [vmem:[#allocation2 + $0x91] sm:$0xff]
        %v2076 = vld [vmem:[#allocation2 + $0x99] sm:$0xff]
        %v2077 = vld [vmem:[#allocation2 + $0xa1] sm:$0xff]
        %v2078 = vld [vmem:[#allocation2 + $0xa9] sm:$0xff]
        %v2079 = vld [vmem:[#allocation2 + $0xb1] sm:$0xff]
        %v2080 = vld [vmem:[#allocation2 + $0xb9] sm:$0xff]
        %v2081 = vld [vmem:[#allocation2 + $0xc1] sm:$0xff]
        %v2082 = vld [vmem:[#allocation2 + $0xc9] sm:$0xff]
        %v2083 = vld [vmem:[#allocation2 + $0xd1] sm:$0xff]
        %v2084 = vld [vmem:[#allocation2 + $0xd9] sm:$0xff]
        %v2085 = vld [vmem:[#allocation2 + $0xe1] sm:$0xff]
        %v2086 = vld [vmem:[#allocation2 + $0xe9] sm:$0xff]
        %v2087 = vld [vmem:[#allocation2 + $0xf1] sm:$0xff]
        %v2088 = vld [vmem:[#allocation2 + $0xf9] sm:$0xff]
        %v2089 = vld [vmem:[#allocation2 + $0x101] sm:$0xff]
        %v2090 = vsel %vm1362, 0.0, %v2058
        %v2091 = vsel %vm1363, 0.0, %v2059
        %v2092 = vsel %vm1364, 0.0, %v2060
        %v2093 = vsel %vm1365, 0.0, %v2061
        %v2094 = vsel %vm1366, 0.0, %v2062
        %v2095 = vsel %vm1367, 0.0, %v2063
        %v2096 = vsel %vm1368, 0.0, %v2064
        %v2097 = vsel %vm1369, 0.0, %v2065
        %v2098 = vsel %vm1370, 0.0, %v2066
        %v2099 = vsel %vm1371, 0.0, %v2067
        %v2100 = vsel %vm1372, 0.0, %v2068
        %v2101 = vsel %vm1373, 0.0, %v2069
        %v2102 = vsel %vm1374, 0.0, %v2070
        %v2103 = vsel %vm1375, 0.0, %v2071
        %v2104 = vsel %vm1376, 0.0, %v2072
        %v2105 = vsel %vm1377, 0.0, %v2073
        %v2106 = vsel %vm1378, 0.0, %v2074
        %v2107 = vsel %vm1379, 0.0, %v2075
        %v2108 = vsel %vm1380, 0.0, %v2076
        %v2109 = vsel %vm1381, 0.0, %v2077
        %v2110 = vsel %vm1382, 0.0, %v2078
        %v2111 = vsel %vm1383, 0.0, %v2079
        %v2112 = vsel %vm1384, 0.0, %v2080
        %v2113 = vsel %vm1385, 0.0, %v2081
        %v2114 = vsel %vm1386, 0.0, %v2082
        %v2115 = vsel %vm1387, 0.0, %v2083
        %v2116 = vsel %vm1388, 0.0, %v2084
        %v2117 = vsel %vm1389, 0.0, %v2085
        %v2118 = vsel %vm1390, 0.0, %v2086
        %v2119 = vsel %vm1391, 0.0, %v2087
        %v2120 = vsel %vm1392, 0.0, %v2088
        %v2121 = vsel %vm1393, 0.0, %v2089
        %v2122 = vld [vmem:[#allocation8] sm:$0xff]
        %v2123 = vld [vmem:[#allocation8 + $0x8] sm:$0xff]
        %v2124 = vld [vmem:[#allocation8 + $0x10] sm:$0xff]
        %v2125 = vld [vmem:[#allocation8 + $0x18] sm:$0xff]
        %v2126 = vld [vmem:[#allocation8 + $0x20] sm:$0xff]
        %v2127 = vld [vmem:[#allocation8 + $0x28] sm:$0xff]
        %v2128 = vld [vmem:[#allocation8 + $0x30] sm:$0xff]
        %v2129 = vld [vmem:[#allocation8 + $0x38] sm:$0xff]
        %v2130 = vld [vmem:[#allocation8 + $0x40] sm:$0xff]
        %v2131 = vld [vmem:[#allocation8 + $0x48] sm:$0xff]
        %v2132 = vld [vmem:[#allocation8 + $0x50] sm:$0xff]
        %v2133 = vld [vmem:[#allocation8 + $0x58] sm:$0xff]
        %v2134 = vld [vmem:[#allocation8 + $0x60] sm:$0xff]
        %v2135 = vld [vmem:[#allocation8 + $0x68] sm:$0xff]
        %v2136 = vld [vmem:[#allocation8 + $0x70] sm:$0xff]
        %v2137 = vld [vmem:[#allocation8 + $0x78] sm:$0xff]
        %v2138 = vld [vmem:[#allocation8 + $0x80] sm:$0xff]
        %v2139 = vld [vmem:[#allocation8 + $0x88] sm:$0xff]
        %v2140 = vld [vmem:[#allocation8 + $0x90] sm:$0xff]
        %v2141 = vld [vmem:[#allocation8 + $0x98] sm:$0xff]
        %v2142 = vld [vmem:[#allocation8 + $0xa0] sm:$0xff]
        %v2143 = vld [vmem:[#allocation8 + $0xa8] sm:$0xff]
        %v2144 = vld [vmem:[#allocation8 + $0xb0] sm:$0xff]
        %v2145 = vld [vmem:[#allocation8 + $0xb8] sm:$0xff]
        %v2146 = vld [vmem:[#allocation8 + $0xc0] sm:$0xff]
        %v2147 = vld [vmem:[#allocation8 + $0xc8] sm:$0xff]
        %v2148 = vld [vmem:[#allocation8 + $0xd0] sm:$0xff]
        %v2149 = vld [vmem:[#allocation8 + $0xd8] sm:$0xff]
        %v2150 = vld [vmem:[#allocation8 + $0xe0] sm:$0xff]
        %v2151 = vld [vmem:[#allocation8 + $0xe8] sm:$0xff]
        %v2152 = vld [vmem:[#allocation8 + $0xf0] sm:$0xff]
        %v2153 = vld [vmem:[#allocation8 + $0xf8] sm:$0xff]
        %v2154 = vld [vmem:[#allocation8 + $0x100] sm:$0xff]
        %v2155 = vld [vmem:[#allocation8 + $0x108] sm:$0xff]
        %v2156 = vld [vmem:[#allocation8 + $0x110] sm:$0xff]
        %v2157 = vld [vmem:[#allocation8 + $0x118] sm:$0xff]
        %v2158 = vld [vmem:[#allocation8 + $0x120] sm:$0xff]
        %v2159 = vld [vmem:[#allocation8 + $0x128] sm:$0xff]
        %v2160 = vld [vmem:[#allocation8 + $0x130] sm:$0xff]
        %v2161 = vld [vmem:[#allocation8 + $0x138] sm:$0xff]
        %v2162 = vld [vmem:[#allocation8 + $0x140] sm:$0xff]
        %v2163 = vld [vmem:[#allocation8 + $0x148] sm:$0xff]
        %v2164 = vld [vmem:[#allocation8 + $0x150] sm:$0xff]
        %v2165 = vld [vmem:[#allocation8 + $0x158] sm:$0xff]
        %v2166 = vld [vmem:[#allocation8 + $0x160] sm:$0xff]
        %v2167 = vld [vmem:[#allocation8 + $0x168] sm:$0xff]
        %v2168 = vld [vmem:[#allocation8 + $0x170] sm:$0xff]
        %v2169 = vld [vmem:[#allocation8 + $0x178] sm:$0xff]
        %v2171 = vlaneseq
        %v2172 = vshrl.u32 %v2171, 7
        %v2173 = vsub.s32 0, %v2172
        %v2174 = vrot.slane %v1105, %v2173
        %2176 = vmatprep.subr.mxu0 0.0
        %2177 = vmatpush1.msra.mxu0 %v2122
        %2178 = vmatprep.subr.mxu0 0.0
        %2179 = vmatpush1.msra.mxu0 %v2123
        %2180 = vmatprep.subr.mxu0 0.0
        %2181 = vmatpush1.msra.mxu0 %v2124
        %2182 = vmatprep.subr.mxu0 0.0
        %2183 = vmatpush1.msra.mxu0 %v2125
        %2184 = vmatprep.subr.mxu0 0.0
        %2185 = vmatpush1.msra.mxu0 %v2126
        %2186 = vmatprep.subr.mxu0 0.0
        %2187 = vmatpush1.msra.mxu0 %v2127
        %2188 = vmatprep.subr.mxu0 0.0
        %2189 = vmatpush1.msra.mxu0 %v2128
        %2190 = vmatprep.subr.mxu0 0.0
        %2191 = vmatpush1.msra.mxu0 %v2129
        %2192 = vmatprep.subr.mxu0 0.0
        %2193 = vmatpush1.msra.mxu0 %v2130
        %2194 = vmatprep.subr.mxu0 0.0
        %2195 = vmatpush1.msra.mxu0 %v2131
        %2196 = vmatprep.subr.mxu0 0.0
        %2197 = vmatpush1.msra.mxu0 %v2132
        %2198 = vmatprep.subr.mxu0 0.0
        %2199 = vmatpush1.msra.mxu0 %v2133
        %2200 = vmatprep.subr.mxu0 0.0
        %2201 = vmatpush1.msra.mxu0 %v2134
        %2202 = vmatprep.subr.mxu0 0.0
        %2203 = vmatpush1.msra.mxu0 %v2135
        %2204 = vmatprep.subr.mxu0 0.0
        %2205 = vmatpush1.msra.mxu0 %v2136
        %2206 = vmatprep.subr.mxu0 0.0
        %2207 = vmatpush1.msra.mxu0 %v2137
        %2208 = vmatprep.subr.mxu0 0.0
        %2209 = vmatpush1.msra.mxu0 %v2138
        %2210 = vmatprep.subr.mxu0 0.0
        %2211 = vmatpush1.msra.mxu0 %v2139
        %2212 = vmatprep.subr.mxu0 0.0
        %2213 = vmatpush1.msra.mxu0 %v2140
        %2214 = vmatprep.subr.mxu0 0.0
        %2215 = vmatpush1.msra.mxu0 %v2141
        %2216 = vmatprep.subr.mxu0 0.0
        %2217 = vmatpush1.msra.mxu0 %v2142
        %2218 = vmatprep.subr.mxu0 0.0
        %2219 = vmatpush1.msra.mxu0 %v2143
        %2220 = vmatprep.subr.mxu0 0.0
        %2221 = vmatpush1.msra.mxu0 %v2144
        %2222 = vmatprep.subr.mxu0 0.0
        %2223 = vmatpush1.msra.mxu0 %v2145
        %2224 = vmatprep.subr.mxu0 0.0
        %2225 = vmatpush1.msra.mxu0 %v2146
        %2226 = vmatprep.subr.mxu0 0.0
        %2227 = vmatpush1.msra.mxu0 %v2147
        %2228 = vmatprep.subr.mxu0 0.0
        %2229 = vmatpush1.msra.mxu0 %v2148
        %2230 = vmatprep.subr.mxu0 0.0
        %2231 = vmatpush1.msra.mxu0 %v2149
        %2232 = vmatprep.subr.mxu0 0.0
        %2233 = vmatpush1.msra.mxu0 %v2150
        %2234 = vmatprep.subr.mxu0 0.0
        %2235 = vmatpush1.msra.mxu0 %v2151
        %2236 = vmatprep.subr.mxu0 0.0
        %2237 = vmatpush1.msra.mxu0 %v2152
        %2238 = vmatprep.subr.mxu0 0.0
        %2239 = vmatpush1.msra.mxu0 %v2153
        %2240 = vmatprep.mubr.f32.mxu0 %v1930
        %2241 = vmatmul.mubr.f32.gmra.mrb[0].mxu0 %v2026
        %v2242 = vpop.f32.mrb[0].mxu0
        %v2243 = vadd.f32 %v2174, %v2242
        %v2244 = vpop.f32.mrb[0].mxu0
        %2245 = vmatprep.mubr.f32.mxu0 %v1931
        %2246 = vmatmul.mubr.f32.gmra.mrb[0].mxu0 %v2027
        %v2247 = vpop.f32.mrb[0].mxu0
        %v2248 = vadd.f32 %v2174, %v2247
        %v2249 = vpop.f32.mrb[0].mxu0
        %2250 = vmatprep.mubr.f32.mxu0 %v1932
        %2251 = vmatmul.mubr.f32.gmra.mrb[0].mxu0 %v2028
        %v2252 = vpop.f32.mrb[0].mxu0
        %v2253 = vadd.f32 %v2174, %v2252
        %v2254 = vpop.f32.mrb[0].mxu0
        %2255 = vmatprep.mubr.f32.mxu0 %v1933
        %2256 = vmatmul.mubr.f32.gmra.mrb[0].mxu0 %v2029
        %v2257 = vpop.f32.mrb[0].mxu0
        %v2258 = vadd.f32 %v2174, %v2257
        %v2259 = vpop.f32.mrb[0].mxu0
        %2260 = vmatprep.mubr.f32.mxu0 %v1934
        %2261 = vmatmul.mubr.f32.gmra.mrb[0].mxu0 %v2030
        %v2262 = vpop.f32.mrb[0].mxu0
        %v2263 = vadd.f32 %v2174, %v2262
        %v2264 = vpop.f32.mrb[0].mxu0
        %2265 = vmatprep.mubr.f32.mxu0 %v1935
        %2266 = vmatmul.mubr.f32.gmra.mrb[0].mxu0 %v2031
        %v2267 = vpop.f32.mrb[0].mxu0
        %v2268 = vadd.f32 %v2174, %v2267
        %v2269 = vpop.f32.mrb[0].mxu0
        %2270 = vmatprep.mubr.f32.mxu0 %v1936
        %2271 = vmatmul.mubr.f32.gmra.mrb[0].mxu0 %v2032
        %v2272 = vpop.f32.mrb[0].mxu0
        %v2273 = vadd.f32 %v2174, %v2272
        %v2274 = vpop.f32.mrb[0].mxu0
        %2275 = vmatprep.mubr.f32.mxu0 %v1937
        %2276 = vmatmul.mubr.f32.gmra.mrb[0].mxu0 %v2033
        %v2277 = vpop.f32.mrb[0].mxu0
        %v2278 = vadd.f32 %v2174, %v2277
        %v2279 = vpop.f32.mrb[0].mxu0
        %2280 = vmatprep.mubr.f32.mxu0 %v1938
        %2281 = vmatmul.mubr.f32.gmra.mrb[0].mxu0 %v2034
        %v2282 = vpop.f32.mrb[0].mxu0
        %v2283 = vadd.f32 %v2174, %v2282
        %v2284 = vpop.f32.mrb[0].mxu0
        %2285 = vmatprep.mubr.f32.mxu0 %v1939
        %2286 = vmatmul.mubr.f32.gmra.mrb[0].mxu0 %v2035
        %v2287 = vpop.f32.mrb[0].mxu0
        %v2288 = vadd.f32 %v2174, %v2287
        %v2289 = vpop.f32.mrb[0].mxu0
        %2290 = vmatprep.mubr.f32.mxu0 %v1940
        %2291 = vmatmul.mubr.f32.gmra.mrb[0].mxu0 %v2036
        %v2292 = vpop.f32.mrb[0].mxu0
        %v2293 = vadd.f32 %v2174, %v2292
        %v2294 = vpop.f32.mrb[0].mxu0
        %2295 = vmatprep.mubr.f32.mxu0 %v1941
        %2296 = vmatmul.mubr.f32.gmra.mrb[0].mxu0 %v2037
        %v2297 = vpop.f32.mrb[0].mxu0
        %v2298 = vadd.f32 %v2174, %v2297
        %v2299 = vpop.f32.mrb[0].mxu0
        %2300 = vmatprep.mubr.f32.mxu0 %v1942
        %2301 = vmatmul.mubr.f32.gmra.mrb[0].mxu0 %v2038
        %v2302 = vpop.f32.mrb[0].mxu0
        %v2303 = vadd.f32 %v2174, %v2302
        %v2304 = vpop.f32.mrb[0].mxu0
        %2305 = vmatprep.mubr.f32.mxu0 %v1943
        %2306 = vmatmul.mubr.f32.gmra.mrb[0].mxu0 %v2039
        %v2307 = vpop.f32.mrb[0].mxu0
        %v2308 = vadd.f32 %v2174, %v2307
        %v2309 = vpop.f32.mrb[0].mxu0
        %2310 = vmatprep.mubr.f32.mxu0 %v1944
        %2311 = vmatmul.mubr.f32.gmra.mrb[0].mxu0 %v2040
        %v2312 = vpop.f32.mrb[0].mxu0
        %v2313 = vadd.f32 %v2174, %v2312
        %v2314 = vpop.f32.mrb[0].mxu0
        %2315 = vmatprep.mubr.f32.mxu0 %v1945
        %2316 = vmatmul.mubr.f32.gmra.mrb[0].mxu0 %v2041
        %v2317 = vpop.f32.mrb[0].mxu0
        %v2318 = vadd.f32 %v2174, %v2317
        %v2319 = vpop.f32.mrb[0].mxu0
        %2320 = vmatprep.mubr.f32.mxu0 %v1946
        %2321 = vmatmul.mubr.f32.gmra.mrb[0].mxu0 %v2042
        %v2322 = vpop.f32.mrb[0].mxu0
        %v2323 = vadd.f32 %v2174, %v2322
        %v2324 = vpop.f32.mrb[0].mxu0
        %2325 = vmatprep.mubr.f32.mxu0 %v1947
        %2326 = vmatmul.mubr.f32.gmra.mrb[0].mxu0 %v2043
        %v2327 = vpop.f32.mrb[0].mxu0
        %v2328 = vadd.f32 %v2174, %v2327
        %v2329 = vpop.f32.mrb[0].mxu0
        %2330 = vmatprep.mubr.f32.mxu0 %v1948
        %2331 = vmatmul.mubr.f32.gmra.mrb[0].mxu0 %v2044
        %v2332 = vpop.f32.mrb[0].mxu0
        %v2333 = vadd.f32 %v2174, %v2332
        %v2334 = vpop.f32.mrb[0].mxu0
        %2335 = vmatprep.mubr.f32.mxu0 %v1949
        %2336 = vmatmul.mubr.f32.gmra.mrb[0].mxu0 %v2045
        %v2337 = vpop.f32.mrb[0].mxu0
        %v2338 = vadd.f32 %v2174, %v2337
        %v2339 = vpop.f32.mrb[0].mxu0
        %2340 = vmatprep.mubr.f32.mxu0 %v1950
        %2341 = vmatmul.mubr.f32.gmra.mrb[0].mxu0 %v2046
        %v2342 = vpop.f32.mrb[0].mxu0
        %v2343 = vadd.f32 %v2174, %v2342
        %v2344 = vpop.f32.mrb[0].mxu0
        %2345 = vmatprep.mubr.f32.mxu0 %v1951
        %2346 = vmatmul.mubr.f32.gmra.mrb[0].mxu0 %v2047
        %v2347 = vpop.f32.mrb[0].mxu0
        %v2348 = vadd.f32 %v2174, %v2347
        %v2349 = vpop.f32.mrb[0].mxu0
        %2350 = vmatprep.mubr.f32.mxu0 %v1952
        %2351 = vmatmul.mubr.f32.gmra.mrb[0].mxu0 %v2048
        %v2352 = vpop.f32.mrb[0].mxu0
        %v2353 = vadd.f32 %v2174, %v2352
        %v2354 = vpop.f32.mrb[0].mxu0
        %2355 = vmatprep.mubr.f32.mxu0 %v1953
        %2356 = vmatmul.mubr.f32.gmra.mrb[0].mxu0 %v2049
        %v2357 = vpop.f32.mrb[0].mxu0
        %v2358 = vadd.f32 %v2174, %v2357
        %v2359 = vpop.f32.mrb[0].mxu0
        %2360 = vmatprep.mubr.f32.mxu0 %v1954
        %2361 = vmatmul.mubr.f32.gmra.mrb[0].mxu0 %v2050
        %v2362 = vpop.f32.mrb[0].mxu0
        %v2363 = vadd.f32 %v2174, %v2362
        %v2364 = vpop.f32.mrb[0].mxu0
        %2365 = vmatprep.mubr.f32.mxu0 %v1955
        %2366 = vmatmul.mubr.f32.gmra.mrb[0].mxu0 %v2051
        %v2367 = vpop.f32.mrb[0].mxu0
        %v2368 = vadd.f32 %v2174, %v2367
        %v2369 = vpop.f32.mrb[0].mxu0
        %2370 = vmatprep.mubr.f32.mxu0 %v1956
        %2371 = vmatmul.mubr.f32.gmra.mrb[0].mxu0 %v2052
        %v2372 = vpop.f32.mrb[0].mxu0
        %v2373 = vadd.f32 %v2174, %v2372
        %v2374 = vpop.f32.mrb[0].mxu0
        %2375 = vmatprep.mubr.f32.mxu0 %v1957
        %2376 = vmatmul.mubr.f32.gmra.mrb[0].mxu0 %v2053
        %v2377 = vpop.f32.mrb[0].mxu0
        %v2378 = vadd.f32 %v2174, %v2377
        %v2379 = vpop.f32.mrb[0].mxu0
        %2380 = vmatprep.mubr.f32.mxu0 %v1958
        %2381 = vmatmul.mubr.f32.gmra.mrb[0].mxu0 %v2054
        %v2382 = vpop.f32.mrb[0].mxu0
        %v2383 = vadd.f32 %v2174, %v2382
        %v2384 = vpop.f32.mrb[0].mxu0
        %2385 = vmatprep.mubr.f32.mxu0 %v1959
        %2386 = vmatmul.mubr.f32.gmra.mrb[0].mxu0 %v2055
        %v2387 = vpop.f32.mrb[0].mxu0
        %v2388 = vadd.f32 %v2174, %v2387
        %v2389 = vpop.f32.mrb[0].mxu0
        %2390 = vmatprep.mubr.f32.mxu0 %v1960
        %2391 = vmatmul.mubr.f32.gmra.mrb[0].mxu0 %v2056
        %v2392 = vpop.f32.mrb[0].mxu0
        %v2393 = vadd.f32 %v2174, %v2392
        %v2394 = vpop.f32.mrb[0].mxu0
        %2395 = vmatprep.mubr.f32.mxu0 %v1961
        %2396 = vmatmul.mubr.f32.gmra.mrb[0].mxu0 %v2057
        %v2397 = vpop.f32.mrb[0].mxu0
        %v2398 = vadd.f32 %v2174, %v2397
        %v2399 = vpop.f32.mrb[0].mxu0
        %2400 = vdwg.mxu0
        %2401 = vmatprep.subr.mxu0 0.0
        %2402 = vmatpush1.msra.mxu0 %v2154
        %2403 = vmatprep.subr.mxu0 0.0
        %2404 = vmatpush1.msra.mxu0 %v2155
        %2405 = vmatprep.subr.mxu0 0.0
        %2406 = vmatpush1.msra.mxu0 %v2156
        %2407 = vmatprep.subr.mxu0 0.0
        %2408 = vmatpush1.msra.mxu0 %v2157
        %2409 = vmatprep.subr.mxu0 0.0
        %2410 = vmatpush1.msra.mxu0 %v2158
        %2411 = vmatprep.subr.mxu0 0.0
        %2412 = vmatpush1.msra.mxu0 %v2159
        %2413 = vmatprep.subr.mxu0 0.0
        %2414 = vmatpush1.msra.mxu0 %v2160
        %2415 = vmatprep.subr.mxu0 0.0
        %2416 = vmatpush1.msra.mxu0 %v2161
        %2417 = vmatprep.subr.mxu0 0.0
        %2418 = vmatpush1.msra.mxu0 %v2162
        %2419 = vmatprep.subr.mxu0 0.0
        %2420 = vmatpush1.msra.mxu0 %v2163
        %2421 = vmatprep.subr.mxu0 0.0
        %2422 = vmatpush1.msra.mxu0 %v2164
        %2423 = vmatprep.subr.mxu0 0.0
        %2424 = vmatpush1.msra.mxu0 %v2165
        %2425 = vmatprep.subr.mxu0 0.0
        %2426 = vmatpush1.msra.mxu0 %v2166
        %2427 = vmatprep.subr.mxu0 0.0
        %2428 = vmatpush1.msra.mxu0 %v2167
        %2429 = vmatprep.subr.mxu0 0.0
        %2430 = vmatpush1.msra.mxu0 %v2168
        %2431 = vmatprep.subr.mxu0 0.0
        %2432 = vmatpush1.msra.mxu0 %v2169
        %2433 = vmatprep.subr.mxu0 0.0
        %2434 = vmatpush1.msra.mxu0 0.0
        %2435 = vmatprep.subr.mxu0 0.0
        %2436 = vmatpush1.msra.mxu0 0.0
        %2437 = vmatprep.subr.mxu0 0.0
        %2438 = vmatpush1.msra.mxu0 0.0
        %2439 = vmatprep.subr.mxu0 0.0
        %2440 = vmatpush1.msra.mxu0 0.0
        %2441 = vmatprep.subr.mxu0 0.0
        %2442 = vmatpush1.msra.mxu0 0.0
        %2443 = vmatprep.subr.mxu0 0.0
        %2444 = vmatpush1.msra.mxu0 0.0
        %2445 = vmatprep.subr.mxu0 0.0
        %2446 = vmatpush1.msra.mxu0 0.0
        %2447 = vmatprep.subr.mxu0 0.0
        %2448 = vmatpush1.msra.mxu0 0.0
        %2449 = vmatprep.subr.mxu0 0.0
        %2450 = vmatpush1.msra.mxu0 0.0
        %2451 = vmatprep.subr.mxu0 0.0
        %2452 = vmatpush1.msra.mxu0 0.0
        %2453 = vmatprep.subr.mxu0 0.0
        %2454 = vmatpush1.msra.mxu0 0.0
        %2455 = vmatprep.subr.mxu0 0.0
        %2456 = vmatpush1.msra.mxu0 0.0
        %2457 = vmatprep.subr.mxu0 0.0
        %2458 = vmatpush1.msra.mxu0 0.0
        %2459 = vmatprep.subr.mxu0 0.0
        %2460 = vmatpush1.msra.mxu0 0.0
        %2461 = vmatprep.subr.mxu0 0.0
        %2462 = vmatpush1.msra.mxu0 0.0
        %2463 = vmatprep.subr.mxu0 0.0
        %2464 = vmatpush1.msra.mxu0 0.0
        %2465 = vmatprep.mubr.f32.mxu0 0.0
        %2466 = vmatmul.mubr.f32.gmra.mrb[0].mxu0 %v2090
        %v2467 = vpop.f32.mrb[0].mxu0
        %v2468 = vadd.f32 %v2243, %v2467
        %v2469 = vpop.f32.mrb[0].mxu0
        %2470 = vmatprep.mubr.f32.mxu0 0.0
        %2471 = vmatmul.mubr.f32.gmra.mrb[0].mxu0 %v2091
        %v2472 = vpop.f32.mrb[0].mxu0
        %v2473 = vadd.f32 %v2248, %v2472
        %v2474 = vpop.f32.mrb[0].mxu0
        %2475 = vmatprep.mubr.f32.mxu0 0.0
        %2476 = vmatmul.mubr.f32.gmra.mrb[0].mxu0 %v2092
        %v2477 = vpop.f32.mrb[0].mxu0
        %v2478 = vadd.f32 %v2253, %v2477
        %v2479 = vpop.f32.mrb[0].mxu0
        %2480 = vmatprep.mubr.f32.mxu0 0.0
        %2481 = vmatmul.mubr.f32.gmra.mrb[0].mxu0 %v2093
        %v2482 = vpop.f32.mrb[0].mxu0
        %v2483 = vadd.f32 %v2258, %v2482
        %v2484 = vpop.f32.mrb[0].mxu0
        %2485 = vmatprep.mubr.f32.mxu0 0.0
        %2486 = vmatmul.mubr.f32.gmra.mrb[0].mxu0 %v2094
        %v2487 = vpop.f32.mrb[0].mxu0
        %v2488 = vadd.f32 %v2263, %v2487
        %v2489 = vpop.f32.mrb[0].mxu0
        %2490 = vmatprep.mubr.f32.mxu0 0.0
        %2491 = vmatmul.mubr.f32.gmra.mrb[0].mxu0 %v2095
        %v2492 = vpop.f32.mrb[0].mxu0
        %v2493 = vadd.f32 %v2268, %v2492
        %v2494 = vpop.f32.mrb[0].mxu0
        %2495 = vmatprep.mubr.f32.mxu0 0.0
        %2496 = vmatmul.mubr.f32.gmra.mrb[0].mxu0 %v2096
        %v2497 = vpop.f32.mrb[0].mxu0
        %v2498 = vadd.f32 %v2273, %v2497
        %v2499 = vpop.f32.mrb[0].mxu0
        %2500 = vmatprep.mubr.f32.mxu0 0.0
        %2501 = vmatmul.mubr.f32.gmra.mrb[0].mxu0 %v2097
        %v2502 = vpop.f32.mrb[0].mxu0
        %v2503 = vadd.f32 %v2278, %v2502
        %v2504 = vpop.f32.mrb[0].mxu0
        %2505 = vmatprep.mubr.f32.mxu0 0.0
        %2506 = vmatmul.mubr.f32.gmra.mrb[0].mxu0 %v2098
        %v2507 = vpop.f32.mrb[0].mxu0
        %v2508 = vadd.f32 %v2283, %v2507
        %v2509 = vpop.f32.mrb[0].mxu0
        %2510 = vmatprep.mubr.f32.mxu0 0.0
        %2511 = vmatmul.mubr.f32.gmra.mrb[0].mxu0 %v2099
        %v2512 = vpop.f32.mrb[0].mxu0
        %v2513 = vadd.f32 %v2288, %v2512
        %v2514 = vpop.f32.mrb[0].mxu0
        %2515 = vmatprep.mubr.f32.mxu0 0.0
        %2516 = vmatmul.mubr.f32.gmra.mrb[0].mxu0 %v2100
        %v2517 = vpop.f32.mrb[0].mxu0
        %v2518 = vadd.f32 %v2293, %v2517
        %v2519 = vpop.f32.mrb[0].mxu0
        %2520 = vmatprep.mubr.f32.mxu0 0.0
        %2521 = vmatmul.mubr.f32.gmra.mrb[0].mxu0 %v2101
        %v2522 = vpop.f32.mrb[0].mxu0
        %v2523 = vadd.f32 %v2298, %v2522
        %v2524 = vpop.f32.mrb[0].mxu0
        %2525 = vmatprep.mubr.f32.mxu0 0.0
        %2526 = vmatmul.mubr.f32.gmra.mrb[0].mxu0 %v2102
        %v2527 = vpop.f32.mrb[0].mxu0
        %v2528 = vadd.f32 %v2303, %v2527
        %v2529 = vpop.f32.mrb[0].mxu0
        %2530 = vmatprep.mubr.f32.mxu0 0.0
        %2531 = vmatmul.mubr.f32.gmra.mrb[0].mxu0 %v2103
        %v2532 = vpop.f32.mrb[0].mxu0
        %v2533 = vadd.f32 %v2308, %v2532
        %v2534 = vpop.f32.mrb[0].mxu0
        %2535 = vmatprep.mubr.f32.mxu0 0.0
        %2536 = vmatmul.mubr.f32.gmra.mrb[0].mxu0 %v2104
        %v2537 = vpop.f32.mrb[0].mxu0
        %v2538 = vadd.f32 %v2313, %v2537
        %v2539 = vpop.f32.mrb[0].mxu0
        %2540 = vmatprep.mubr.f32.mxu0 0.0
        %2541 = vmatmul.mubr.f32.gmra.mrb[0].mxu0 %v2105
        %v2542 = vpop.f32.mrb[0].mxu0
        %v2543 = vadd.f32 %v2318, %v2542
        %v2544 = vpop.f32.mrb[0].mxu0
        %2545 = vmatprep.mubr.f32.mxu0 0.0
        %2546 = vmatmul.mubr.f32.gmra.mrb[0].mxu0 %v2106
        %v2547 = vpop.f32.mrb[0].mxu0
        %v2548 = vadd.f32 %v2323, %v2547
        %v2549 = vpop.f32.mrb[0].mxu0
        %2550 = vmatprep.mubr.f32.mxu0 0.0
        %2551 = vmatmul.mubr.f32.gmra.mrb[0].mxu0 %v2107
        %v2552 = vpop.f32.mrb[0].mxu0
        %v2553 = vadd.f32 %v2328, %v2552
        %v2554 = vpop.f32.mrb[0].mxu0
        %2555 = vmatprep.mubr.f32.mxu0 0.0
        %2556 = vmatmul.mubr.f32.gmra.mrb[0].mxu0 %v2108
        %v2557 = vpop.f32.mrb[0].mxu0
        %v2558 = vadd.f32 %v2333, %v2557
        %v2559 = vpop.f32.mrb[0].mxu0
        %2560 = vmatprep.mubr.f32.mxu0 0.0
        %2561 = vmatmul.mubr.f32.gmra.mrb[0].mxu0 %v2109
        %v2562 = vpop.f32.mrb[0].mxu0
        %v2563 = vadd.f32 %v2338, %v2562
        %v2564 = vpop.f32.mrb[0].mxu0
        %2565 = vmatprep.mubr.f32.mxu0 0.0
        %2566 = vmatmul.mubr.f32.gmra.mrb[0].mxu0 %v2110
        %v2567 = vpop.f32.mrb[0].mxu0
        %v2568 = vadd.f32 %v2343, %v2567
        %v2569 = vpop.f32.mrb[0].mxu0
        %2570 = vmatprep.mubr.f32.mxu0 0.0
        %2571 = vmatmul.mubr.f32.gmra.mrb[0].mxu0 %v2111
        %v2572 = vpop.f32.mrb[0].mxu0
        %v2573 = vadd.f32 %v2348, %v2572
        %v2574 = vpop.f32.mrb[0].mxu0
        %2575 = vmatprep.mubr.f32.mxu0 0.0
        %2576 = vmatmul.mubr.f32.gmra.mrb[0].mxu0 %v2112
        %v2577 = vpop.f32.mrb[0].mxu0
        %v2578 = vadd.f32 %v2353, %v2577
        %v2579 = vpop.f32.mrb[0].mxu0
        %2580 = vmatprep.mubr.f32.mxu0 0.0
        %2581 = vmatmul.mubr.f32.gmra.mrb[0].mxu0 %v2113
        %v2582 = vpop.f32.mrb[0].mxu0
        %v2583 = vadd.f32 %v2358, %v2582
        %v2584 = vpop.f32.mrb[0].mxu0
        %2585 = vmatprep.mubr.f32.mxu0 0.0
        %2586 = vmatmul.mubr.f32.gmra.mrb[0].mxu0 %v2114
        %v2587 = vpop.f32.mrb[0].mxu0
        %v2588 = vadd.f32 %v2363, %v2587
        %v2589 = vpop.f32.mrb[0].mxu0
        %2590 = vmatprep.mubr.f32.mxu0 0.0
        %2591 = vmatmul.mubr.f32.gmra.mrb[0].mxu0 %v2115
        %v2592 = vpop.f32.mrb[0].mxu0
        %v2593 = vadd.f32 %v2368, %v2592
        %v2594 = vpop.f32.mrb[0].mxu0
        %2595 = vmatprep.mubr.f32.mxu0 0.0
        %2596 = vmatmul.mubr.f32.gmra.mrb[0].mxu0 %v2116
        %v2597 = vpop.f32.mrb[0].mxu0
        %v2598 = vadd.f32 %v2373, %v2597
        %v2599 = vpop.f32.mrb[0].mxu0
        %2600 = vmatprep.mubr.f32.mxu0 0.0
        %2601 = vmatmul.mubr.f32.gmra.mrb[0].mxu0 %v2117
        %v2602 = vpop.f32.mrb[0].mxu0
        %v2603 = vadd.f32 %v2378, %v2602
        %v2604 = vpop.f32.mrb[0].mxu0
        %2605 = vmatprep.mubr.f32.mxu0 0.0
        %2606 = vmatmul.mubr.f32.gmra.mrb[0].mxu0 %v2118
        %v2607 = vpop.f32.mrb[0].mxu0
        %v2608 = vadd.f32 %v2383, %v2607
        %v2609 = vpop.f32.mrb[0].mxu0
        %2610 = vmatprep.mubr.f32.mxu0 0.0
        %2611 = vmatmul.mubr.f32.gmra.mrb[0].mxu0 %v2119
        %v2612 = vpop.f32.mrb[0].mxu0
        %v2613 = vadd.f32 %v2388, %v2612
        %v2614 = vpop.f32.mrb[0].mxu0
        %2615 = vmatprep.mubr.f32.mxu0 0.0
        %2616 = vmatmul.mubr.f32.gmra.mrb[0].mxu0 %v2120
        %v2617 = vpop.f32.mrb[0].mxu0
        %v2618 = vadd.f32 %v2393, %v2617
        %v2619 = vpop.f32.mrb[0].mxu0
        %2620 = vmatprep.mubr.f32.mxu0 0.0
        %2621 = vmatmul.mubr.f32.gmra.mrb[0].mxu0 %v2121
        %v2622 = vpop.f32.mrb[0].mxu0
        %v2623 = vadd.f32 %v2398, %v2622
        %v2624 = vpop.f32.mrb[0].mxu0
        %2625 = vdwg.mxu0
        %v2626 = vmax.f32 %v2468, 0.0
        %v2627 = vmax.f32 %v2473, 0.0
        %v2628 = vmax.f32 %v2478, 0.0
        %v2629 = vmax.f32 %v2483, 0.0
        %v2630 = vmax.f32 %v2488, 0.0
        %v2631 = vmax.f32 %v2493, 0.0
        %v2632 = vmax.f32 %v2498, 0.0
        %v2633 = vmax.f32 %v2503, 0.0
        %v2634 = vmax.f32 %v2508, 0.0
        %v2635 = vmax.f32 %v2513, 0.0
        %v2636 = vmax.f32 %v2518, 0.0
        %v2637 = vmax.f32 %v2523, 0.0
        %v2638 = vmax.f32 %v2528, 0.0
        %v2639 = vmax.f32 %v2533, 0.0
        %v2640 = vmax.f32 %v2538, 0.0
        %v2641 = vmax.f32 %v2543, 0.0
        %v2642 = vmax.f32 %v2548, 0.0
        %v2643 = vmax.f32 %v2553, 0.0
        %v2644 = vmax.f32 %v2558, 0.0
        %v2645 = vmax.f32 %v2563, 0.0
        %v2646 = vmax.f32 %v2568, 0.0
        %v2647 = vmax.f32 %v2573, 0.0
        %v2648 = vmax.f32 %v2578, 0.0
        %v2649 = vmax.f32 %v2583, 0.0
        %v2650 = vmax.f32 %v2588, 0.0
        %v2651 = vmax.f32 %v2593, 0.0
        %v2652 = vmax.f32 %v2598, 0.0
        %v2653 = vmax.f32 %v2603, 0.0
        %v2654 = vmax.f32 %v2608, 0.0
        %v2655 = vmax.f32 %v2613, 0.0
        %v2656 = vmax.f32 %v2618, 0.0
        %v2657 = vmax.f32 %v2623, 0.0
        %v2658 = vadd.f32 %v2626, %v1072
        %v2659 = vadd.f32 %v2627, %v1073
        %v2660 = vadd.f32 %v2628, %v1074
        %v2661 = vadd.f32 %v2629, %v1075
        %v2662 = vadd.f32 %v2630, %v1076
        %v2663 = vadd.f32 %v2631, %v1077
        %v2664 = vadd.f32 %v2632, %v1078
        %v2665 = vadd.f32 %v2633, %v1079
        %v2666 = vadd.f32 %v2634, %v1080
        %v2667 = vadd.f32 %v2635, %v1081
        %v2668 = vadd.f32 %v2636, %v1082
        %v2669 = vadd.f32 %v2637, %v1083
        %v2670 = vadd.f32 %v2638, %v1084
        %v2671 = vadd.f32 %v2639, %v1085
        %v2672 = vadd.f32 %v2640, %v1086
        %v2673 = vadd.f32 %v2641, %v1087
        %v2674 = vadd.f32 %v2642, %v1088
        %v2675 = vadd.f32 %v2643, %v1089
        %v2676 = vadd.f32 %v2644, %v1090
        %v2677 = vadd.f32 %v2645, %v1091
        %v2678 = vadd.f32 %v2646, %v1092
        %v2679 = vadd.f32 %v2647, %v1093
        %v2680 = vadd.f32 %v2648, %v1094
        %v2681 = vadd.f32 %v2649, %v1095
        %v2682 = vadd.f32 %v2650, %v1096
        %v2683 = vadd.f32 %v2651, %v1097
        %v2684 = vadd.f32 %v2652, %v1098
        %v2685 = vadd.f32 %v2653, %v1099
        %v2686 = vadd.f32 %v2654, %v1100
        %v2687 = vadd.f32 %v2655, %v1101
        %v2688 = vadd.f32 %v2656, %v1102
        %v2689 = vadd.f32 %v2657, %v1103
        %2690 = vxpose.xlu0.b32.start [1/16] %v2658, 128
        %2691 = vxpose.xlu0.b32.cont [2/16] %v2659, 128
        %2692 = vxpose.xlu0.b32.cont [3/16] %v2660, 128
        %2693 = vxpose.xlu0.b32.cont [4/16] %v2661, 128
        %2694 = vxpose.xlu0.b32.cont [5/16] %v2662, 128
        %2695 = vxpose.xlu0.b32.cont [6/16] %v2663, 128
        %2696 = vxpose.xlu0.b32.cont [7/16] %v2664, 128
        %2697 = vxpose.xlu0.b32.cont [8/16] %v2665, 128
        %2698 = vxpose.xlu0.b32.cont [9/16] %v2666, 128
        %2699 = vxpose.xlu0.b32.cont [10/16] %v2667, 128
        %2700 = vxpose.xlu0.b32.cont [11/16] %v2668, 128
        %2701 = vxpose.xlu0.b32.cont [12/16] %v2669, 128
        %2702 = vxpose.xlu0.b32.cont [13/16] %v2670, 128
        %2703 = vxpose.xlu0.b32.cont [14/16] %v2671, 128
        %2704 = vxpose.xlu0.b32.cont [15/16] %v2672, 128
        %2705 = vxpose.xlu0.b32.end [16/16] %v2673, 128
        %v2706 = vpop.trf.xlu0
        %v2707 = vpop.trf.xlu0
        %v2708 = vpop.trf.xlu0
        %v2709 = vpop.trf.xlu0
        %v2710 = vpop.trf.xlu0
        %v2711 = vpop.trf.xlu0
        %v2712 = vpop.trf.xlu0
        %v2713 = vpop.trf.xlu0
        %v2714 = vpop.trf.xlu0
        %v2715 = vpop.trf.xlu0
        %v2716 = vpop.trf.xlu0
        %v2717 = vpop.trf.xlu0
        %v2718 = vpop.trf.xlu0
        %v2719 = vpop.trf.xlu0
        %v2720 = vpop.trf.xlu0
        %v2721 = vpop.trf.xlu0
        %2722 = vst [vmem:[%s299] sm:$0xff] %v2706
        %2723 = vst [vmem:[%s299 + $0x8] sm:$0xff] %v2707
        %2724 = vst [vmem:[%s299 + $0x10] sm:$0xff] %v2708
        %2725 = vst [vmem:[%s299 + $0x18] sm:$0xff] %v2709
        %2726 = vst [vmem:[%s299 + $0x20] sm:$0xff] %v2710
        %2727 = vst [vmem:[%s299 + $0x28] sm:$0xff] %v2711
        %2728 = vst [vmem:[%s299 + $0x30] sm:$0xff] %v2712
        %2729 = vst [vmem:[%s299 + $0x38] sm:$0xff] %v2713
        %2730 = vst [vmem:[%s299 + $0x40] sm:$0xff] %v2714
        %2731 = vst [vmem:[%s299 + $0x48] sm:$0xff] %v2715
        %2732 = vst [vmem:[%s299 + $0x50] sm:$0xff] %v2716
        %2733 = vst [vmem:[%s299 + $0x58] sm:$0xff] %v2717
        %2734 = vst [vmem:[%s299 + $0x60] sm:$0xff] %v2718
        %2735 = vst [vmem:[%s299 + $0x68] sm:$0xff] %v2719
        %2736 = vst [vmem:[%s299 + $0x70] sm:$0xff] %v2720
        %2737 = vst [vmem:[%s299 + $0x78] sm:$0xff] %v2721
        %2738 = vxpose.xlu0.b32.start [1/16] %v2674, 128
        %2739 = vxpose.xlu0.b32.cont [2/16] %v2675, 128
        %2740 = vxpose.xlu0.b32.cont [3/16] %v2676, 128
        %2741 = vxpose.xlu0.b32.cont [4/16] %v2677, 128
        %2742 = vxpose.xlu0.b32.cont [5/16] %v2678, 128
        %2743 = vxpose.xlu0.b32.cont [6/16] %v2679, 128
        %2744 = vxpose.xlu0.b32.cont [7/16] %v2680, 128
        %2745 = vxpose.xlu0.b32.cont [8/16] %v2681, 128
        %2746 = vxpose.xlu0.b32.cont [9/16] %v2682, 128
        %2747 = vxpose.xlu0.b32.cont [10/16] %v2683, 128
        %2748 = vxpose.xlu0.b32.cont [11/16] %v2684, 128
        %2749 = vxpose.xlu0.b32.cont [12/16] %v2685, 128
        %2750 = vxpose.xlu0.b32.cont [13/16] %v2686, 128
        %2751 = vxpose.xlu0.b32.cont [14/16] %v2687, 128
        %2752 = vxpose.xlu0.b32.cont [15/16] %v2688, 128
        %2753 = vxpose.xlu0.b32.end [16/16] %v2689, 128
        %v2754 = vpop.trf.xlu0
        %v2755 = vpop.trf.xlu0
        %v2756 = vpop.trf.xlu0
        %v2757 = vpop.trf.xlu0
        %v2758 = vpop.trf.xlu0
        %v2759 = vpop.trf.xlu0
        %v2760 = vpop.trf.xlu0
        %v2761 = vpop.trf.xlu0
        %v2762 = vpop.trf.xlu0
        %v2763 = vpop.trf.xlu0
        %v2764 = vpop.trf.xlu0
        %v2765 = vpop.trf.xlu0
        %v2766 = vpop.trf.xlu0
        %v2767 = vpop.trf.xlu0
        %v2768 = vpop.trf.xlu0
        %v2769 = vpop.trf.xlu0
        %s2770 = scalar_lea.vmem %s299, 128 [#allocation9]
        %2771 = vst [vmem:[%s2770] sm:$0xff] %v2754
        %2772 = vst [vmem:[%s2770 + $0x8] sm:$0xff] %v2755
        %2773 = vst [vmem:[%s2770 + $0x10] sm:$0xff] %v2756
        %2774 = vst [vmem:[%s2770 + $0x18] sm:$0xff] %v2757
        %2775 = vst [vmem:[%s2770 + $0x20] sm:$0xff] %v2758
        %2776 = vst [vmem:[%s2770 + $0x28] sm:$0xff] %v2759
        %2777 = vst [vmem:[%s2770 + $0x30] sm:$0xff] %v2760
        %2778 = vst [vmem:[%s2770 + $0x38] sm:$0xff] %v2761
        %2779 = vst [vmem:[%s2770 + $0x40] sm:$0xff] %v2762
        %2780 = vst [vmem:[%s2770 + $0x48] sm:$0xff] %v2763
        %2781 = vst [vmem:[%s2770 + $0x50] sm:$0xff] %v2764
        %2782 = vst [vmem:[%s2770 + $0x58] sm:$0xff] %v2765
        %2783 = vst [vmem:[%s2770 + $0x60] sm:$0xff] %v2766
        %2784 = vst [vmem:[%s2770 + $0x68] sm:$0xff] %v2767
        %2785 = vst [vmem:[%s2770 + $0x70] sm:$0xff] %v2768
        %2786 = vst [vmem:[%s2770 + $0x78] sm:$0xff] %v2769
        %s2787 = sand.u32 %s163, 1
        %s2788 = scalar_lea.sflag [#allocation5], %s2787
        %s2789 = sand.u32 %s163, 1
        %s2790 = smul.addr %s2789, 256
        %s2791 = scalar_lea.vmem [#allocation9], %s2790
        // Predicated region
        $region57: #{tpu_custom_call.1} parent=43 // pred_check
          %p2792 = pneg %p173
        $region58: #{tpu_custom_call.1} parent=43 // pred_check_branch
          %2794 = sbr.rel (%p2792) target = $region60
        $region59: #{tpu_custom_call.1} parent=43 // pred_region
          %s2795 = smul.u32 2, %s24
          %s2797 = ssub.s32 4096, 4096
          %2798 = vsyncadd %s2788, %s2797
          %s2799 = smul.addr %s2795, 16
          %s2800 = smul.addr %s2799, 128
          %s2801 = scalar_lea.hbm %s6, %s2800
          %s2802 = sshll.u32 %s2791, 4
          %s2803 = int_to_ptr.vmem [resolvable:$true] %s2802
          %2808 = dma.vmem_to_hbm [thread:$0]  %s2803, 4096, %s2801, %s2788, 128, 128, 8
        $region60: #{tpu_custom_call.1} parent=43 // pred_fallthru
          _
      $region44: #{tpu_custom_call.1} parent=5 // pred_fallthru
        _
      %p2809 = scmp.le.s32.totalorder 2, %s19
      // Predicated region
      $region61: #{tpu_custom_call.1} parent=5 // pred_check
        %p2810 = pneg %p2809
      $region62: #{tpu_custom_call.1} parent=5 // pred_check_branch
        %2812 = sbr.rel (%p2810) target = $region64
      $region63: #{tpu_custom_call.1} parent=5 // pred_region
        %s2813 = ssub.s32 %s19, 2
        // Predicated region
        $region65: #{tpu_custom_call.1} parent=63 // pred_check
          %p2814 = pneg %p179
        $region66: #{tpu_custom_call.1} parent=63 // pred_check_branch
          %2816 = sbr.rel (%p2814) target = $region68
        $region67: #{tpu_custom_call.1} parent=63 // pred_region
          %s2817 = sand.u32 %s164, 1
          %s2818 = scalar_lea.sflag [#allocation5], %s2817
          %s2819 = sand.u32 %s164, 1
          %s2820 = smul.addr %s2819, 256
          %s2821 = scalar_lea.vmem [#allocation9], %s2820
          %2822 = dma.done %s2818, 4096
        $region68: #{tpu_custom_call.1} parent=63 // pred_fallthru
          _
      $region64: #{tpu_custom_call.1} parent=5 // pred_fallthru
        _
    $region6: #{tpu_custom_call.1} parent=1 // loop_footer
      %s23 = sadd.s32 1, %s19
    $region7: #{tpu_custom_call.1} parent=1 // loop_footer_branch
      %18 = sbr.rel target = $region3
    $region8: #{tpu_custom_call.1} parent=1 // loop_exit
      _
    %2823 = vsyncpa [#allocation4], 1
    %s2824 = scalar_lea.sflag [#allocation4], 1
    %2825 = vsyncpa %s2824, 1
    %2826 = vsyncpa [#allocation7], 1
    %2827 = vsyncpa [#allocation5], 1
    %s2828 = scalar_lea.sflag [#allocation5], 1
    %2829 = vsyncpa %s2828, 1

</llo_original>
